<compile_context>
chip_gen: v6e
topology: v6e:2x2x1
jax: 0.10.0
libtpu: 0.0.40
codegen_flags: <defaults>
</compile_context>

<pallas_src>
import functools
import math

import jax
import jax.numpy as jnp
from jax.experimental import pallas as pl
from jax.experimental.pallas import tpu as pltpu

NUM_BENDS = 3
LANE = 128
K_TILE_MAX = 2048          # max Din (K) slab per grid step


def _round_up(x, m):
    return ((x + m - 1) // m) * m


def _k_tiling(in_dim):
    """(k_tile, padded_Din). Same rule used by prepare_params and the wrapper."""
    din_pad = _round_up(max(in_dim, LANE), LANE)
    if din_pad <= K_TILE_MAX:
        return din_pad, din_pad
    din_pad = _round_up(din_pad, K_TILE_MAX)
    return K_TILE_MAX, din_pad


# ----------------------------- curve (Bezier) ------------------------------ #
def bezier_coeffs(t, num_bends):
    """Bezier curve coefficients for scalar t in [0, 1]. Plain-JAX glue."""
    n = num_bends - 1
    ks = jnp.arange(num_bends, dtype=jnp.float32)
    binom = jnp.array([math.comb(n, k) for k in range(num_bends)], jnp.float32)
    t = jnp.asarray(t, jnp.float32)
    return binom * (t ** ks) * ((1.0 - t) ** (n - ks))


# --------------------------- fused Pallas kernel ---------------------------- #
def _fused_curvenet_kernel(coeffs_ref, x_ref, w1_ref, b1_ref, w2_ref, b2_ref,
                           y_ref, acc_ref, *, num_bends):
    # coeffs_ref: SMEM (nb,)              curve coefficients
    # x_ref     : VMEM (Bm, tk)           input rows, K slab `k` (f32 or bf16)
    # w1_ref    : VMEM (nb, tk, Hp) bf16  stacked, pre-transposed layer-1 weights
    # b1_ref    : VMEM (nb, Hp)     f32   layer-1 biases (lane padded)
    # w2_ref    : VMEM (nb, Hp, Cp) bf16  stacked, pre-transposed layer-2 weights
    # b2_ref    : VMEM (nb, Cp)     f32   layer-2 biases (lane padded)
    # y_ref     : VMEM (Bm, Cp)     f32   lane-dense output slab
    # acc_ref   : VMEM (Bm, Hp)     f32   layer-1 accumulator across K slabs
    k = pl.program_id(1)
    nk = pl.num_programs(1)

    # Read the curve coefficients once (SMEM scalar reads), reuse everywhere.
    c = [coeffs_ref[j] for j in range(num_bends)]

    # ---- layer 1, K slab `k`: weight-space curve combine (VPU work that
    # hides under the MXU), then one lane-dense [Bm, tk] x [tk, Hp] matmul.
    # w_t is combined in f32 and rounded once to bf16. ----
    w1_t = c[0] * w1_ref[0]
    for j in range(1, num_bends):
        w1_t = w1_t + c[j] * w1_ref[j]
    w1_t = w1_t.astype(jnp.bfloat16)                         # [tk, Hp]

    @pl.when(k == 0)
    def _():
        acc_ref[...] = jnp.zeros_like(acc_ref)

    acc_ref[...] += jnp.dot(x_ref[...].astype(jnp.bfloat16), w1_t,
                            preferred_element_type=jnp.float32)

    # ---- finalize on the last K slab: bias + ReLU + layer 2 (full 128-K
    # MXU tile thanks to the lane-padded hidden dimension). ----
    @pl.when(k == nk - 1)
    def _():
        b1_t = c[0] * b1_ref[0]
        b2_t = c[0] * b2_ref[0]
        w2_t = c[0] * w2_ref[0]
        for j in range(1, num_bends):
            b1_t = b1_t + c[j] * b1_ref[j]
            b2_t = b2_t + c[j] * b2_ref[j]
            w2_t = w2_t + c[j] * w2_ref[j]

        h = jnp.maximum(acc_ref[...] + b1_t[None, :], 0.0)   # [Bm, Hp] lane-dense
        y = jnp.dot(h.astype(jnp.bfloat16), w2_t.astype(jnp.bfloat16),
                    preferred_element_type=jnp.float32)      # [Bm, Cp]
        y_ref[...] = (y + b2_t[None, :]).astype(y_ref.dtype)


def _resident_spec(block_shape, index_map):
    """BlockSpec for a grid-invariant operand: single-buffered when supported
    (its index_map is constant, so double-buffering only wastes VMEM)."""
    try:
        return pl.BlockSpec(block_shape, index_map, pipeline_mode=pl.Buffered(1))
    except (TypeError, ValueError, AttributeError):
        return pl.BlockSpec(block_shape, index_map)


def _curvenet_pallas(prepared, x_padded, coeffs, *, block_b):
    Bp, din_pad = x_padded.shape
    w1, b1, w2, b2 = prepared["w1"], prepared["b1"], prepared["w2"], prepared["b2"]
    nb, _, Hp = w1.shape
    Cp = w2.shape[2]

    tk = din_pad if din_pad <= K_TILE_MAX else K_TILE_MAX
    nk = din_pad // tk
    grid = (Bp // block_b, nk)

    # W1 is single-buffered when grid-invariant (one K slab); otherwise it
    # tiles over K and keeps default double-buffering for DMA/compute overlap.
    if nk == 1:
        w1_spec = _resident_spec((nb, tk, Hp), lambda i, k: (0, 0, 0))
    else:
        w1_spec = pl.BlockSpec((nb, tk, Hp), lambda i, k: (0, k, 0))

    in_specs = [
        pl.BlockSpec(memory_space=pltpu.MemorySpace.SMEM),        # coeffs
        pl.BlockSpec((block_b, tk), lambda i, k: (i, k)),         # x K slab
        w1_spec,                                                  # stacked W1
        _resident_spec((nb, Hp), lambda i, k: (0, 0)),            # b1
        _resident_spec((nb, Hp, Cp), lambda i, k: (0, 0, 0)),     # stacked W2
        _resident_spec((nb, Cp), lambda i, k: (0, 0)),            # b2
    ]

    itemsize_x = x_padded.dtype.itemsize
    flops = 2 * Bp * din_pad * Hp + 2 * Bp * Hp * Cp
    bytes_accessed = (Bp * din_pad * itemsize_x
                      + w1.size * w1.dtype.itemsize
                      + w2.size * w2.dtype.itemsize
                      + b1.size * 4 + b2.size * 4
                      + Bp * Cp * 4)

    # Explicit scoped-VMEM budget (derived, with headroom; capped at v7x's
    # 64 MiB physical so the same kernel stays portable across generations).
    vmem_bytes = (2 * block_b * tk * itemsize_x               # x (double-buffered)
                  + (2 if nk > 1 else 1) * nb * tk * Hp * 2   # W1 slab(s)
                  + nb * Hp * 4 + nb * Hp * Cp * 2 + nb * Cp * 4
                  + block_b * Hp * 4                          # accumulator
                  + 2 * block_b * Cp * 4)                     # output
    vmem_limit = min(64 * 1024 * 1024, int(vmem_bytes * 1.5) + (4 << 20))

    kernel = functools.partial(_fused_curvenet_kernel, num_bends=nb)

    return pl.pallas_call(
        kernel,
        out_shape=jax.ShapeDtypeStruct((Bp, Cp), jnp.float32),
        grid=grid,
        in_specs=in_specs,
        out_specs=pl.BlockSpec((block_b, Cp), lambda i, k: (i, 0)),
        scratch_shapes=[pltpu.VMEM((block_b, Hp), jnp.float32)],
        compiler_params=pltpu.CompilerParams(
            dimension_semantics=("parallel", "arbitrary"),
            vmem_limit_bytes=vmem_limit),
        cost_estimate=pl.CostEstimate(flops=flops, transcendentals=0,
                                      bytes_accessed=bytes_accessed),
    )(coeffs, x_padded, w1, b1, w2, b2)


# ------------------------------- CurveNet ---------------------------------- #
def init_curvenet_params(key, in_dim, hidden, num_classes, num_bends):
    """Deterministic synthetic parameters: num_bends copies per layer
    (PyTorch layout: W [nb, Dout, Din], b [nb, Dout])."""
    k1, k2, k3, k4 = jax.random.split(key, 4)
    s1 = 1.0 / math.sqrt(in_dim)
    s2 = 1.0 / math.sqrt(hidden)
    return {
        "w1": jax.random.normal(k1, (num_bends, hidden, in_dim), jnp.float32) * s1,
        "b1": jax.random.normal(k2, (num_bends, hidden), jnp.float32) * s1,
        "w2": jax.random.normal(k3, (num_bends, num_classes, hidden), jnp.float32) * s2,
        "b2": jax.random.normal(k4, (num_bends, num_classes), jnp.float32) * s2,
    }


def prepare_params(raw):
    """One-time relayout: pre-transpose + pad weights so the kernel does a
    weight-space curve combine followed by plain [M,K]x[K,N] MXU matmuls with
    fully lane-aligned (128-padded) hidden / class dims; weights cast to bf16;
    precompute the t-independent Gram matrix for l2 = c^T G c."""
    w1, b1, w2, b2 = raw["w1"], raw["b1"], raw["w2"], raw["b2"]
    nb, hidden, in_dim = w1.shape
    _, num_classes, _ = w2.shape
    Hp = _round_up(hidden, LANE)
    Cp = _round_up(num_classes, LANE)
    _tk, din_pad = _k_tiling(in_dim)

    # [nb, H, Din] -> [nb, Din_pad, Hp]  (each bend slice is W_j^T, zero padded)
    w1_p = jnp.transpose(w1, (0, 2, 1))
    w1_p = jnp.pad(w1_p, ((0, 0), (0, din_pad - in_dim), (0, Hp - hidden)))
    b1_p = jnp.pad(b1, ((0, 0), (0, Hp - hidden)))

    # [nb, C, H] -> [nb, Hp, Cp]
    w2_p = jnp.transpose(w2, (0, 2, 1))
    w2_p = jnp.pad(w2_p, ((0, 0), (0, Hp - hidden), (0, Cp - num_classes)))
    b2_p = jnp.pad(b2, ((0, 0), (0, Cp - num_classes)))

    # Gram matrix: G[j,k] = <P_j, P_k> over both layers' weights + biases, so
    # sum(w_t^2)+sum(b_t^2) over both CurveModules == c^T G c exactly.
    gram = (jnp.einsum("joi,koi->jk", w1, w1)
            + jnp.einsum("jo,ko->jk", b1, b1)
            + jnp.einsum("joi,koi->jk", w2, w2)
            + jnp.einsum("jo,ko->jk", b2, b2))

    return {
        "w1": w1_p.astype(jnp.bfloat16),
        "b1": b1_p.astype(jnp.float32),
        "w2": w2_p.astype(jnp.bfloat16),
        "b2": b2_p.astype(jnp.float32),
        "gram": gram.astype(jnp.float32),
    }


@functools.partial(jax.jit, static_argnames=("num_classes",))
def curvenet_forward(prepared, x, t, *, num_classes):
    """CurveNet.forward: coeffs_t = curve(t); output = net(x, coeffs_t); l2."""
    coeffs = bezier_coeffs(t, NUM_BENDS)
    B = x.shape[0]
    h = x.reshape(B, -1)                  # NCHW row-major flatten (== torch .view)
    din = h.shape[1]
    din_pad = prepared["w1"].shape[1]

    # Batch tile: 128 rows keeps the MXU M dimension fed; 256 at larger batch.
    # Pad to at least 2 tiles so the "parallel" grid axis can shard across
    # both v7x TensorCores (no-op on single-TC v5e/v6e).
    block_b = 256 if B >= 256 else 128
    n_btiles = max(2, (B + block_b - 1) // block_b)
    Bp = n_btiles * block_b

    # bf16 inputs are accepted as-is (the kernel casts per tile); no wrapper
    # cast pass is inserted.
    h = jnp.pad(h, ((0, Bp - B), (0, din_pad - din)))

    y_padded = _curvenet_pallas(prepared, h, coeffs, block_b=block_b)
    out = y_padded[:B, :num_classes]

    # l2 = sum over CurveModules of (sum(w_t^2) + sum(b_t^2)) == c^T G c.
    l2 = jnp.einsum("i,ij,j->", coeffs, prepared["gram"], coeffs)
    return out, l2


# ------------------------ pure-JAX reference (check) ------------------------ #
def _reference_forward(raw, x, t):
    coeffs = bezier_coeffs(t, NUM_BENDS)
    B = x.shape[0]
    h = x.reshape(B, -1)
    w1_t = jnp.einsum("j,joi->oi", coeffs, raw["w1"])
    b1_t = jnp.einsum("j,jo->o", coeffs, raw["b1"])
    w2_t = jnp.einsum("j,joi->oi", coeffs, raw["w2"])
    b2_t = jnp.einsum("j,jo->o", coeffs, raw["b2"])
    h = jnp.maximum(h @ w1_t.T + b1_t, 0.0)
    out = h @ w2_t.T + b2_t
    l2 = (jnp.sum(w1_t ** 2) + jnp.sum(b1_t ** 2)
          + jnp.sum(w2_t ** 2) + jnp.sum(b2_t ** 2))
    return out, l2


if __name__ == "__main__":
    key = jax.random.PRNGKey(0)
    k_x, k_t, k_p = jax.random.split(key, 3)

    B, C, H, W = 2, 4, 16, 16
    hidden = 32
    num_classes = 10
    in_dim = C * H * W

    x = jax.random.normal(k_x, (B, C, H, W), jnp.float32)
    # t is None in PyTorch -> sampled uniform; here a deterministic uniform draw.
    t = jax.random.uniform(k_t, ())

    raw_params = init_curvenet_params(k_p, in_dim, hidden, num_classes, NUM_BENDS)
    prepared = prepare_params(raw_params)

    out, l2 = curvenet_forward(prepared, x, t, num_classes=num_classes)
    jax.block_until_ready((out, l2))

    assert out.shape == (B, num_classes)
    assert out.dtype == jnp.float32

    # Loose-tolerance check vs. pure-JAX reference (kernel matmuls run bf16
    # with f32 accumulation; l2 Gram form is algebraically exact).
    ref_out, ref_l2 = _reference_forward(raw_params, x, t)
    assert bool(jnp.allclose(out, ref_out, rtol=5e-2, atol=5e-2))
    assert bool(jnp.allclose(l2, ref_l2, rtol=2e-2, atol=1e-3))

    # TODO(synk): the original `curve`/`architecture` ctor args are abstract;
    # a concrete Bezier(3) + 2-layer curve MLP is instantiated here.
    print("KERNEL_OK")
</pallas_src>

<mosaic_0001>
module attributes {stable_mosaic.version = 11 : i64} {
  func.func @_fused_curvenet_kernel(%arg0: i32, %arg1: i32, %arg2: memref<3xf32, #tpu.memory_space<smem>>, %arg3: memref<128x1024xf32, #tpu.memory_space<vmem>>, %arg4: memref<3x1024x128xbf16, #tpu.memory_space<vmem>>, %arg5: memref<3x128xf32, #tpu.memory_space<vmem>>, %arg6: memref<3x128x128xbf16, #tpu.memory_space<vmem>>, %arg7: memref<3x128xf32, #tpu.memory_space<vmem>>, %arg8: memref<128x128xf32, #tpu.memory_space<vmem>>, %arg9: memref<128x128xf32, #tpu.memory_space<vmem>>) attributes {dimension_semantics = [#tpu.dimension_semantics<parallel>, #tpu.dimension_semantics<arbitrary>], iteration_bounds = array<i64: 2, 1>, scalar_prefetch = 0 : i64, scratch_operands = 1 : i64, tpu.core_type = #tpu.core_type<tc>, window_params = [{transform_indices = @transform_0, window_bounds = array<i64: 3>}, {transform_indices = @transform_1, window_bounds = array<i64: 128, 1024>}, {pipeline_mode = #tpu.pipeline_mode<synchronous>, transform_indices = @transform_2, window_bounds = array<i64: 3, 1024, 128>}, {pipeline_mode = #tpu.pipeline_mode<synchronous>, transform_indices = @transform_3, window_bounds = array<i64: 3, 128>}, {pipeline_mode = #tpu.pipeline_mode<synchronous>, transform_indices = @transform_4, window_bounds = array<i64: 3, 128, 128>}, {pipeline_mode = #tpu.pipeline_mode<synchronous>, transform_indices = @transform_5, window_bounds = array<i64: 3, 128>}, {transform_indices = @transform_6, window_bounds = array<i64: 128, 128>}]} {
    %c0 = arith.constant 0 : index
    %0 = memref.load %arg2[%c0] : memref<3xf32, #tpu.memory_space<smem>>
    %c1 = arith.constant 1 : index
    %1 = memref.load %arg2[%c1] : memref<3xf32, #tpu.memory_space<smem>>
    %c2 = arith.constant 2 : index
    %2 = memref.load %arg2[%c2] : memref<3xf32, #tpu.memory_space<smem>>
    %c0_0 = arith.constant 0 : index
    %c0_1 = arith.constant 0 : index
    %c0_2 = arith.constant 0 : index
    %3 = vector.load %arg4[%c0_0, %c0_1, %c0_2] : memref<3x1024x128xbf16, #tpu.memory_space<vmem>>, vector<1x1024x128xbf16>
    %4 = vector.shape_cast %3 : vector<1x1024x128xbf16> to vector<1024x128xbf16>
    %5 = arith.extf %4 : vector<1024x128xbf16> to vector<1024x128xf32>
    %6 = vector.broadcast %0 : f32 to vector<1024x128xf32>
    %7 = arith.mulf %6, %5 : vector<1024x128xf32>
    %c1_3 = arith.constant 1 : index
    %c0_4 = arith.constant 0 : index
    %c0_5 = arith.constant 0 : index
    %8 = vector.load %arg4[%c1_3, %c0_4, %c0_5] : memref<3x1024x128xbf16, #tpu.memory_space<vmem>>, vector<1x1024x128xbf16>
    %9 = vector.shape_cast %8 : vector<1x1024x128xbf16> to vector<1024x128xbf16>
    %10 = arith.extf %9 : vector<1024x128xbf16> to vector<1024x128xf32>
    %11 = vector.broadcast %1 : f32 to vector<1024x128xf32>
    %12 = arith.mulf %11, %10 : vector<1024x128xf32>
    %13 = arith.addf %7, %12 : vector<1024x128xf32>
    %c2_6 = arith.constant 2 : index
    %c0_7 = arith.constant 0 : index
    %c0_8 = arith.constant 0 : index
    %14 = vector.load %arg4[%c2_6, %c0_7, %c0_8] : memref<3x1024x128xbf16, #tpu.memory_space<vmem>>, vector<1x1024x128xbf16>
    %15 = vector.shape_cast %14 : vector<1x1024x128xbf16> to vector<1024x128xbf16>
    %16 = arith.extf %15 : vector<1024x128xbf16> to vector<1024x128xf32>
    %17 = vector.broadcast %2 : f32 to vector<1024x128xf32>
    %18 = arith.mulf %17, %16 : vector<1024x128xf32>
    %19 = arith.addf %13, %18 : vector<1024x128xf32>
    %20 = arith.truncf %19 : vector<1024x128xf32> to vector<1024x128xbf16>
    %c0_i32 = arith.constant 0 : i32
    %21 = arith.cmpi eq, %arg1, %c0_i32 : i32
    %22 = arith.extui %21 : i1 to i32
    %c0_i32_9 = arith.constant 0 : i32
    %23 = arith.cmpi ne, %22, %c0_i32_9 : i32
    scf.if %23 {
      %cst_18 = arith.constant 0.000000e+00 : f32
      %33 = vector.broadcast %cst_18 : f32 to vector<128x128xf32>
      %c0_19 = arith.constant 0 : index
      %c0_20 = arith.constant 0 : index
      %34 = vector.load %arg9[%c0_19, %c0_20] : memref<128x128xf32, #tpu.memory_space<vmem>>, vector<128x128xf32>
      tpu.vector_store %arg9[%c0_19, %c0_20], %33 {strides = array<i32>} : memref<128x128xf32, #tpu.memory_space<vmem>>, vector<128x128xf32>,
    } else {
    }
    %c0_10 = arith.constant 0 : index
    %c0_11 = arith.constant 0 : index
    %24 = vector.load %arg9[%c0_10, %c0_11] : memref<128x128xf32, #tpu.memory_space<vmem>>, vector<128x128xf32>
    %c0_12 = arith.constant 0 : index
    %c0_13 = arith.constant 0 : index
    %25 = vector.load %arg3[%c0_12, %c0_13] : memref<128x1024xf32, #tpu.memory_space<vmem>>, vector<128x1024xf32>
    %26 = arith.truncf %25 : vector<128x1024xf32> to vector<128x1024xbf16>
    %cst = arith.constant dense<0.000000e+00> : vector<128x128xf32>
    %27 = tpu.matmul %26, %20, %cst {dimension_numbers = #tpu.dot_dimension_numbers<[1], [0], [0], [1], [0, 0, 1, 1], [], []>} : vector<128x1024xbf16>, vector<1024x128xbf16>, vector<128x128xf32> -> vector<128x128xf32>
    %28 = arith.addf %24, %27 : vector<128x128xf32>
    %c0_14 = arith.constant 0 : index
    %c0_15 = arith.constant 0 : index
    %29 = vector.load %arg9[%c0_14, %c0_15] : memref<128x128xf32, #tpu.memory_space<vmem>>, vector<128x128xf32>
    tpu.vector_store %arg9[%c0_14, %c0_15], %28 {strides = array<i32>} : memref<128x128xf32, #tpu.memory_space<vmem>>, vector<128x128xf32>,
    %c0_i32_16 = arith.constant 0 : i32
    %30 = arith.cmpi eq, %arg1, %c0_i32_16 : i32
    %31 = arith.extui %30 : i1 to i32
    %c0_i32_17 = arith.constant 0 : i32
    %32 = arith.cmpi ne, %31, %c0_i32_17 : i32
    scf.if %32 {
      %c0_18 = arith.constant 0 : index
      %c0_19 = arith.constant 0 : index
      %33 = vector.load %arg5[%c0_18, %c0_19] : memref<3x128xf32, #tpu.memory_space<vmem>>, vector<1x128xf32>
      %34 = vector.shape_cast %33 : vector<1x128xf32> to vector<128xf32>
      %35 = vector.broadcast %0 : f32 to vector<128xf32>
      %36 = arith.mulf %35, %34 : vector<128xf32>
      %c0_20 = arith.constant 0 : index
      %c0_21 = arith.constant 0 : index
      %37 = vector.load %arg7[%c0_20, %c0_21] : memref<3x128xf32, #tpu.memory_space<vmem>>, vector<1x128xf32>
      %38 = vector.shape_cast %37 : vector<1x128xf32> to vector<128xf32>
      %39 = vector.broadcast %0 : f32 to vector<128xf32>
      %40 = arith.mulf %39, %38 : vector<128xf32>
      %c0_22 = arith.constant 0 : index
      %c0_23 = arith.constant 0 : index
      %c0_24 = arith.constant 0 : index
      %41 = vector.load %arg6[%c0_22, %c0_23, %c0_24] : memref<3x128x128xbf16, #tpu.memory_space<vmem>>, vector<1x128x128xbf16>
      %42 = vector.shape_cast %41 : vector<1x128x128xbf16> to vector<128x128xbf16>
      %43 = arith.extf %42 : vector<128x128xbf16> to vector<128x128xf32>
      %44 = vector.broadcast %0 : f32 to vector<128x128xf32>
      %45 = arith.mulf %44, %43 : vector<128x128xf32>
      %c1_25 = arith.constant 1 : index
      %c0_26 = arith.constant 0 : index
      %46 = vector.load %arg5[%c1_25, %c0_26] : memref<3x128xf32, #tpu.memory_space<vmem>>, vector<1x128xf32>
      %47 = vector.shape_cast %46 : vector<1x128xf32> to vector<128xf32>
      %48 = vector.broadcast %1 : f32 to vector<128xf32>
      %49 = arith.mulf %48, %47 : vector<128xf32>
      %50 = arith.addf %36, %49 : vector<128xf32>
      %c1_27 = arith.constant 1 : index
      %c0_28 = arith.constant 0 : index
      %51 = vector.load %arg7[%c1_27, %c0_28] : memref<3x128xf32, #tpu.memory_space<vmem>>, vector<1x128xf32>
      %52 = vector.shape_cast %51 : vector<1x128xf32> to vector<128xf32>
      %53 = vector.broadcast %1 : f32 to vector<128xf32>
      %54 = arith.mulf %53, %52 : vector<128xf32>
      %55 = arith.addf %40, %54 : vector<128xf32>
      %c1_29 = arith.constant 1 : index
      %c0_30 = arith.constant 0 : index
      %c0_31 = arith.constant 0 : index
      %56 = vector.load %arg6[%c1_29, %c0_30, %c0_31] : memref<3x128x128xbf16, #tpu.memory_space<vmem>>, vector<1x128x128xbf16>
      %57 = vector.shape_cast %56 : vector<1x128x128xbf16> to vector<128x128xbf16>
      %58 = arith.extf %57 : vector<128x128xbf16> to vector<128x128xf32>
      %59 = vector.broadcast %1 : f32 to vector<128x128xf32>
      %60 = arith.mulf %59, %58 : vector<128x128xf32>
      %61 = arith.addf %45, %60 : vector<128x128xf32>
      %c2_32 = arith.constant 2 : index
      %c0_33 = arith.constant 0 : index
      %62 = vector.load %arg5[%c2_32, %c0_33] : memref<3x128xf32, #tpu.memory_space<vmem>>, vector<1x128xf32>
      %63 = vector.shape_cast %62 : vector<1x128xf32> to vector<128xf32>
      %64 = vector.broadcast %2 : f32 to vector<128xf32>
      %65 = arith.mulf %64, %63 : vector<128xf32>
      %66 = arith.addf %50, %65 : vector<128xf32>
      %c2_34 = arith.constant 2 : index
      %c0_35 = arith.constant 0 : index
      %67 = vector.load %arg7[%c2_34, %c0_35] : memref<3x128xf32, #tpu.memory_space<vmem>>, vector<1x128xf32>
      %68 = vector.shape_cast %67 : vector<1x128xf32> to vector<128xf32>
      %69 = vector.broadcast %2 : f32 to vector<128xf32>
      %70 = arith.mulf %69, %68 : vector<128xf32>
      %71 = arith.addf %55, %70 : vector<128xf32>
      %c2_36 = arith.constant 2 : index
      %c0_37 = arith.constant 0 : index
      %c0_38 = arith.constant 0 : index
      %72 = vector.load %arg6[%c2_36, %c0_37, %c0_38] : memref<3x128x128xbf16, #tpu.memory_space<vmem>>, vector<1x128x128xbf16>
      %73 = vector.shape_cast %72 : vector<1x128x128xbf16> to vector<128x128xbf16>
      %74 = arith.extf %73 : vector<128x128xbf16> to vector<128x128xf32>
      %75 = vector.broadcast %2 : f32 to vector<128x128xf32>
      %76 = arith.mulf %75, %74 : vector<128x128xf32>
      %77 = arith.addf %61, %76 : vector<128x128xf32>
      %c0_39 = arith.constant 0 : index
      %c0_40 = arith.constant 0 : index
      %78 = vector.load %arg9[%c0_39, %c0_40] : memref<128x128xf32, #tpu.memory_space<vmem>>, vector<128x128xf32>
      %79 = vector.shape_cast %66 : vector<128xf32> to vector<1x128xf32>
      %80 = vector.broadcast %79 : vector<1x128xf32> to vector<128x128xf32>
      %81 = arith.addf %78, %80 : vector<128x128xf32>
      %cst_41 = arith.constant 0.000000e+00 : f32
      %82 = vector.broadcast %cst_41 : f32 to vector<128x128xf32>
      %83 = arith.maximumf %81, %82 : vector<128x128xf32>
      %84 = arith.truncf %83 : vector<128x128xf32> to vector<128x128xbf16>
      %85 = arith.truncf %77 : vector<128x128xf32> to vector<128x128xbf16>
      %cst_42 = arith.constant dense<0.000000e+00> : vector<128x128xf32>
      %86 = tpu.matmul %84, %85, %cst_42 {dimension_numbers = #tpu.dot_dimension_numbers<[1], [0], [0], [1], [0, 0, 1, 1], [], []>} : vector<128x128xbf16>, vector<128x128xbf16>, vector<128x128xf32> -> vector<128x128xf32>
      %87 = vector.shape_cast %71 : vector<128xf32> to vector<1x128xf32>
      %88 = vector.broadcast %87 : vector<1x128xf32> to vector<128x128xf32>
      %89 = arith.addf %86, %88 : vector<128x128xf32>
      %c0_43 = arith.constant 0 : index
      %c0_44 = arith.constant 0 : index
      %90 = vector.load %arg8[%c0_43, %c0_44] : memref<128x128xf32, #tpu.memory_space<vmem>>, vector<128x128xf32>
      tpu.vector_store %arg8[%c0_43, %c0_44], %89 {strides = array<i32>} : memref<128x128xf32, #tpu.memory_space<vmem>>, vector<128x128xf32>,
    } else {
    }
    return
  }
  func.func @transform_0(%arg0: i32, %arg1: i32) -> i32 {
    %c0_i32 = arith.constant 0 : i32
    %c0_i32_0 = arith.constant 0 : i32
    return %c0_i32 : i32
  }
  func.func @transform_1(%arg0: i32, %arg1: i32) -> (i32, i32) {
    %c0_i32 = arith.constant 0 : i32
    return %arg0, %arg1 : i32, i32
  }
  func.func @transform_2(%arg0: i32, %arg1: i32) -> (i32, i32, i32) {
    %c0_i32 = arith.constant 0 : i32
    %c0_i32_0 = arith.constant 0 : i32
    %c0_i32_1 = arith.constant 0 : i32
    %c0_i32_2 = arith.constant 0 : i32
    return %c0_i32, %c0_i32_0, %c0_i32_1 : i32, i32, i32
  }
  func.func @transform_3(%arg0: i32, %arg1: i32) -> (i32, i32) {
    %c0_i32 = arith.constant 0 : i32
    %c0_i32_0 = arith.constant 0 : i32
    %c0_i32_1 = arith.constant 0 : i32
    return %c0_i32, %c0_i32_0 : i32, i32
  }
  func.func @transform_4(%arg0: i32, %arg1: i32) -> (i32, i32, i32) {
    %c0_i32 = arith.constant 0 : i32
    %c0_i32_0 = arith.constant 0 : i32
    %c0_i32_1 = arith.constant 0 : i32
    %c0_i32_2 = arith.constant 0 : i32
    return %c0_i32, %c0_i32_0, %c0_i32_1 : i32, i32, i32
  }
  func.func @transform_5(%arg0: i32, %arg1: i32) -> (i32, i32) {
    %c0_i32 = arith.constant 0 : i32
    %c0_i32_0 = arith.constant 0 : i32
    %c0_i32_1 = arith.constant 0 : i32
    return %c0_i32, %c0_i32_0 : i32, i32
  }
  func.func @transform_6(%arg0: i32, %arg1: i32) -> (i32, i32) {
    %c0_i32 = arith.constant 0 : i32
    %c0_i32_0 = arith.constant 0 : i32
    return %arg0, %c0_i32 : i32, i32
  }
}

</mosaic_0001>

<llo_original>
// kernel: curvenet_forward.1
$region0: #{curvenet_forward.1}
  #allocation0 [shape = 'u32[]', space=smem, size = 0x4, offset = 0x4, fixed_abs, tag = 'smem constant byte address 0x4 - core index']
  #allocation1 [shape = 'u32[144,128]{1,0:T(1,128)}', space=vmem, size = 0x12000, scoped, tag = 'internal scratch']
  #allocation2 [shape = 'f32[128,128]{1,0:T(8,128)}', space=vmem, size = 0x10000, scoped, tag = 'scratch operand']
  %s0 = inlined_call_operand.vmem [shape: f32[3], index: 0, kind: input, shape index: {}]
  %s1 = inlined_call_operand.vmem [shape: f32[256,1024], index: 1, kind: input, shape index: {}]
  %s2 = inlined_call_operand.vmem [shape: bf16[3,1024,128], index: 2, kind: input, shape index: {}]
  %s3 = inlined_call_operand.vmem [shape: f32[3,128], index: 3, kind: input, shape index: {}]
  %s4 = inlined_call_operand.vmem [shape: bf16[3,128,128], index: 4, kind: input, shape index: {}]
  %s5 = inlined_call_operand.vmem [shape: f32[3,128], index: 5, kind: input, shape index: {}]
  %s6 = inlined_call_operand.vmem [shape: f32[256,128], index: 6, kind: output, shape index: {}]
  %s7 = sld [smem:[#allocation0]]
  $region69: #{curvenet_forward.1} parent=0
    _
  %s9 = ssub.s32 1, %s7
  %s10 = scalar_select 0, %s9, %s7
  $region1: #{curvenet_forward.1} parent=0
    #allocation3 [shape = 'u8[512]{0}', space=smem, size = 0x200, scoped, tag = 'input window, operand 0, single buffered']
    #allocation4 [shape = 's32[2]{0}', space=sflag, size = 0x8, scoped, tag = 'scoped memory for curvenet_forward.1']
    %11 = vsyncpa [#allocation4], 0
    loop: start=0, step=1, limit=4
    $region2: #{curvenet_forward.1} parent=1 // loop_pre_header
      _
    $region3: #{curvenet_forward.1} parent=1 // loop_header
      %s13 = sphi 0, %s17
      %p14 = scmp.ge.s32.totalorder %s13, 4
      %s20 = sphi 0, %s32
      %s21 = sphi 0, %s28
      %s22 = sphi 0, %s20
      %s23 = sphi 0, %s21
      %s24 = sphi 0, %s22
      %s25 = sphi 0, %s23
      %s33 = sphi 0, %s33
      %s35 = sphi 0, %s33
      %s36 = sphi 0, %s35
      %s50 = sphi 0, %s36
      %s58 = sphi 0, %s60
      %s61 = sphi 0, %s58
      %s62 = sphi 0, %s61
      %s78 = sphi 0, %s62
      %s82 = sphi 0, %s82
      %s84 = sphi 0, %s82
      %s85 = sphi 0, %s84
      %s99 = sphi 0, %s85
      %s103 = sphi 0, %s103
      %s105 = sphi 0, %s103
      %s106 = sphi 0, %s105
      %s120 = sphi 0, %s106
      %s124 = sphi 0, %s124
      %s126 = sphi 0, %s124
      %s127 = sphi 0, %s126
      %s141 = sphi 0, %s127
      %s145 = sphi 0, %s145
      %s147 = sphi 0, %s145
      %s148 = sphi 0, %s147
      %s162 = sphi 0, %s148
      %s168 = sphi 0, %s170
      %s171 = sphi 0, %s168
      %s172 = sphi 0, %s171
      %s188 = sphi 0, %s172
    $region4: #{curvenet_forward.1} parent=1 // loop_header_branch
      %16 = sbr.rel (%p14) target = $region8
    $region5: #{curvenet_forward.1} parent=1 // loop_body
      %s18 = ssub.s32 %s13, 1
      %s19 = ssub.s32 %s13, 2
      %s26 = sadd.s32 1, %s21
      %p27 = scmp.ge.s32.totalorder %s26, 1
      %s28 = scalar_select %p27, 0, %s26
      %s29 = sadd.s32 1, %s20
      %s30 = scalar_select %p27, %s29, %s20
      %p31 = scmp.ge.s32.totalorder %s30, 2
      %s32 = scalar_select %p31, 0, %s30
      %s34 = sadd.s32 %s33, 1
      %p37 = scmp.eq.s32.totalorder %s13, 1
      %p38 = scmp.ne.s32.totalorder %s33, %s35
      %p39 = scmp.eq.s32.totalorder %s13, 0
      %p40 = por %p38, %p39
      %p41 = scmp.ne.s32.totalorder %s33, %s35
      %p42 = scmp.eq.s32.totalorder %s18, 1
      %p43 = por %p41, %p42
      %p44 = scmp.ne.s32.totalorder %s35, %s36
      %p45 = scmp.eq.s32.totalorder %s18, 0
      %p46 = por %p44, %p45
      %p47 = scmp.ne.s32.totalorder %s35, %s36
      %p48 = scmp.eq.s32.totalorder %s19, 1
      %p49 = por %p47, %p48
      %p51 = scmp.ne.s32.totalorder %s36, %s50
      %p52 = scmp.eq.s32.totalorder %s19, 0
      %p53 = por %p51, %p52
      %s54 = ssub.s32 %s20, %s32
      %s55 = ssub.s32 %s21, %s28
      %s56 = sor.u32 %s54, %s55
      %p57 = scmp.eq.s32.totalorder %s56, 0
      %s59 = sadd.s32 %s58, 1
      %s60 = scalar_select %p57, %s58, %s59
      %p63 = pneg %p57
      %p64 = scmp.eq.s32.totalorder %s13, 1
      %p65 = por %p63, %p64
      %p66 = scmp.ne.s32.totalorder %s58, %s61
      %p67 = scmp.eq.s32.totalorder %s13, 0
      %p68 = por %p66, %p67
      %p69 = scmp.ne.s32.totalorder %s58, %s61
      %p70 = scmp.eq.s32.totalorder %s18, 1
      %p71 = por %p69, %p70
      %p72 = scmp.ne.s32.totalorder %s61, %s62
      %p73 = scmp.eq.s32.totalorder %s18, 0
      %p74 = por %p72, %p73
      %p75 = scmp.ne.s32.totalorder %s61, %s62
      %p76 = scmp.eq.s32.totalorder %s19, 1
      %p77 = por %p75, %p76
      %p79 = scmp.ne.s32.totalorder %s62, %s78
      %p80 = scmp.eq.s32.totalorder %s19, 0
      %p81 = por %p79, %p80
      %s83 = sadd.s32 %s82, 1
      %p86 = scmp.eq.s32.totalorder %s13, 1
      %p87 = scmp.ne.s32.totalorder %s82, %s84
      %p88 = scmp.eq.s32.totalorder %s13, 0
      %p89 = por %p87, %p88
      %p90 = scmp.ne.s32.totalorder %s82, %s84
      %p91 = scmp.eq.s32.totalorder %s18, 1
      %p92 = por %p90, %p91
      %p93 = scmp.ne.s32.totalorder %s84, %s85
      %p94 = scmp.eq.s32.totalorder %s18, 0
      %p95 = por %p93, %p94
      %p96 = scmp.ne.s32.totalorder %s84, %s85
      %p97 = scmp.eq.s32.totalorder %s19, 1
      %p98 = por %p96, %p97
      %p100 = scmp.ne.s32.totalorder %s85, %s99
      %p101 = scmp.eq.s32.totalorder %s19, 0
      %p102 = por %p100, %p101
      %s104 = sadd.s32 %s103, 1
      %p107 = scmp.eq.s32.totalorder %s13, 1
      %p108 = scmp.ne.s32.totalorder %s103, %s105
      %p109 = scmp.eq.s32.totalorder %s13, 0
      %p110 = por %p108, %p109
      %p111 = scmp.ne.s32.totalorder %s103, %s105
      %p112 = scmp.eq.s32.totalorder %s18, 1
      %p113 = por %p111, %p112
      %p114 = scmp.ne.s32.totalorder %s105, %s106
      %p115 = scmp.eq.s32.totalorder %s18, 0
      %p116 = por %p114, %p115
      %p117 = scmp.ne.s32.totalorder %s105, %s106
      %p118 = scmp.eq.s32.totalorder %s19, 1
      %p119 = por %p117, %p118
      %p121 = scmp.ne.s32.totalorder %s106, %s120
      %p122 = scmp.eq.s32.totalorder %s19, 0
      %p123 = por %p121, %p122
      %s125 = sadd.s32 %s124, 1
      %p128 = scmp.eq.s32.totalorder %s13, 1
      %p129 = scmp.ne.s32.totalorder %s124, %s126
      %p130 = scmp.eq.s32.totalorder %s13, 0
      %p131 = por %p129, %p130
      %p132 = scmp.ne.s32.totalorder %s124, %s126
      %p133 = scmp.eq.s32.totalorder %s18, 1
      %p134 = por %p132, %p133
      %p135 = scmp.ne.s32.totalorder %s126, %s127
      %p136 = scmp.eq.s32.totalorder %s18, 0
      %p137 = por %p135, %p136
      %p138 = scmp.ne.s32.totalorder %s126, %s127
      %p139 = scmp.eq.s32.totalorder %s19, 1
      %p140 = por %p138, %p139
      %p142 = scmp.ne.s32.totalorder %s127, %s141
      %p143 = scmp.eq.s32.totalorder %s19, 0
      %p144 = por %p142, %p143
      %s146 = sadd.s32 %s145, 1
      %p149 = scmp.eq.s32.totalorder %s13, 1
      %p150 = scmp.ne.s32.totalorder %s145, %s147
      %p151 = scmp.eq.s32.totalorder %s13, 0
      %p152 = por %p150, %p151
      %p153 = scmp.ne.s32.totalorder %s145, %s147
      %p154 = scmp.eq.s32.totalorder %s18, 1
      %p155 = por %p153, %p154
      %p156 = scmp.ne.s32.totalorder %s147, %s148
      %p157 = scmp.eq.s32.totalorder %s18, 0
      %p158 = por %p156, %p157
      %p159 = scmp.ne.s32.totalorder %s147, %s148
      %p160 = scmp.eq.s32.totalorder %s19, 1
      %p161 = por %p159, %p160
      %p163 = scmp.ne.s32.totalorder %s148, %s162
      %p164 = scmp.eq.s32.totalorder %s19, 0
      %p165 = por %p163, %p164
      %s166 = ssub.s32 %s20, %s32
      %p167 = scmp.eq.s32.totalorder %s166, 0
      %s169 = sadd.s32 %s168, 1
      %s170 = scalar_select %p167, %s168, %s169
      %p173 = pneg %p167
      %p174 = scmp.eq.s32.totalorder %s13, 1
      %p175 = por %p173, %p174
      %p176 = scmp.ne.s32.totalorder %s168, %s171
      %p177 = scmp.eq.s32.totalorder %s13, 0
      %p178 = por %p176, %p177
      %p179 = scmp.ne.s32.totalorder %s168, %s171
      %p180 = scmp.eq.s32.totalorder %s18, 1
      %p181 = por %p179, %p180
      %p182 = scmp.ne.s32.totalorder %s171, %s172
      %p183 = scmp.eq.s32.totalorder %s18, 0
      %p184 = por %p182, %p183
      %p185 = scmp.ne.s32.totalorder %s171, %s172
      %p186 = scmp.eq.s32.totalorder %s19, 1
      %p187 = por %p185, %p186
      %p189 = scmp.ne.s32.totalorder %s172, %s188
      %p190 = scmp.eq.s32.totalorder %s19, 0
      %p191 = por %p189, %p190
      %p192 = scmp.le.s32.totalorder 1, %s13
      %p193 = scmp.lt.s32.totalorder %s13, 3
      %p194 = pnand %p192, %p193
      %p195 = pneg %p194
      // Predicated region
      $region9: #{curvenet_forward.1} parent=5 // pred_check
        _
      $region10: #{curvenet_forward.1} parent=5 // pred_check_branch
        %197 = sbr.rel (%p194) target = $region12
      $region11: #{curvenet_forward.1} parent=5 // pred_region
        %s198 = ssub.s32 %s13, 1
        // Predicated region
        $region13: #{curvenet_forward.1} parent=11 // pred_check
          %p199 = pneg %p46
        $region14: #{curvenet_forward.1} parent=11 // pred_check_branch
          %201 = sbr.rel (%p199) target = $region16
        $region15: #{curvenet_forward.1} parent=11 // pred_region
          %s203 = ssub.s32 16, 16
          %204 = vsyncadd [#allocation4], %s203
          %s206 = sshll.u32 %s0, 4
          %s207 = int_to_ptr.vmem [resolvable:$true] %s206
          %209 = dma.vmem_to_smem %s207, 16, [#allocation3], [#allocation4]
        $region16: #{curvenet_forward.1} parent=11 // pred_fallthru
          _
        // Predicated region
        $region17: #{curvenet_forward.1} parent=11 // pred_check
          %p210 = pneg %p95
        $region18: #{curvenet_forward.1} parent=11 // pred_check_branch
          %212 = sbr.rel (%p210) target = $region20
        $region19: #{curvenet_forward.1} parent=11 // pred_region
          _
        $region20: #{curvenet_forward.1} parent=11 // pred_fallthru
          _
        // Predicated region
        $region21: #{curvenet_forward.1} parent=11 // pred_check
          %p213 = pneg %p116
        $region22: #{curvenet_forward.1} parent=11 // pred_check_branch
          %215 = sbr.rel (%p213) target = $region24
        $region23: #{curvenet_forward.1} parent=11 // pred_region
          _
        $region24: #{curvenet_forward.1} parent=11 // pred_fallthru
          _
        // Predicated region
        $region25: #{curvenet_forward.1} parent=11 // pred_check
          %p216 = pneg %p137
        $region26: #{curvenet_forward.1} parent=11 // pred_check_branch
          %218 = sbr.rel (%p216) target = $region28
        $region27: #{curvenet_forward.1} parent=11 // pred_region
          _
        $region28: #{curvenet_forward.1} parent=11 // pred_fallthru
          _
        // Predicated region
        $region29: #{curvenet_forward.1} parent=11 // pred_check
          %p219 = pneg %p158
        $region30: #{curvenet_forward.1} parent=11 // pred_check_branch
          %221 = sbr.rel (%p219) target = $region32
        $region31: #{curvenet_forward.1} parent=11 // pred_region
          _
        $region32: #{curvenet_forward.1} parent=11 // pred_fallthru
          _
      $region12: #{curvenet_forward.1} parent=5 // pred_fallthru
        _
      %p222 = scmp.lt.s32.totalorder %s13, 2
      // Predicated region
      $region33: #{curvenet_forward.1} parent=5 // pred_check
        %p223 = pneg %p222
      $region34: #{curvenet_forward.1} parent=5 // pred_check_branch
        %225 = sbr.rel (%p223) target = $region36
      $region35: #{curvenet_forward.1} parent=5 // pred_region
        // Predicated region
        $region37: #{curvenet_forward.1} parent=35 // pred_check
          %p226 = pneg %p68
        $region38: #{curvenet_forward.1} parent=35 // pred_check_branch
          %228 = sbr.rel (%p226) target = $region40
        $region39: #{curvenet_forward.1} parent=35 // pred_region
          %s229 = smul.u32 16, %s20
          %s230 = smul.u32 8, %s21
          %p231 = scmp.lt.s32.totalorder %s229, 31
          %s232 = scalar_select %p231, %s229, 31
          %p233 = scmp.lt.s32.totalorder %s230, 7
          %s234 = scalar_select %p233, %s230, 7
          %s235 = smul.addr %s232, 8
          %s236 = sadd.s32 %s234, %s235
          %s237 = smul.addr %s236, 8
          %s238 = scalar_lea.vmem %s1, %s237
          %s239 = smul.u32 16, %s20
          %s240 = smul.u32 8, %s21
        $region40: #{curvenet_forward.1} parent=35 // pred_fallthru
          _
      $region36: #{curvenet_forward.1} parent=5 // pred_fallthru
        _
      %p241 = scmp.le.s32.totalorder 1, %s13
      %p242 = scmp.lt.s32.totalorder %s13, 3
      %p243 = pnand %p241, %p242
      %p244 = pneg %p243
      // Predicated region
      $region41: #{curvenet_forward.1} parent=5 // pred_check
        _
      $region42: #{curvenet_forward.1} parent=5 // pred_check_branch
        %246 = sbr.rel (%p243) target = $region44
      $region43: #{curvenet_forward.1} parent=5 // pred_region
        %s247 = ssub.s32 %s13, 1
        // Predicated region
        $region45: #{curvenet_forward.1} parent=43 // pred_check
          %p248 = pneg %p46
        $region46: #{curvenet_forward.1} parent=43 // pred_check_branch
          %250 = sbr.rel (%p248) target = $region48
        $region47: #{curvenet_forward.1} parent=43 // pred_region
          %251 = dma.done [#allocation4], 16
        $region48: #{curvenet_forward.1} parent=43 // pred_fallthru
          _
        %252 = sfence
        %p253 = pneg %p46
        %p254 = pneg %p43
        %s255 = smul.u32 16, %s22
        %s256 = smul.u32 8, %s23
        %p257 = scmp.lt.s32.totalorder %s255, 31
        %s258 = scalar_select %p257, %s255, 31
        %p259 = scmp.lt.s32.totalorder %s256, 7
        %s260 = scalar_select %p259, %s256, 7
        %s261 = smul.addr %s258, 8
        %s262 = sadd.s32 %s260, %s261
        %s263 = smul.addr %s262, 8
        %s264 = scalar_lea.vmem %s1, %s263
        %p265 = pneg %p74
        %p266 = pneg %p71
        %p267 = pneg %p95
        %p268 = pneg %p92
        %p269 = pneg %p116
        %p270 = pneg %p113
        %p271 = pneg %p137
        %p272 = pneg %p134
        %p273 = pneg %p158
        %p274 = pneg %p155
        %p275 = pneg %p184
        %p276 = pneg %p181
        %s277 = smul.u32 16, %s22
        %p278 = scmp.lt.s32.totalorder %s277, 31
        %s279 = scalar_select %p278, %s277, 31
        %s280 = smul.addr %s279, 8
        %s281 = scalar_lea.vmem %s6, %s280
        %s282 = smul.u32 16, %s22
        %s283 = smul.u32 8, %s23
        %p284 = scmp.lt.s32.totalorder %s282, 31
        %s285 = scalar_select %p284, %s282, 31
        %p286 = scmp.lt.s32.totalorder %s283, 7
        %s287 = scalar_select %p286, %s283, 7
        %s288 = smul.addr %s285, 8
        %s289 = sadd.s32 %s287, %s288
        %s290 = smul.addr %s289, 8
        %s291 = scalar_lea.vmem %s1, %s290
        %s292 = smul.u32 16, %s22
        %s293 = smul.u32 8, %s23
        %s294 = smul.u32 16, %s22
        %p295 = scmp.lt.s32.totalorder %s294, 31
        %s296 = scalar_select %p295, %s294, 31
        %s297 = smul.addr %s296, 8
        %s298 = scalar_lea.vmem %s6, %s297
        %s299 = smul.u32 16, %s22
        %s301 = sld [smem:[#allocation3]]
        %s302 = sld [smem:[#allocation3 + $0x1]]
        %s303 = sld [smem:[#allocation3 + $0x2]]
        %v304 = vld [vmem:[%s2] sm:$0xf]
        %v305 = vld [vmem:[%s2 + $0x4] sm:$0xf]
        %v306 = vld [vmem:[%s2 + $0x8] sm:$0xf]
        %v307 = vld [vmem:[%s2 + $0xc] sm:$0xf]
        %v308 = vld [vmem:[%s2 + $0x10] sm:$0xf]
        %v309 = vld [vmem:[%s2 + $0x14] sm:$0xf]
        %v310 = vld [vmem:[%s2 + $0x18] sm:$0xf]
        %v311 = vld [vmem:[%s2 + $0x1c] sm:$0xf]
        %v312 = vld [vmem:[%s2 + $0x20] sm:$0xf]
        %v313 = vld [vmem:[%s2 + $0x24] sm:$0xf]
        %v314 = vld [vmem:[%s2 + $0x28] sm:$0xf]
        %v315 = vld [vmem:[%s2 + $0x2c] sm:$0xf]
        %v316 = vld [vmem:[%s2 + $0x30] sm:$0xf]
        %v317 = vld [vmem:[%s2 + $0x34] sm:$0xf]
        %v318 = vld [vmem:[%s2 + $0x38] sm:$0xf]
        %v319 = vld [vmem:[%s2 + $0x3c] sm:$0xf]
        %v320 = vld [vmem:[%s2 + $0x40] sm:$0xf]
        %v321 = vld [vmem:[%s2 + $0x44] sm:$0xf]
        %v322 = vld [vmem:[%s2 + $0x48] sm:$0xf]
        %v323 = vld [vmem:[%s2 + $0x4c] sm:$0xf]
        %v324 = vld [vmem:[%s2 + $0x50] sm:$0xf]
        %v325 = vld [vmem:[%s2 + $0x54] sm:$0xf]
        %v326 = vld [vmem:[%s2 + $0x58] sm:$0xf]
        %v327 = vld [vmem:[%s2 + $0x5c] sm:$0xf]
        %v328 = vld [vmem:[%s2 + $0x60] sm:$0xf]
        %v329 = vld [vmem:[%s2 + $0x64] sm:$0xf]
        %v330 = vld [vmem:[%s2 + $0x68] sm:$0xf]
        %v331 = vld [vmem:[%s2 + $0x6c] sm:$0xf]
        %v332 = vld [vmem:[%s2 + $0x70] sm:$0xf]
        %v333 = vld [vmem:[%s2 + $0x74] sm:$0xf]
        %v334 = vld [vmem:[%s2 + $0x78] sm:$0xf]
        %v335 = vld [vmem:[%s2 + $0x7c] sm:$0xf]
        %v336 = vld [vmem:[%s2 + $0x80] sm:$0xf]
        %v337 = vld [vmem:[%s2 + $0x84] sm:$0xf]
        %v338 = vld [vmem:[%s2 + $0x88] sm:$0xf]
        %v339 = vld [vmem:[%s2 + $0x8c] sm:$0xf]
        %v340 = vld [vmem:[%s2 + $0x90] sm:$0xf]
        %v341 = vld [vmem:[%s2 + $0x94] sm:$0xf]
        %v342 = vld [vmem:[%s2 + $0x98] sm:$0xf]
        %v343 = vld [vmem:[%s2 + $0x9c] sm:$0xf]
        %v344 = vld [vmem:[%s2 + $0xa0] sm:$0xf]
        %v345 = vld [vmem:[%s2 + $0xa4] sm:$0xf]
        %v346 = vld [vmem:[%s2 + $0xa8] sm:$0xf]
        %v347 = vld [vmem:[%s2 + $0xac] sm:$0xf]
        %v348 = vld [vmem:[%s2 + $0xb0] sm:$0xf]
        %v349 = vld [vmem:[%s2 + $0xb4] sm:$0xf]
        %v350 = vld [vmem:[%s2 + $0xb8] sm:$0xf]
        %v351 = vld [vmem:[%s2 + $0xbc] sm:$0xf]
        %v352 = vld [vmem:[%s2 + $0xc0] sm:$0xf]
        %v353 = vld [vmem:[%s2 + $0xc4] sm:$0xf]
        %v354 = vld [vmem:[%s2 + $0xc8] sm:$0xf]
        %v355 = vld [vmem:[%s2 + $0xcc] sm:$0xf]
        %v356 = vld [vmem:[%s2 + $0xd0] sm:$0xf]
        %v357 = vld [vmem:[%s2 + $0xd4] sm:$0xf]
        %v358 = vld [vmem:[%s2 + $0xd8] sm:$0xf]
        %v359 = vld [vmem:[%s2 + $0xdc] sm:$0xf]
        %v360 = vld [vmem:[%s2 + $0xe0] sm:$0xf]
        %v361 = vld [vmem:[%s2 + $0xe4] sm:$0xf]
        %v362 = vld [vmem:[%s2 + $0xe8] sm:$0xf]
        %v363 = vld [vmem:[%s2 + $0xec] sm:$0xf]
        %v364 = vld [vmem:[%s2 + $0xf0] sm:$0xf]
        %v365 = vld [vmem:[%s2 + $0xf4] sm:$0xf]
        %v366 = vld [vmem:[%s2 + $0xf8] sm:$0xf]
        %v367 = vld [vmem:[%s2 + $0xfc] sm:$0xf]
        %v368 = vld [vmem:[%s2 + $0x100] sm:$0xf]
        %v369 = vld [vmem:[%s2 + $0x104] sm:$0xf]
        %v370 = vld [vmem:[%s2 + $0x108] sm:$0xf]
        %v371 = vld [vmem:[%s2 + $0x10c] sm:$0xf]
        %v372 = vld [vmem:[%s2 + $0x110] sm:$0xf]
        %v373 = vld [vmem:[%s2 + $0x114] sm:$0xf]
        %v374 = vld [vmem:[%s2 + $0x118] sm:$0xf]
        %v375 = vld [vmem:[%s2 + $0x11c] sm:$0xf]
        %v376 = vld [vmem:[%s2 + $0x120] sm:$0xf]
        %v377 = vld [vmem:[%s2 + $0x124] sm:$0xf]
        %v378 = vld [vmem:[%s2 + $0x128] sm:$0xf]
        %v379 = vld [vmem:[%s2 + $0x12c] sm:$0xf]
        %v380 = vld [vmem:[%s2 + $0x130] sm:$0xf]
        %v381 = vld [vmem:[%s2 + $0x134] sm:$0xf]
        %v382 = vld [vmem:[%s2 + $0x138] sm:$0xf]
        %v383 = vld [vmem:[%s2 + $0x13c] sm:$0xf]
        %v384 = vld [vmem:[%s2 + $0x140] sm:$0xf]
        %v385 = vld [vmem:[%s2 + $0x144] sm:$0xf]
        %v386 = vld [vmem:[%s2 + $0x148] sm:$0xf]
        %v387 = vld [vmem:[%s2 + $0x14c] sm:$0xf]
        %v388 = vld [vmem:[%s2 + $0x150] sm:$0xf]
        %v389 = vld [vmem:[%s2 + $0x154] sm:$0xf]
        %v390 = vld [vmem:[%s2 + $0x158] sm:$0xf]
        %v391 = vld [vmem:[%s2 + $0x15c] sm:$0xf]
        %v392 = vld [vmem:[%s2 + $0x160] sm:$0xf]
        %v393 = vld [vmem:[%s2 + $0x164] sm:$0xf]
        %v394 = vld [vmem:[%s2 + $0x168] sm:$0xf]
        %v395 = vld [vmem:[%s2 + $0x16c] sm:$0xf]
        %v396 = vld [vmem:[%s2 + $0x170] sm:$0xf]
        %v397 = vld [vmem:[%s2 + $0x174] sm:$0xf]
        %v398 = vld [vmem:[%s2 + $0x178] sm:$0xf]
        %v399 = vld [vmem:[%s2 + $0x17c] sm:$0xf]
        %v400 = vld [vmem:[%s2 + $0x180] sm:$0xf]
        %v401 = vld [vmem:[%s2 + $0x184] sm:$0xf]
        %v402 = vld [vmem:[%s2 + $0x188] sm:$0xf]
        %v403 = vld [vmem:[%s2 + $0x18c] sm:$0xf]
        %v404 = vld [vmem:[%s2 + $0x190] sm:$0xf]
        %v405 = vld [vmem:[%s2 + $0x194] sm:$0xf]
        %v406 = vld [vmem:[%s2 + $0x198] sm:$0xf]
        %v407 = vld [vmem:[%s2 + $0x19c] sm:$0xf]
        %v408 = vld [vmem:[%s2 + $0x1a0] sm:$0xf]
        %v409 = vld [vmem:[%s2 + $0x1a4] sm:$0xf]
        %v410 = vld [vmem:[%s2 + $0x1a8] sm:$0xf]
        %v411 = vld [vmem:[%s2 + $0x1ac] sm:$0xf]
        %v412 = vld [vmem:[%s2 + $0x1b0] sm:$0xf]
        %v413 = vld [vmem:[%s2 + $0x1b4] sm:$0xf]
        %v414 = vld [vmem:[%s2 + $0x1b8] sm:$0xf]
        %v415 = vld [vmem:[%s2 + $0x1bc] sm:$0xf]
        %v416 = vld [vmem:[%s2 + $0x1c0] sm:$0xf]
        %v417 = vld [vmem:[%s2 + $0x1c4] sm:$0xf]
        %v418 = vld [vmem:[%s2 + $0x1c8] sm:$0xf]
        %v419 = vld [vmem:[%s2 + $0x1cc] sm:$0xf]
        %v420 = vld [vmem:[%s2 + $0x1d0] sm:$0xf]
        %v421 = vld [vmem:[%s2 + $0x1d4] sm:$0xf]
        %v422 = vld [vmem:[%s2 + $0x1d8] sm:$0xf]
        %v423 = vld [vmem:[%s2 + $0x1dc] sm:$0xf]
        %v424 = vld [vmem:[%s2 + $0x1e0] sm:$0xf]
        %v425 = vld [vmem:[%s2 + $0x1e4] sm:$0xf]
        %v426 = vld [vmem:[%s2 + $0x1e8] sm:$0xf]
        %v427 = vld [vmem:[%s2 + $0x1ec] sm:$0xf]
        %v428 = vld [vmem:[%s2 + $0x1f0] sm:$0xf]
        %v429 = vld [vmem:[%s2 + $0x1f4] sm:$0xf]
        %v430 = vld [vmem:[%s2 + $0x1f8] sm:$0xf]
        %v431 = vld [vmem:[%s2 + $0x1fc] sm:$0xf]
        %v432 = vunpack.c.l.bf16 %v304
        %v433 = vunpack.c.l.bf16 %v305
        %v434 = vunpack.c.l.bf16 %v306
        %v435 = vunpack.c.l.bf16 %v307
        %v436 = vunpack.c.l.bf16 %v308
        %v437 = vunpack.c.l.bf16 %v309
        %v438 = vunpack.c.l.bf16 %v310
        %v439 = vunpack.c.l.bf16 %v311
        %v440 = vunpack.c.l.bf16 %v312
        %v441 = vunpack.c.l.bf16 %v313
        %v442 = vunpack.c.l.bf16 %v314
        %v443 = vunpack.c.l.bf16 %v315
        %v444 = vunpack.c.l.bf16 %v316
        %v445 = vunpack.c.l.bf16 %v317
        %v446 = vunpack.c.l.bf16 %v318
        %v447 = vunpack.c.l.bf16 %v319
        %v448 = vunpack.c.l.bf16 %v320
        %v449 = vunpack.c.l.bf16 %v321
        %v450 = vunpack.c.l.bf16 %v322
        %v451 = vunpack.c.l.bf16 %v323
        %v452 = vunpack.c.l.bf16 %v324
        %v453 = vunpack.c.l.bf16 %v325
        %v454 = vunpack.c.l.bf16 %v326
        %v455 = vunpack.c.l.bf16 %v327
        %v456 = vunpack.c.l.bf16 %v328
        %v457 = vunpack.c.l.bf16 %v329
        %v458 = vunpack.c.l.bf16 %v330
        %v459 = vunpack.c.l.bf16 %v331
        %v460 = vunpack.c.l.bf16 %v332
        %v461 = vunpack.c.l.bf16 %v333
        %v462 = vunpack.c.l.bf16 %v334
        %v463 = vunpack.c.l.bf16 %v335
        %v464 = vunpack.c.l.bf16 %v336
        %v465 = vunpack.c.l.bf16 %v337
        %v466 = vunpack.c.l.bf16 %v338
        %v467 = vunpack.c.l.bf16 %v339
        %v468 = vunpack.c.l.bf16 %v340
        %v469 = vunpack.c.l.bf16 %v341
        %v470 = vunpack.c.l.bf16 %v342
        %v471 = vunpack.c.l.bf16 %v343
        %v472 = vunpack.c.l.bf16 %v344
        %v473 = vunpack.c.l.bf16 %v345
        %v474 = vunpack.c.l.bf16 %v346
        %v475 = vunpack.c.l.bf16 %v347
        %v476 = vunpack.c.l.bf16 %v348
        %v477 = vunpack.c.l.bf16 %v349
        %v478 = vunpack.c.l.bf16 %v350
        %v479 = vunpack.c.l.bf16 %v351
        %v480 = vunpack.c.l.bf16 %v352
        %v481 = vunpack.c.l.bf16 %v353
        %v482 = vunpack.c.l.bf16 %v354
        %v483 = vunpack.c.l.bf16 %v355
        %v484 = vunpack.c.l.bf16 %v356
        %v485 = vunpack.c.l.bf16 %v357
        %v486 = vunpack.c.l.bf16 %v358
        %v487 = vunpack.c.l.bf16 %v359
        %v488 = vunpack.c.l.bf16 %v360
        %v489 = vunpack.c.l.bf16 %v361
        %v490 = vunpack.c.l.bf16 %v362
        %v491 = vunpack.c.l.bf16 %v363
        %v492 = vunpack.c.l.bf16 %v364
        %v493 = vunpack.c.l.bf16 %v365
        %v494 = vunpack.c.l.bf16 %v366
        %v495 = vunpack.c.l.bf16 %v367
        %v496 = vunpack.c.l.bf16 %v368
        %v497 = vunpack.c.l.bf16 %v369
        %v498 = vunpack.c.l.bf16 %v370
        %v499 = vunpack.c.l.bf16 %v371
        %v500 = vunpack.c.l.bf16 %v372
        %v501 = vunpack.c.l.bf16 %v373
        %v502 = vunpack.c.l.bf16 %v374
        %v503 = vunpack.c.l.bf16 %v375
        %v504 = vunpack.c.l.bf16 %v376
        %v505 = vunpack.c.l.bf16 %v377
        %v506 = vunpack.c.l.bf16 %v378
        %v507 = vunpack.c.l.bf16 %v379
        %v508 = vunpack.c.l.bf16 %v380
        %v509 = vunpack.c.l.bf16 %v381
        %v510 = vunpack.c.l.bf16 %v382
        %v511 = vunpack.c.l.bf16 %v383
        %v512 = vunpack.c.l.bf16 %v384
        %v513 = vunpack.c.l.bf16 %v385
        %v514 = vunpack.c.l.bf16 %v386
        %v515 = vunpack.c.l.bf16 %v387
        %v516 = vunpack.c.l.bf16 %v388
        %v517 = vunpack.c.l.bf16 %v389
        %v518 = vunpack.c.l.bf16 %v390
        %v519 = vunpack.c.l.bf16 %v391
        %v520 = vunpack.c.l.bf16 %v392
        %v521 = vunpack.c.l.bf16 %v393
        %v522 = vunpack.c.l.bf16 %v394
        %v523 = vunpack.c.l.bf16 %v395
        %v524 = vunpack.c.l.bf16 %v396
        %v525 = vunpack.c.l.bf16 %v397
        %v526 = vunpack.c.l.bf16 %v398
        %v527 = vunpack.c.l.bf16 %v399
        %v528 = vunpack.c.l.bf16 %v400
        %v529 = vunpack.c.l.bf16 %v401
        %v530 = vunpack.c.l.bf16 %v402
        %v531 = vunpack.c.l.bf16 %v403
        %v532 = vunpack.c.l.bf16 %v404
        %v533 = vunpack.c.l.bf16 %v405
        %v534 = vunpack.c.l.bf16 %v406
        %v535 = vunpack.c.l.bf16 %v407
        %v536 = vunpack.c.l.bf16 %v408
        %v537 = vunpack.c.l.bf16 %v409
        %v538 = vunpack.c.l.bf16 %v410
        %v539 = vunpack.c.l.bf16 %v411
        %v540 = vunpack.c.l.bf16 %v412
        %v541 = vunpack.c.l.bf16 %v413
        %v542 = vunpack.c.l.bf16 %v414
        %v543 = vunpack.c.l.bf16 %v415
        %v544 = vunpack.c.l.bf16 %v416
        %v545 = vunpack.c.l.bf16 %v417
        %v546 = vunpack.c.l.bf16 %v418
        %v547 = vunpack.c.l.bf16 %v419
        %v548 = vunpack.c.l.bf16 %v420
        %v549 = vunpack.c.l.bf16 %v421
        %v550 = vunpack.c.l.bf16 %v422
        %v551 = vunpack.c.l.bf16 %v423
        %v552 = vunpack.c.l.bf16 %v424
        %v553 = vunpack.c.l.bf16 %v425
        %v554 = vunpack.c.l.bf16 %v426
        %v555 = vunpack.c.l.bf16 %v427
        %v556 = vunpack.c.l.bf16 %v428
        %v557 = vunpack.c.l.bf16 %v429
        %v558 = vunpack.c.l.bf16 %v430
        %v559 = vunpack.c.l.bf16 %v431
        %v560 = vstv %s301
        %v561 = vmul.f32 %v560, %v432
        %v562 = vmul.f32 %v560, %v433
        %v563 = vmul.f32 %v560, %v434
        %v564 = vmul.f32 %v560, %v435
        %v565 = vmul.f32 %v560, %v436
        %v566 = vmul.f32 %v560, %v437
        %v567 = vmul.f32 %v560, %v438
        %v568 = vmul.f32 %v560, %v439
        %v569 = vmul.f32 %v560, %v440
        %v570 = vmul.f32 %v560, %v441
        %v571 = vmul.f32 %v560, %v442
        %v572 = vmul.f32 %v560, %v443
        %v573 = vmul.f32 %v560, %v444
        %v574 = vmul.f32 %v560, %v445
        %v575 = vmul.f32 %v560, %v446
        %v576 = vmul.f32 %v560, %v447
        %v577 = vmul.f32 %v560, %v448
        %v578 = vmul.f32 %v560, %v449
        %v579 = vmul.f32 %v560, %v450
        %v580 = vmul.f32 %v560, %v451
        %v581 = vmul.f32 %v560, %v452
        %v582 = vmul.f32 %v560, %v453
        %v583 = vmul.f32 %v560, %v454
        %v584 = vmul.f32 %v560, %v455
        %v585 = vmul.f32 %v560, %v456
        %v586 = vmul.f32 %v560, %v457
        %v587 = vmul.f32 %v560, %v458
        %v588 = vmul.f32 %v560, %v459
        %v589 = vmul.f32 %v560, %v460
        %v590 = vmul.f32 %v560, %v461
        %v591 = vmul.f32 %v560, %v462
        %v592 = vmul.f32 %v560, %v463
        %v593 = vmul.f32 %v560, %v464
        %v594 = vmul.f32 %v560, %v465
        %v595 = vmul.f32 %v560, %v466
        %v596 = vmul.f32 %v560, %v467
        %v597 = vmul.f32 %v560, %v468
        %v598 = vmul.f32 %v560, %v469
        %v599 = vmul.f32 %v560, %v470
        %v600 = vmul.f32 %v560, %v471
        %v601 = vmul.f32 %v560, %v472
        %v602 = vmul.f32 %v560, %v473
        %v603 = vmul.f32 %v560, %v474
        %v604 = vmul.f32 %v560, %v475
        %v605 = vmul.f32 %v560, %v476
        %v606 = vmul.f32 %v560, %v477
        %v607 = vmul.f32 %v560, %v478
        %v608 = vmul.f32 %v560, %v479
        %v609 = vmul.f32 %v560, %v480
        %v610 = vmul.f32 %v560, %v481
        %v611 = vmul.f32 %v560, %v482
        %v612 = vmul.f32 %v560, %v483
        %v613 = vmul.f32 %v560, %v484
        %v614 = vmul.f32 %v560, %v485
        %v615 = vmul.f32 %v560, %v486
        %v616 = vmul.f32 %v560, %v487
        %v617 = vmul.f32 %v560, %v488
        %v618 = vmul.f32 %v560, %v489
        %v619 = vmul.f32 %v560, %v490
        %v620 = vmul.f32 %v560, %v491
        %v621 = vmul.f32 %v560, %v492
        %v622 = vmul.f32 %v560, %v493
        %v623 = vmul.f32 %v560, %v494
        %v624 = vmul.f32 %v560, %v495
        %v625 = vmul.f32 %v560, %v496
        %v626 = vmul.f32 %v560, %v497
        %v627 = vmul.f32 %v560, %v498
        %v628 = vmul.f32 %v560, %v499
        %v629 = vmul.f32 %v560, %v500
        %v630 = vmul.f32 %v560, %v501
        %v631 = vmul.f32 %v560, %v502
        %v632 = vmul.f32 %v560, %v503
        %v633 = vmul.f32 %v560, %v504
        %v634 = vmul.f32 %v560, %v505
        %v635 = vmul.f32 %v560, %v506
        %v636 = vmul.f32 %v560, %v507
        %v637 = vmul.f32 %v560, %v508
        %v638 = vmul.f32 %v560, %v509
        %v639 = vmul.f32 %v560, %v510
        %v640 = vmul.f32 %v560, %v511
        %v641 = vmul.f32 %v560, %v512
        %v642 = vmul.f32 %v560, %v513
        %v643 = vmul.f32 %v560, %v514
        %v644 = vmul.f32 %v560, %v515
        %v645 = vmul.f32 %v560, %v516
        %v646 = vmul.f32 %v560, %v517
        %v647 = vmul.f32 %v560, %v518
        %v648 = vmul.f32 %v560, %v519
        %v649 = vmul.f32 %v560, %v520
        %v650 = vmul.f32 %v560, %v521
        %v651 = vmul.f32 %v560, %v522
        %v652 = vmul.f32 %v560, %v523
        %v653 = vmul.f32 %v560, %v524
        %v654 = vmul.f32 %v560, %v525
        %v655 = vmul.f32 %v560, %v526
        %v656 = vmul.f32 %v560, %v527
        %v657 = vmul.f32 %v560, %v528
        %v658 = vmul.f32 %v560, %v529
        %v659 = vmul.f32 %v560, %v530
        %v660 = vmul.f32 %v560, %v531
        %v661 = vmul.f32 %v560, %v532
        %v662 = vmul.f32 %v560, %v533
        %v663 = vmul.f32 %v560, %v534
        %v664 = vmul.f32 %v560, %v535
        %v665 = vmul.f32 %v560, %v536
        %v666 = vmul.f32 %v560, %v537
        %v667 = vmul.f32 %v560, %v538
        %v668 = vmul.f32 %v560, %v539
        %v669 = vmul.f32 %v560, %v540
        %v670 = vmul.f32 %v560, %v541
        %v671 = vmul.f32 %v560, %v542
        %v672 = vmul.f32 %v560, %v543
        %v673 = vmul.f32 %v560, %v544
        %v674 = vmul.f32 %v560, %v545
        %v675 = vmul.f32 %v560, %v546
        %v676 = vmul.f32 %v560, %v547
        %v677 = vmul.f32 %v560, %v548
        %v678 = vmul.f32 %v560, %v549
        %v679 = vmul.f32 %v560, %v550
        %v680 = vmul.f32 %v560, %v551
        %v681 = vmul.f32 %v560, %v552
        %v682 = vmul.f32 %v560, %v553
        %v683 = vmul.f32 %v560, %v554
        %v684 = vmul.f32 %v560, %v555
        %v685 = vmul.f32 %v560, %v556
        %v686 = vmul.f32 %v560, %v557
        %v687 = vmul.f32 %v560, %v558
        %v688 = vmul.f32 %v560, %v559
        %s689 = scalar_lea.vmem %s2, 512
        %v690 = vld [vmem:[%s689] sm:$0xf]
        %v691 = vld [vmem:[%s689 + $0x4] sm:$0xf]
        %v692 = vld [vmem:[%s689 + $0x8] sm:$0xf]
        %v693 = vld [vmem:[%s689 + $0xc] sm:$0xf]
        %v694 = vld [vmem:[%s689 + $0x10] sm:$0xf]
        %v695 = vld [vmem:[%s689 + $0x14] sm:$0xf]
        %v696 = vld [vmem:[%s689 + $0x18] sm:$0xf]
        %v697 = vld [vmem:[%s689 + $0x1c] sm:$0xf]
        %v698 = vld [vmem:[%s689 + $0x20] sm:$0xf]
        %v699 = vld [vmem:[%s689 + $0x24] sm:$0xf]
        %v700 = vld [vmem:[%s689 + $0x28] sm:$0xf]
        %v701 = vld [vmem:[%s689 + $0x2c] sm:$0xf]
        %v702 = vld [vmem:[%s689 + $0x30] sm:$0xf]
        %v703 = vld [vmem:[%s689 + $0x34] sm:$0xf]
        %v704 = vld [vmem:[%s689 + $0x38] sm:$0xf]
        %v705 = vld [vmem:[%s689 + $0x3c] sm:$0xf]
        %v706 = vld [vmem:[%s689 + $0x40] sm:$0xf]
        %v707 = vld [vmem:[%s689 + $0x44] sm:$0xf]
        %v708 = vld [vmem:[%s689 + $0x48] sm:$0xf]
        %v709 = vld [vmem:[%s689 + $0x4c] sm:$0xf]
        %v710 = vld [vmem:[%s689 + $0x50] sm:$0xf]
        %v711 = vld [vmem:[%s689 + $0x54] sm:$0xf]
        %v712 = vld [vmem:[%s689 + $0x58] sm:$0xf]
        %v713 = vld [vmem:[%s689 + $0x5c] sm:$0xf]
        %v714 = vld [vmem:[%s689 + $0x60] sm:$0xf]
        %v715 = vld [vmem:[%s689 + $0x64] sm:$0xf]
        %v716 = vld [vmem:[%s689 + $0x68] sm:$0xf]
        %v717 = vld [vmem:[%s689 + $0x6c] sm:$0xf]
        %v718 = vld [vmem:[%s689 + $0x70] sm:$0xf]
        %v719 = vld [vmem:[%s689 + $0x74] sm:$0xf]
        %v720 = vld [vmem:[%s689 + $0x78] sm:$0xf]
        %v721 = vld [vmem:[%s689 + $0x7c] sm:$0xf]
        %v722 = vld [vmem:[%s689 + $0x80] sm:$0xf]
        %v723 = vld [vmem:[%s689 + $0x84] sm:$0xf]
        %v724 = vld [vmem:[%s689 + $0x88] sm:$0xf]
        %v725 = vld [vmem:[%s689 + $0x8c] sm:$0xf]
        %v726 = vld [vmem:[%s689 + $0x90] sm:$0xf]
        %v727 = vld [vmem:[%s689 + $0x94] sm:$0xf]
        %v728 = vld [vmem:[%s689 + $0x98] sm:$0xf]
        %v729 = vld [vmem:[%s689 + $0x9c] sm:$0xf]
        %v730 = vld [vmem:[%s689 + $0xa0] sm:$0xf]
        %v731 = vld [vmem:[%s689 + $0xa4] sm:$0xf]
        %v732 = vld [vmem:[%s689 + $0xa8] sm:$0xf]
        %v733 = vld [vmem:[%s689 + $0xac] sm:$0xf]
        %v734 = vld [vmem:[%s689 + $0xb0] sm:$0xf]
        %v735 = vld [vmem:[%s689 + $0xb4] sm:$0xf]
        %v736 = vld [vmem:[%s689 + $0xb8] sm:$0xf]
        %v737 = vld [vmem:[%s689 + $0xbc] sm:$0xf]
        %v738 = vld [vmem:[%s689 + $0xc0] sm:$0xf]
        %v739 = vld [vmem:[%s689 + $0xc4] sm:$0xf]
        %v740 = vld [vmem:[%s689 + $0xc8] sm:$0xf]
        %v741 = vld [vmem:[%s689 + $0xcc] sm:$0xf]
        %v742 = vld [vmem:[%s689 + $0xd0] sm:$0xf]
        %v743 = vld [vmem:[%s689 + $0xd4] sm:$0xf]
        %v744 = vld [vmem:[%s689 + $0xd8] sm:$0xf]
        %v745 = vld [vmem:[%s689 + $0xdc] sm:$0xf]
        %v746 = vld [vmem:[%s689 + $0xe0] sm:$0xf]
        %v747 = vld [vmem:[%s689 + $0xe4] sm:$0xf]
        %v748 = vld [vmem:[%s689 + $0xe8] sm:$0xf]
        %v749 = vld [vmem:[%s689 + $0xec] sm:$0xf]
        %v750 = vld [vmem:[%s689 + $0xf0] sm:$0xf]
        %v751 = vld [vmem:[%s689 + $0xf4] sm:$0xf]
        %v752 = vld [vmem:[%s689 + $0xf8] sm:$0xf]
        %v753 = vld [vmem:[%s689 + $0xfc] sm:$0xf]
        %v754 = vld [vmem:[%s689 + $0x100] sm:$0xf]
        %v755 = vld [vmem:[%s689 + $0x104] sm:$0xf]
        %v756 = vld [vmem:[%s689 + $0x108] sm:$0xf]
        %v757 = vld [vmem:[%s689 + $0x10c] sm:$0xf]
        %v758 = vld [vmem:[%s689 + $0x110] sm:$0xf]
        %v759 = vld [vmem:[%s689 + $0x114] sm:$0xf]
        %v760 = vld [vmem:[%s689 + $0x118] sm:$0xf]
        %v761 = vld [vmem:[%s689 + $0x11c] sm:$0xf]
        %v762 = vld [vmem:[%s689 + $0x120] sm:$0xf]
        %v763 = vld [vmem:[%s689 + $0x124] sm:$0xf]
        %v764 = vld [vmem:[%s689 + $0x128] sm:$0xf]
        %v765 = vld [vmem:[%s689 + $0x12c] sm:$0xf]
        %v766 = vld [vmem:[%s689 + $0x130] sm:$0xf]
        %v767 = vld [vmem:[%s689 + $0x134] sm:$0xf]
        %v768 = vld [vmem:[%s689 + $0x138] sm:$0xf]
        %v769 = vld [vmem:[%s689 + $0x13c] sm:$0xf]
        %v770 = vld [vmem:[%s689 + $0x140] sm:$0xf]
        %v771 = vld [vmem:[%s689 + $0x144] sm:$0xf]
        %v772 = vld [vmem:[%s689 + $0x148] sm:$0xf]
        %v773 = vld [vmem:[%s689 + $0x14c] sm:$0xf]
        %v774 = vld [vmem:[%s689 + $0x150] sm:$0xf]
        %v775 = vld [vmem:[%s689 + $0x154] sm:$0xf]
        %v776 = vld [vmem:[%s689 + $0x158] sm:$0xf]
        %v777 = vld [vmem:[%s689 + $0x15c] sm:$0xf]
        %v778 = vld [vmem:[%s689 + $0x160] sm:$0xf]
        %v779 = vld [vmem:[%s689 + $0x164] sm:$0xf]
        %v780 = vld [vmem:[%s689 + $0x168] sm:$0xf]
        %v781 = vld [vmem:[%s689 + $0x16c] sm:$0xf]
        %v782 = vld [vmem:[%s689 + $0x170] sm:$0xf]
        %v783 = vld [vmem:[%s689 + $0x174] sm:$0xf]
        %v784 = vld [vmem:[%s689 + $0x178] sm:$0xf]
        %v785 = vld [vmem:[%s689 + $0x17c] sm:$0xf]
        %v786 = vld [vmem:[%s689 + $0x180] sm:$0xf]
        %v787 = vld [vmem:[%s689 + $0x184] sm:$0xf]
        %v788 = vld [vmem:[%s689 + $0x188] sm:$0xf]
        %v789 = vld [vmem:[%s689 + $0x18c] sm:$0xf]
        %v790 = vld [vmem:[%s689 + $0x190] sm:$0xf]
        %v791 = vld [vmem:[%s689 + $0x194] sm:$0xf]
        %v792 = vld [vmem:[%s689 + $0x198] sm:$0xf]
        %v793 = vld [vmem:[%s689 + $0x19c] sm:$0xf]
        %v794 = vld [vmem:[%s689 + $0x1a0] sm:$0xf]
        %v795 = vld [vmem:[%s689 + $0x1a4] sm:$0xf]
        %v796 = vld [vmem:[%s689 + $0x1a8] sm:$0xf]
        %v797 = vld [vmem:[%s689 + $0x1ac] sm:$0xf]
        %v798 = vld [vmem:[%s689 + $0x1b0] sm:$0xf]
        %v799 = vld [vmem:[%s689 + $0x1b4] sm:$0xf]
        %v800 = vld [vmem:[%s689 + $0x1b8] sm:$0xf]
        %v801 = vld [vmem:[%s689 + $0x1bc] sm:$0xf]
        %v802 = vld [vmem:[%s689 + $0x1c0] sm:$0xf]
        %v803 = vld [vmem:[%s689 + $0x1c4] sm:$0xf]
        %v804 = vld [vmem:[%s689 + $0x1c8] sm:$0xf]
        %v805 = vld [vmem:[%s689 + $0x1cc] sm:$0xf]
        %v806 = vld [vmem:[%s689 + $0x1d0] sm:$0xf]
        %v807 = vld [vmem:[%s689 + $0x1d4] sm:$0xf]
        %v808 = vld [vmem:[%s689 + $0x1d8] sm:$0xf]
        %v809 = vld [vmem:[%s689 + $0x1dc] sm:$0xf]
        %v810 = vld [vmem:[%s689 + $0x1e0] sm:$0xf]
        %v811 = vld [vmem:[%s689 + $0x1e4] sm:$0xf]
        %v812 = vld [vmem:[%s689 + $0x1e8] sm:$0xf]
        %v813 = vld [vmem:[%s689 + $0x1ec] sm:$0xf]
        %v814 = vld [vmem:[%s689 + $0x1f0] sm:$0xf]
        %v815 = vld [vmem:[%s689 + $0x1f4] sm:$0xf]
        %v816 = vld [vmem:[%s689 + $0x1f8] sm:$0xf]
        %v817 = vld [vmem:[%s689 + $0x1fc] sm:$0xf]
        %v818 = vunpack.c.l.bf16 %v690
        %v819 = vunpack.c.l.bf16 %v691
        %v820 = vunpack.c.l.bf16 %v692
        %v821 = vunpack.c.l.bf16 %v693
        %v822 = vunpack.c.l.bf16 %v694
        %v823 = vunpack.c.l.bf16 %v695
        %v824 = vunpack.c.l.bf16 %v696
        %v825 = vunpack.c.l.bf16 %v697
        %v826 = vunpack.c.l.bf16 %v698
        %v827 = vunpack.c.l.bf16 %v699
        %v828 = vunpack.c.l.bf16 %v700
        %v829 = vunpack.c.l.bf16 %v701
        %v830 = vunpack.c.l.bf16 %v702
        %v831 = vunpack.c.l.bf16 %v703
        %v832 = vunpack.c.l.bf16 %v704
        %v833 = vunpack.c.l.bf16 %v705
        %v834 = vunpack.c.l.bf16 %v706
        %v835 = vunpack.c.l.bf16 %v707
        %v836 = vunpack.c.l.bf16 %v708
        %v837 = vunpack.c.l.bf16 %v709
        %v838 = vunpack.c.l.bf16 %v710
        %v839 = vunpack.c.l.bf16 %v711
        %v840 = vunpack.c.l.bf16 %v712
        %v841 = vunpack.c.l.bf16 %v713
        %v842 = vunpack.c.l.bf16 %v714
        %v843 = vunpack.c.l.bf16 %v715
        %v844 = vunpack.c.l.bf16 %v716
        %v845 = vunpack.c.l.bf16 %v717
        %v846 = vunpack.c.l.bf16 %v718
        %v847 = vunpack.c.l.bf16 %v719
        %v848 = vunpack.c.l.bf16 %v720
        %v849 = vunpack.c.l.bf16 %v721
        %v850 = vunpack.c.l.bf16 %v722
        %v851 = vunpack.c.l.bf16 %v723
        %v852 = vunpack.c.l.bf16 %v724
        %v853 = vunpack.c.l.bf16 %v725
        %v854 = vunpack.c.l.bf16 %v726
        %v855 = vunpack.c.l.bf16 %v727
        %v856 = vunpack.c.l.bf16 %v728
        %v857 = vunpack.c.l.bf16 %v729
        %v858 = vunpack.c.l.bf16 %v730
        %v859 = vunpack.c.l.bf16 %v731
        %v860 = vunpack.c.l.bf16 %v732
        %v861 = vunpack.c.l.bf16 %v733
        %v862 = vunpack.c.l.bf16 %v734
        %v863 = vunpack.c.l.bf16 %v735
        %v864 = vunpack.c.l.bf16 %v736
        %v865 = vunpack.c.l.bf16 %v737
        %v866 = vunpack.c.l.bf16 %v738
        %v867 = vunpack.c.l.bf16 %v739
        %v868 = vunpack.c.l.bf16 %v740
        %v869 = vunpack.c.l.bf16 %v741
        %v870 = vunpack.c.l.bf16 %v742
        %v871 = vunpack.c.l.bf16 %v743
        %v872 = vunpack.c.l.bf16 %v744
        %v873 = vunpack.c.l.bf16 %v745
        %v874 = vunpack.c.l.bf16 %v746
        %v875 = vunpack.c.l.bf16 %v747
        %v876 = vunpack.c.l.bf16 %v748
        %v877 = vunpack.c.l.bf16 %v749
        %v878 = vunpack.c.l.bf16 %v750
        %v879 = vunpack.c.l.bf16 %v751
        %v880 = vunpack.c.l.bf16 %v752
        %v881 = vunpack.c.l.bf16 %v753
        %v882 = vunpack.c.l.bf16 %v754
        %v883 = vunpack.c.l.bf16 %v755
        %v884 = vunpack.c.l.bf16 %v756
        %v885 = vunpack.c.l.bf16 %v757
        %v886 = vunpack.c.l.bf16 %v758
        %v887 = vunpack.c.l.bf16 %v759
        %v888 = vunpack.c.l.bf16 %v760
        %v889 = vunpack.c.l.bf16 %v761
        %v890 = vunpack.c.l.bf16 %v762
        %v891 = vunpack.c.l.bf16 %v763
        %v892 = vunpack.c.l.bf16 %v764
        %v893 = vunpack.c.l.bf16 %v765
        %v894 = vunpack.c.l.bf16 %v766
        %v895 = vunpack.c.l.bf16 %v767
        %v896 = vunpack.c.l.bf16 %v768
        %v897 = vunpack.c.l.bf16 %v769
        %v898 = vunpack.c.l.bf16 %v770
        %v899 = vunpack.c.l.bf16 %v771
        %v900 = vunpack.c.l.bf16 %v772
        %v901 = vunpack.c.l.bf16 %v773
        %v902 = vunpack.c.l.bf16 %v774
        %v903 = vunpack.c.l.bf16 %v775
        %v904 = vunpack.c.l.bf16 %v776
        %v905 = vunpack.c.l.bf16 %v777
        %v906 = vunpack.c.l.bf16 %v778
        %v907 = vunpack.c.l.bf16 %v779
        %v908 = vunpack.c.l.bf16 %v780
        %v909 = vunpack.c.l.bf16 %v781
        %v910 = vunpack.c.l.bf16 %v782
        %v911 = vunpack.c.l.bf16 %v783
        %v912 = vunpack.c.l.bf16 %v784
        %v913 = vunpack.c.l.bf16 %v785
        %v914 = vunpack.c.l.bf16 %v786
        %v915 = vunpack.c.l.bf16 %v787
        %v916 = vunpack.c.l.bf16 %v788
        %v917 = vunpack.c.l.bf16 %v789
        %v918 = vunpack.c.l.bf16 %v790
        %v919 = vunpack.c.l.bf16 %v791
        %v920 = vunpack.c.l.bf16 %v792
        %v921 = vunpack.c.l.bf16 %v793
        %v922 = vunpack.c.l.bf16 %v794
        %v923 = vunpack.c.l.bf16 %v795
        %v924 = vunpack.c.l.bf16 %v796
        %v925 = vunpack.c.l.bf16 %v797
        %v926 = vunpack.c.l.bf16 %v798
        %v927 = vunpack.c.l.bf16 %v799
        %v928 = vunpack.c.l.bf16 %v800
        %v929 = vunpack.c.l.bf16 %v801
        %v930 = vunpack.c.l.bf16 %v802
        %v931 = vunpack.c.l.bf16 %v803
        %v932 = vunpack.c.l.bf16 %v804
        %v933 = vunpack.c.l.bf16 %v805
        %v934 = vunpack.c.l.bf16 %v806
        %v935 = vunpack.c.l.bf16 %v807
        %v936 = vunpack.c.l.bf16 %v808
        %v937 = vunpack.c.l.bf16 %v809
        %v938 = vunpack.c.l.bf16 %v810
        %v939 = vunpack.c.l.bf16 %v811
        %v940 = vunpack.c.l.bf16 %v812
        %v941 = vunpack.c.l.bf16 %v813
        %v942 = vunpack.c.l.bf16 %v814
        %v943 = vunpack.c.l.bf16 %v815
        %v944 = vunpack.c.l.bf16 %v816
        %v945 = vunpack.c.l.bf16 %v817
        %v946 = vstv %s302
        %v947 = vmul.f32 %v946, %v818
        %v948 = vmul.f32 %v946, %v819
        %v949 = vmul.f32 %v946, %v820
        %v950 = vmul.f32 %v946, %v821
        %v951 = vmul.f32 %v946, %v822
        %v952 = vmul.f32 %v946, %v823
        %v953 = vmul.f32 %v946, %v824
        %v954 = vmul.f32 %v946, %v825
        %v955 = vmul.f32 %v946, %v826
        %v956 = vmul.f32 %v946, %v827
        %v957 = vmul.f32 %v946, %v828
        %v958 = vmul.f32 %v946, %v829
        %v959 = vmul.f32 %v946, %v830
        %v960 = vmul.f32 %v946, %v831
        %v961 = vmul.f32 %v946, %v832
        %v962 = vmul.f32 %v946, %v833
        %v963 = vmul.f32 %v946, %v834
        %v964 = vmul.f32 %v946, %v835
        %v965 = vmul.f32 %v946, %v836
        %v966 = vmul.f32 %v946, %v837
        %v967 = vmul.f32 %v946, %v838
        %v968 = vmul.f32 %v946, %v839
        %v969 = vmul.f32 %v946, %v840
        %v970 = vmul.f32 %v946, %v841
        %v971 = vmul.f32 %v946, %v842
        %v972 = vmul.f32 %v946, %v843
        %v973 = vmul.f32 %v946, %v844
        %v974 = vmul.f32 %v946, %v845
        %v975 = vmul.f32 %v946, %v846
        %v976 = vmul.f32 %v946, %v847
        %v977 = vmul.f32 %v946, %v848
        %v978 = vmul.f32 %v946, %v849
        %v979 = vmul.f32 %v946, %v850
        %v980 = vmul.f32 %v946, %v851
        %v981 = vmul.f32 %v946, %v852
        %v982 = vmul.f32 %v946, %v853
        %v983 = vmul.f32 %v946, %v854
        %v984 = vmul.f32 %v946, %v855
        %v985 = vmul.f32 %v946, %v856
        %v986 = vmul.f32 %v946, %v857
        %v987 = vmul.f32 %v946, %v858
        %v988 = vmul.f32 %v946, %v859
        %v989 = vmul.f32 %v946, %v860
        %v990 = vmul.f32 %v946, %v861
        %v991 = vmul.f32 %v946, %v862
        %v992 = vmul.f32 %v946, %v863
        %v993 = vmul.f32 %v946, %v864
        %v994 = vmul.f32 %v946, %v865
        %v995 = vmul.f32 %v946, %v866
        %v996 = vmul.f32 %v946, %v867
        %v997 = vmul.f32 %v946, %v868
        %v998 = vmul.f32 %v946, %v869
        %v999 = vmul.f32 %v946, %v870
        %v1000 = vmul.f32 %v946, %v871
        %v1001 = vmul.f32 %v946, %v872
        %v1002 = vmul.f32 %v946, %v873
        %v1003 = vmul.f32 %v946, %v874
        %v1004 = vmul.f32 %v946, %v875
        %v1005 = vmul.f32 %v946, %v876
        %v1006 = vmul.f32 %v946, %v877
        %v1007 = vmul.f32 %v946, %v878
        %v1008 = vmul.f32 %v946, %v879
        %v1009 = vmul.f32 %v946, %v880
        %v1010 = vmul.f32 %v946, %v881
        %v1011 = vmul.f32 %v946, %v882
        %v1012 = vmul.f32 %v946, %v883
        %v1013 = vmul.f32 %v946, %v884
        %v1014 = vmul.f32 %v946, %v885
        %v1015 = vmul.f32 %v946, %v886
        %v1016 = vmul.f32 %v946, %v887
        %v1017 = vmul.f32 %v946, %v888
        %v1018 = vmul.f32 %v946, %v889
        %v1019 = vmul.f32 %v946, %v890
        %v1020 = vmul.f32 %v946, %v891
        %v1021 = vmul.f32 %v946, %v892
        %v1022 = vmul.f32 %v946, %v893
        %v1023 = vmul.f32 %v946, %v894
        %v1024 = vmul.f32 %v946, %v895
        %v1025 = vmul.f32 %v946, %v896
        %v1026 = vmul.f32 %v946, %v897
        %v1027 = vmul.f32 %v946, %v898
        %v1028 = vmul.f32 %v946, %v899
        %v1029 = vmul.f32 %v946, %v900
        %v1030 = vmul.f32 %v946, %v901
        %v1031 = vmul.f32 %v946, %v902
        %v1032 = vmul.f32 %v946, %v903
        %v1033 = vmul.f32 %v946, %v904
        %v1034 = vmul.f32 %v946, %v905
        %v1035 = vmul.f32 %v946, %v906
        %v1036 = vmul.f32 %v946, %v907
        %v1037 = vmul.f32 %v946, %v908
        %v1038 = vmul.f32 %v946, %v909
        %v1039 = vmul.f32 %v946, %v910
        %v1040 = vmul.f32 %v946, %v911
        %v1041 = vmul.f32 %v946, %v912
        %v1042 = vmul.f32 %v946, %v913
        %v1043 = vmul.f32 %v946, %v914
        %v1044 = vmul.f32 %v946, %v915
        %v1045 = vmul.f32 %v946, %v916
        %v1046 = vmul.f32 %v946, %v917
        %v1047 = vmul.f32 %v946, %v918
        %v1048 = vmul.f32 %v946, %v919
        %v1049 = vmul.f32 %v946, %v920
        %v1050 = vmul.f32 %v946, %v921
        %v1051 = vmul.f32 %v946, %v922
        %v1052 = vmul.f32 %v946, %v923
        %v1053 = vmul.f32 %v946, %v924
        %v1054 = vmul.f32 %v946, %v925
        %v1055 = vmul.f32 %v946, %v926
        %v1056 = vmul.f32 %v946, %v927
        %v1057 = vmul.f32 %v946, %v928
        %v1058 = vmul.f32 %v946, %v929
        %v1059 = vmul.f32 %v946, %v930
        %v1060 = vmul.f32 %v946, %v931
        %v1061 = vmul.f32 %v946, %v932
        %v1062 = vmul.f32 %v946, %v933
        %v1063 = vmul.f32 %v946, %v934
        %v1064 = vmul.f32 %v946, %v935
        %v1065 = vmul.f32 %v946, %v936
        %v1066 = vmul.f32 %v946, %v937
        %v1067 = vmul.f32 %v946, %v938
        %v1068 = vmul.f32 %v946, %v939
        %v1069 = vmul.f32 %v946, %v940
        %v1070 = vmul.f32 %v946, %v941
        %v1071 = vmul.f32 %v946, %v942
        %v1072 = vmul.f32 %v946, %v943
        %v1073 = vmul.f32 %v946, %v944
        %v1074 = vmul.f32 %v946, %v945
        %v1075 = vadd.f32 %v561, %v947
        %v1076 = vadd.f32 %v562, %v948
        %v1077 = vadd.f32 %v563, %v949
        %v1078 = vadd.f32 %v564, %v950
        %v1079 = vadd.f32 %v565, %v951
        %v1080 = vadd.f32 %v566, %v952
        %v1081 = vadd.f32 %v567, %v953
        %v1082 = vadd.f32 %v568, %v954
        %v1083 = vadd.f32 %v569, %v955
        %v1084 = vadd.f32 %v570, %v956
        %v1085 = vadd.f32 %v571, %v957
        %v1086 = vadd.f32 %v572, %v958
        %v1087 = vadd.f32 %v573, %v959
        %v1088 = vadd.f32 %v574, %v960
        %v1089 = vadd.f32 %v575, %v961
        %v1090 = vadd.f32 %v576, %v962
        %v1091 = vadd.f32 %v577, %v963
        %v1092 = vadd.f32 %v578, %v964
        %v1093 = vadd.f32 %v579, %v965
        %v1094 = vadd.f32 %v580, %v966
        %v1095 = vadd.f32 %v581, %v967
        %v1096 = vadd.f32 %v582, %v968
        %v1097 = vadd.f32 %v583, %v969
        %v1098 = vadd.f32 %v584, %v970
        %v1099 = vadd.f32 %v585, %v971
        %v1100 = vadd.f32 %v586, %v972
        %v1101 = vadd.f32 %v587, %v973
        %v1102 = vadd.f32 %v588, %v974
        %v1103 = vadd.f32 %v589, %v975
        %v1104 = vadd.f32 %v590, %v976
        %v1105 = vadd.f32 %v591, %v977
        %v1106 = vadd.f32 %v592, %v978
        %v1107 = vadd.f32 %v593, %v979
        %v1108 = vadd.f32 %v594, %v980
        %v1109 = vadd.f32 %v595, %v981
        %v1110 = vadd.f32 %v596, %v982
        %v1111 = vadd.f32 %v597, %v983
        %v1112 = vadd.f32 %v598, %v984
        %v1113 = vadd.f32 %v599, %v985
        %v1114 = vadd.f32 %v600, %v986
        %v1115 = vadd.f32 %v601, %v987
        %v1116 = vadd.f32 %v602, %v988
        %v1117 = vadd.f32 %v603, %v989
        %v1118 = vadd.f32 %v604, %v990
        %v1119 = vadd.f32 %v605, %v991
        %v1120 = vadd.f32 %v606, %v992
        %v1121 = vadd.f32 %v607, %v993
        %v1122 = vadd.f32 %v608, %v994
        %v1123 = vadd.f32 %v609, %v995
        %v1124 = vadd.f32 %v610, %v996
        %v1125 = vadd.f32 %v611, %v997
        %v1126 = vadd.f32 %v612, %v998
        %v1127 = vadd.f32 %v613, %v999
        %v1128 = vadd.f32 %v614, %v1000
        %v1129 = vadd.f32 %v615, %v1001
        %v1130 = vadd.f32 %v616, %v1002
        %v1131 = vadd.f32 %v617, %v1003
        %v1132 = vadd.f32 %v618, %v1004
        %v1133 = vadd.f32 %v619, %v1005
        %v1134 = vadd.f32 %v620, %v1006
        %v1135 = vadd.f32 %v621, %v1007
        %v1136 = vadd.f32 %v622, %v1008
        %v1137 = vadd.f32 %v623, %v1009
        %v1138 = vadd.f32 %v624, %v1010
        %v1139 = vadd.f32 %v625, %v1011
        %v1140 = vadd.f32 %v626, %v1012
        %v1141 = vadd.f32 %v627, %v1013
        %v1142 = vadd.f32 %v628, %v1014
        %v1143 = vadd.f32 %v629, %v1015
        %v1144 = vadd.f32 %v630, %v1016
        %v1145 = vadd.f32 %v631, %v1017
        %v1146 = vadd.f32 %v632, %v1018
        %v1147 = vadd.f32 %v633, %v1019
        %v1148 = vadd.f32 %v634, %v1020
        %v1149 = vadd.f32 %v635, %v1021
        %v1150 = vadd.f32 %v636, %v1022
        %v1151 = vadd.f32 %v637, %v1023
        %v1152 = vadd.f32 %v638, %v1024
        %v1153 = vadd.f32 %v639, %v1025
        %v1154 = vadd.f32 %v640, %v1026
        %v1155 = vadd.f32 %v641, %v1027
        %v1156 = vadd.f32 %v642, %v1028
        %v1157 = vadd.f32 %v643, %v1029
        %v1158 = vadd.f32 %v644, %v1030
        %v1159 = vadd.f32 %v645, %v1031
        %v1160 = vadd.f32 %v646, %v1032
        %v1161 = vadd.f32 %v647, %v1033
        %v1162 = vadd.f32 %v648, %v1034
        %v1163 = vadd.f32 %v649, %v1035
        %v1164 = vadd.f32 %v650, %v1036
        %v1165 = vadd.f32 %v651, %v1037
        %v1166 = vadd.f32 %v652, %v1038
        %v1167 = vadd.f32 %v653, %v1039
        %v1168 = vadd.f32 %v654, %v1040
        %v1169 = vadd.f32 %v655, %v1041
        %v1170 = vadd.f32 %v656, %v1042
        %v1171 = vadd.f32 %v657, %v1043
        %v1172 = vadd.f32 %v658, %v1044
        %v1173 = vadd.f32 %v659, %v1045
        %v1174 = vadd.f32 %v660, %v1046
        %v1175 = vadd.f32 %v661, %v1047
        %v1176 = vadd.f32 %v662, %v1048
        %v1177 = vadd.f32 %v663, %v1049
        %v1178 = vadd.f32 %v664, %v1050
        %v1179 = vadd.f32 %v665, %v1051
        %v1180 = vadd.f32 %v666, %v1052
        %v1181 = vadd.f32 %v667, %v1053
        %v1182 = vadd.f32 %v668, %v1054
        %v1183 = vadd.f32 %v669, %v1055
        %v1184 = vadd.f32 %v670, %v1056
        %v1185 = vadd.f32 %v671, %v1057
        %v1186 = vadd.f32 %v672, %v1058
        %v1187 = vadd.f32 %v673, %v1059
        %v1188 = vadd.f32 %v674, %v1060
        %v1189 = vadd.f32 %v675, %v1061
        %v1190 = vadd.f32 %v676, %v1062
        %v1191 = vadd.f32 %v677, %v1063
        %v1192 = vadd.f32 %v678, %v1064
        %v1193 = vadd.f32 %v679, %v1065
        %v1194 = vadd.f32 %v680, %v1066
        %v1195 = vadd.f32 %v681, %v1067
        %v1196 = vadd.f32 %v682, %v1068
        %v1197 = vadd.f32 %v683, %v1069
        %v1198 = vadd.f32 %v684, %v1070
        %v1199 = vadd.f32 %v685, %v1071
        %v1200 = vadd.f32 %v686, %v1072
        %v1201 = vadd.f32 %v687, %v1073
        %v1202 = vadd.f32 %v688, %v1074
        %s1203 = scalar_lea.vmem %s2, 1024
        %v1204 = vld [vmem:[%s1203] sm:$0xf]
        %v1205 = vld [vmem:[%s1203 + $0x4] sm:$0xf]
        %v1206 = vld [vmem:[%s1203 + $0x8] sm:$0xf]
        %v1207 = vld [vmem:[%s1203 + $0xc] sm:$0xf]
        %v1208 = vld [vmem:[%s1203 + $0x10] sm:$0xf]
        %v1209 = vld [vmem:[%s1203 + $0x14] sm:$0xf]
        %v1210 = vld [vmem:[%s1203 + $0x18] sm:$0xf]
        %v1211 = vld [vmem:[%s1203 + $0x1c] sm:$0xf]
        %v1212 = vld [vmem:[%s1203 + $0x20] sm:$0xf]
        %v1213 = vld [vmem:[%s1203 + $0x24] sm:$0xf]
        %v1214 = vld [vmem:[%s1203 + $0x28] sm:$0xf]
        %v1215 = vld [vmem:[%s1203 + $0x2c] sm:$0xf]
        %v1216 = vld [vmem:[%s1203 + $0x30] sm:$0xf]
        %v1217 = vld [vmem:[%s1203 + $0x34] sm:$0xf]
        %v1218 = vld [vmem:[%s1203 + $0x38] sm:$0xf]
        %v1219 = vld [vmem:[%s1203 + $0x3c] sm:$0xf]
        %v1220 = vld [vmem:[%s1203 + $0x40] sm:$0xf]
        %v1221 = vld [vmem:[%s1203 + $0x44] sm:$0xf]
        %v1222 = vld [vmem:[%s1203 + $0x48] sm:$0xf]
        %v1223 = vld [vmem:[%s1203 + $0x4c] sm:$0xf]
        %v1224 = vld [vmem:[%s1203 + $0x50] sm:$0xf]
        %v1225 = vld [vmem:[%s1203 + $0x54] sm:$0xf]
        %v1226 = vld [vmem:[%s1203 + $0x58] sm:$0xf]
        %v1227 = vld [vmem:[%s1203 + $0x5c] sm:$0xf]
        %v1228 = vld [vmem:[%s1203 + $0x60] sm:$0xf]
        %v1229 = vld [vmem:[%s1203 + $0x64] sm:$0xf]
        %v1230 = vld [vmem:[%s1203 + $0x68] sm:$0xf]
        %v1231 = vld [vmem:[%s1203 + $0x6c] sm:$0xf]
        %v1232 = vld [vmem:[%s1203 + $0x70] sm:$0xf]
        %v1233 = vld [vmem:[%s1203 + $0x74] sm:$0xf]
        %v1234 = vld [vmem:[%s1203 + $0x78] sm:$0xf]
        %v1235 = vld [vmem:[%s1203 + $0x7c] sm:$0xf]
        %v1236 = vld [vmem:[%s1203 + $0x80] sm:$0xf]
        %v1237 = vld [vmem:[%s1203 + $0x84] sm:$0xf]
        %v1238 = vld [vmem:[%s1203 + $0x88] sm:$0xf]
        %v1239 = vld [vmem:[%s1203 + $0x8c] sm:$0xf]
        %v1240 = vld [vmem:[%s1203 + $0x90] sm:$0xf]
        %v1241 = vld [vmem:[%s1203 + $0x94] sm:$0xf]
        %v1242 = vld [vmem:[%s1203 + $0x98] sm:$0xf]
        %v1243 = vld [vmem:[%s1203 + $0x9c] sm:$0xf]
        %v1244 = vld [vmem:[%s1203 + $0xa0] sm:$0xf]
        %v1245 = vld [vmem:[%s1203 + $0xa4] sm:$0xf]
        %v1246 = vld [vmem:[%s1203 + $0xa8] sm:$0xf]
        %v1247 = vld [vmem:[%s1203 + $0xac] sm:$0xf]
        %v1248 = vld [vmem:[%s1203 + $0xb0] sm:$0xf]
        %v1249 = vld [vmem:[%s1203 + $0xb4] sm:$0xf]
        %v1250 = vld [vmem:[%s1203 + $0xb8] sm:$0xf]
        %v1251 = vld [vmem:[%s1203 + $0xbc] sm:$0xf]
        %v1252 = vld [vmem:[%s1203 + $0xc0] sm:$0xf]
        %v1253 = vld [vmem:[%s1203 + $0xc4] sm:$0xf]
        %v1254 = vld [vmem:[%s1203 + $0xc8] sm:$0xf]
        %v1255 = vld [vmem:[%s1203 + $0xcc] sm:$0xf]
        %v1256 = vld [vmem:[%s1203 + $0xd0] sm:$0xf]
        %v1257 = vld [vmem:[%s1203 + $0xd4] sm:$0xf]
        %v1258 = vld [vmem:[%s1203 + $0xd8] sm:$0xf]
        %v1259 = vld [vmem:[%s1203 + $0xdc] sm:$0xf]
        %v1260 = vld [vmem:[%s1203 + $0xe0] sm:$0xf]
        %v1261 = vld [vmem:[%s1203 + $0xe4] sm:$0xf]
        %v1262 = vld [vmem:[%s1203 + $0xe8] sm:$0xf]
        %v1263 = vld [vmem:[%s1203 + $0xec] sm:$0xf]
        %v1264 = vld [vmem:[%s1203 + $0xf0] sm:$0xf]
        %v1265 = vld [vmem:[%s1203 + $0xf4] sm:$0xf]
        %v1266 = vld [vmem:[%s1203 + $0xf8] sm:$0xf]
        %v1267 = vld [vmem:[%s1203 + $0xfc] sm:$0xf]
        %v1268 = vld [vmem:[%s1203 + $0x100] sm:$0xf]
        %v1269 = vld [vmem:[%s1203 + $0x104] sm:$0xf]
        %v1270 = vld [vmem:[%s1203 + $0x108] sm:$0xf]
        %v1271 = vld [vmem:[%s1203 + $0x10c] sm:$0xf]
        %v1272 = vld [vmem:[%s1203 + $0x110] sm:$0xf]
        %v1273 = vld [vmem:[%s1203 + $0x114] sm:$0xf]
        %v1274 = vld [vmem:[%s1203 + $0x118] sm:$0xf]
        %v1275 = vld [vmem:[%s1203 + $0x11c] sm:$0xf]
        %v1276 = vld [vmem:[%s1203 + $0x120] sm:$0xf]
        %v1277 = vld [vmem:[%s1203 + $0x124] sm:$0xf]
        %v1278 = vld [vmem:[%s1203 + $0x128] sm:$0xf]
        %v1279 = vld [vmem:[%s1203 + $0x12c] sm:$0xf]
        %v1280 = vld [vmem:[%s1203 + $0x130] sm:$0xf]
        %v1281 = vld [vmem:[%s1203 + $0x134] sm:$0xf]
        %v1282 = vld [vmem:[%s1203 + $0x138] sm:$0xf]
        %v1283 = vld [vmem:[%s1203 + $0x13c] sm:$0xf]
        %v1284 = vld [vmem:[%s1203 + $0x140] sm:$0xf]
        %v1285 = vld [vmem:[%s1203 + $0x144] sm:$0xf]
        %v1286 = vld [vmem:[%s1203 + $0x148] sm:$0xf]
        %v1287 = vld [vmem:[%s1203 + $0x14c] sm:$0xf]
        %v1288 = vld [vmem:[%s1203 + $0x150] sm:$0xf]
        %v1289 = vld [vmem:[%s1203 + $0x154] sm:$0xf]
        %v1290 = vld [vmem:[%s1203 + $0x158] sm:$0xf]
        %v1291 = vld [vmem:[%s1203 + $0x15c] sm:$0xf]
        %v1292 = vld [vmem:[%s1203 + $0x160] sm:$0xf]
        %v1293 = vld [vmem:[%s1203 + $0x164] sm:$0xf]
        %v1294 = vld [vmem:[%s1203 + $0x168] sm:$0xf]
        %v1295 = vld [vmem:[%s1203 + $0x16c] sm:$0xf]
        %v1296 = vld [vmem:[%s1203 + $0x170] sm:$0xf]
        %v1297 = vld [vmem:[%s1203 + $0x174] sm:$0xf]
        %v1298 = vld [vmem:[%s1203 + $0x178] sm:$0xf]
        %v1299 = vld [vmem:[%s1203 + $0x17c] sm:$0xf]
        %v1300 = vld [vmem:[%s1203 + $0x180] sm:$0xf]
        %v1301 = vld [vmem:[%s1203 + $0x184] sm:$0xf]
        %v1302 = vld [vmem:[%s1203 + $0x188] sm:$0xf]
        %v1303 = vld [vmem:[%s1203 + $0x18c] sm:$0xf]
        %v1304 = vld [vmem:[%s1203 + $0x190] sm:$0xf]
        %v1305 = vld [vmem:[%s1203 + $0x194] sm:$0xf]
        %v1306 = vld [vmem:[%s1203 + $0x198] sm:$0xf]
        %v1307 = vld [vmem:[%s1203 + $0x19c] sm:$0xf]
        %v1308 = vld [vmem:[%s1203 + $0x1a0] sm:$0xf]
        %v1309 = vld [vmem:[%s1203 + $0x1a4] sm:$0xf]
        %v1310 = vld [vmem:[%s1203 + $0x1a8] sm:$0xf]
        %v1311 = vld [vmem:[%s1203 + $0x1ac] sm:$0xf]
        %v1312 = vld [vmem:[%s1203 + $0x1b0] sm:$0xf]
        %v1313 = vld [vmem:[%s1203 + $0x1b4] sm:$0xf]
        %v1314 = vld [vmem:[%s1203 + $0x1b8] sm:$0xf]
        %v1315 = vld [vmem:[%s1203 + $0x1bc] sm:$0xf]
        %v1316 = vld [vmem:[%s1203 + $0x1c0] sm:$0xf]
        %v1317 = vld [vmem:[%s1203 + $0x1c4] sm:$0xf]
        %v1318 = vld [vmem:[%s1203 + $0x1c8] sm:$0xf]
        %v1319 = vld [vmem:[%s1203 + $0x1cc] sm:$0xf]
        %v1320 = vld [vmem:[%s1203 + $0x1d0] sm:$0xf]
        %v1321 = vld [vmem:[%s1203 + $0x1d4] sm:$0xf]
        %v1322 = vld [vmem:[%s1203 + $0x1d8] sm:$0xf]
        %v1323 = vld [vmem:[%s1203 + $0x1dc] sm:$0xf]
        %v1324 = vld [vmem:[%s1203 + $0x1e0] sm:$0xf]
        %v1325 = vld [vmem:[%s1203 + $0x1e4] sm:$0xf]
        %v1326 = vld [vmem:[%s1203 + $0x1e8] sm:$0xf]
        %v1327 = vld [vmem:[%s1203 + $0x1ec] sm:$0xf]
        %v1328 = vld [vmem:[%s1203 + $0x1f0] sm:$0xf]
        %v1329 = vld [vmem:[%s1203 + $0x1f4] sm:$0xf]
        %v1330 = vld [vmem:[%s1203 + $0x1f8] sm:$0xf]
        %v1331 = vld [vmem:[%s1203 + $0x1fc] sm:$0xf]
        %v1332 = vunpack.c.l.bf16 %v1204
        %v1333 = vunpack.c.l.bf16 %v1205
        %v1334 = vunpack.c.l.bf16 %v1206
        %v1335 = vunpack.c.l.bf16 %v1207
        %v1336 = vunpack.c.l.bf16 %v1208
        %v1337 = vunpack.c.l.bf16 %v1209
        %v1338 = vunpack.c.l.bf16 %v1210
        %v1339 = vunpack.c.l.bf16 %v1211
        %v1340 = vunpack.c.l.bf16 %v1212
        %v1341 = vunpack.c.l.bf16 %v1213
        %v1342 = vunpack.c.l.bf16 %v1214
        %v1343 = vunpack.c.l.bf16 %v1215
        %v1344 = vunpack.c.l.bf16 %v1216
        %v1345 = vunpack.c.l.bf16 %v1217
        %v1346 = vunpack.c.l.bf16 %v1218
        %v1347 = vunpack.c.l.bf16 %v1219
        %v1348 = vunpack.c.l.bf16 %v1220
        %v1349 = vunpack.c.l.bf16 %v1221
        %v1350 = vunpack.c.l.bf16 %v1222
        %v1351 = vunpack.c.l.bf16 %v1223
        %v1352 = vunpack.c.l.bf16 %v1224
        %v1353 = vunpack.c.l.bf16 %v1225
        %v1354 = vunpack.c.l.bf16 %v1226
        %v1355 = vunpack.c.l.bf16 %v1227
        %v1356 = vunpack.c.l.bf16 %v1228
        %v1357 = vunpack.c.l.bf16 %v1229
        %v1358 = vunpack.c.l.bf16 %v1230
        %v1359 = vunpack.c.l.bf16 %v1231
        %v1360 = vunpack.c.l.bf16 %v1232
        %v1361 = vunpack.c.l.bf16 %v1233
        %v1362 = vunpack.c.l.bf16 %v1234
        %v1363 = vunpack.c.l.bf16 %v1235
        %v1364 = vunpack.c.l.bf16 %v1236
        %v1365 = vunpack.c.l.bf16 %v1237
        %v1366 = vunpack.c.l.bf16 %v1238
        %v1367 = vunpack.c.l.bf16 %v1239
        %v1368 = vunpack.c.l.bf16 %v1240
        %v1369 = vunpack.c.l.bf16 %v1241
        %v1370 = vunpack.c.l.bf16 %v1242
        %v1371 = vunpack.c.l.bf16 %v1243
        %v1372 = vunpack.c.l.bf16 %v1244
        %v1373 = vunpack.c.l.bf16 %v1245
        %v1374 = vunpack.c.l.bf16 %v1246
        %v1375 = vunpack.c.l.bf16 %v1247
        %v1376 = vunpack.c.l.bf16 %v1248
        %v1377 = vunpack.c.l.bf16 %v1249
        %v1378 = vunpack.c.l.bf16 %v1250
        %v1379 = vunpack.c.l.bf16 %v1251
        %v1380 = vunpack.c.l.bf16 %v1252
        %v1381 = vunpack.c.l.bf16 %v1253
        %v1382 = vunpack.c.l.bf16 %v1254
        %v1383 = vunpack.c.l.bf16 %v1255
        %v1384 = vunpack.c.l.bf16 %v1256
        %v1385 = vunpack.c.l.bf16 %v1257
        %v1386 = vunpack.c.l.bf16 %v1258
        %v1387 = vunpack.c.l.bf16 %v1259
        %v1388 = vunpack.c.l.bf16 %v1260
        %v1389 = vunpack.c.l.bf16 %v1261
        %v1390 = vunpack.c.l.bf16 %v1262
        %v1391 = vunpack.c.l.bf16 %v1263
        %v1392 = vunpack.c.l.bf16 %v1264
        %v1393 = vunpack.c.l.bf16 %v1265
        %v1394 = vunpack.c.l.bf16 %v1266
        %v1395 = vunpack.c.l.bf16 %v1267
        %v1396 = vunpack.c.l.bf16 %v1268
        %v1397 = vunpack.c.l.bf16 %v1269
        %v1398 = vunpack.c.l.bf16 %v1270
        %v1399 = vunpack.c.l.bf16 %v1271
        %v1400 = vunpack.c.l.bf16 %v1272
        %v1401 = vunpack.c.l.bf16 %v1273
        %v1402 = vunpack.c.l.bf16 %v1274
        %v1403 = vunpack.c.l.bf16 %v1275
        %v1404 = vunpack.c.l.bf16 %v1276
        %v1405 = vunpack.c.l.bf16 %v1277
        %v1406 = vunpack.c.l.bf16 %v1278
        %v1407 = vunpack.c.l.bf16 %v1279
        %v1408 = vunpack.c.l.bf16 %v1280
        %v1409 = vunpack.c.l.bf16 %v1281
        %v1410 = vunpack.c.l.bf16 %v1282
        %v1411 = vunpack.c.l.bf16 %v1283
        %v1412 = vunpack.c.l.bf16 %v1284
        %v1413 = vunpack.c.l.bf16 %v1285
        %v1414 = vunpack.c.l.bf16 %v1286
        %v1415 = vunpack.c.l.bf16 %v1287
        %v1416 = vunpack.c.l.bf16 %v1288
        %v1417 = vunpack.c.l.bf16 %v1289
        %v1418 = vunpack.c.l.bf16 %v1290
        %v1419 = vunpack.c.l.bf16 %v1291
        %v1420 = vunpack.c.l.bf16 %v1292
        %v1421 = vunpack.c.l.bf16 %v1293
        %v1422 = vunpack.c.l.bf16 %v1294
        %v1423 = vunpack.c.l.bf16 %v1295
        %v1424 = vunpack.c.l.bf16 %v1296
        %v1425 = vunpack.c.l.bf16 %v1297
        %v1426 = vunpack.c.l.bf16 %v1298
        %v1427 = vunpack.c.l.bf16 %v1299
        %v1428 = vunpack.c.l.bf16 %v1300
        %v1429 = vunpack.c.l.bf16 %v1301
        %v1430 = vunpack.c.l.bf16 %v1302
        %v1431 = vunpack.c.l.bf16 %v1303
        %v1432 = vunpack.c.l.bf16 %v1304
        %v1433 = vunpack.c.l.bf16 %v1305
        %v1434 = vunpack.c.l.bf16 %v1306
        %v1435 = vunpack.c.l.bf16 %v1307
        %v1436 = vunpack.c.l.bf16 %v1308
        %v1437 = vunpack.c.l.bf16 %v1309
        %v1438 = vunpack.c.l.bf16 %v1310
        %v1439 = vunpack.c.l.bf16 %v1311
        %v1440 = vunpack.c.l.bf16 %v1312
        %v1441 = vunpack.c.l.bf16 %v1313
        %v1442 = vunpack.c.l.bf16 %v1314
        %v1443 = vunpack.c.l.bf16 %v1315
        %v1444 = vunpack.c.l.bf16 %v1316
        %v1445 = vunpack.c.l.bf16 %v1317
        %v1446 = vunpack.c.l.bf16 %v1318
        %v1447 = vunpack.c.l.bf16 %v1319
        %v1448 = vunpack.c.l.bf16 %v1320
        %v1449 = vunpack.c.l.bf16 %v1321
        %v1450 = vunpack.c.l.bf16 %v1322
        %v1451 = vunpack.c.l.bf16 %v1323
        %v1452 = vunpack.c.l.bf16 %v1324
        %v1453 = vunpack.c.l.bf16 %v1325
        %v1454 = vunpack.c.l.bf16 %v1326
        %v1455 = vunpack.c.l.bf16 %v1327
        %v1456 = vunpack.c.l.bf16 %v1328
        %v1457 = vunpack.c.l.bf16 %v1329
        %v1458 = vunpack.c.l.bf16 %v1330
        %v1459 = vunpack.c.l.bf16 %v1331
        %v1460 = vstv %s303
        %v1461 = vmul.f32 %v1460, %v1332
        %v1462 = vmul.f32 %v1460, %v1333
        %v1463 = vmul.f32 %v1460, %v1334
        %v1464 = vmul.f32 %v1460, %v1335
        %v1465 = vmul.f32 %v1460, %v1336
        %v1466 = vmul.f32 %v1460, %v1337
        %v1467 = vmul.f32 %v1460, %v1338
        %v1468 = vmul.f32 %v1460, %v1339
        %v1469 = vmul.f32 %v1460, %v1340
        %v1470 = vmul.f32 %v1460, %v1341
        %v1471 = vmul.f32 %v1460, %v1342
        %v1472 = vmul.f32 %v1460, %v1343
        %v1473 = vmul.f32 %v1460, %v1344
        %v1474 = vmul.f32 %v1460, %v1345
        %v1475 = vmul.f32 %v1460, %v1346
        %v1476 = vmul.f32 %v1460, %v1347
        %v1477 = vmul.f32 %v1460, %v1348
        %v1478 = vmul.f32 %v1460, %v1349
        %v1479 = vmul.f32 %v1460, %v1350
        %v1480 = vmul.f32 %v1460, %v1351
        %v1481 = vmul.f32 %v1460, %v1352
        %v1482 = vmul.f32 %v1460, %v1353
        %v1483 = vmul.f32 %v1460, %v1354
        %v1484 = vmul.f32 %v1460, %v1355
        %v1485 = vmul.f32 %v1460, %v1356
        %v1486 = vmul.f32 %v1460, %v1357
        %v1487 = vmul.f32 %v1460, %v1358
        %v1488 = vmul.f32 %v1460, %v1359
        %v1489 = vmul.f32 %v1460, %v1360
        %v1490 = vmul.f32 %v1460, %v1361
        %v1491 = vmul.f32 %v1460, %v1362
        %v1492 = vmul.f32 %v1460, %v1363
        %v1493 = vmul.f32 %v1460, %v1364
        %v1494 = vmul.f32 %v1460, %v1365
        %v1495 = vmul.f32 %v1460, %v1366
        %v1496 = vmul.f32 %v1460, %v1367
        %v1497 = vmul.f32 %v1460, %v1368
        %v1498 = vmul.f32 %v1460, %v1369
        %v1499 = vmul.f32 %v1460, %v1370
        %v1500 = vmul.f32 %v1460, %v1371
        %v1501 = vmul.f32 %v1460, %v1372
        %v1502 = vmul.f32 %v1460, %v1373
        %v1503 = vmul.f32 %v1460, %v1374
        %v1504 = vmul.f32 %v1460, %v1375
        %v1505 = vmul.f32 %v1460, %v1376
        %v1506 = vmul.f32 %v1460, %v1377
        %v1507 = vmul.f32 %v1460, %v1378
        %v1508 = vmul.f32 %v1460, %v1379
        %v1509 = vmul.f32 %v1460, %v1380
        %v1510 = vmul.f32 %v1460, %v1381
        %v1511 = vmul.f32 %v1460, %v1382
        %v1512 = vmul.f32 %v1460, %v1383
        %v1513 = vmul.f32 %v1460, %v1384
        %v1514 = vmul.f32 %v1460, %v1385
        %v1515 = vmul.f32 %v1460, %v1386
        %v1516 = vmul.f32 %v1460, %v1387
        %v1517 = vmul.f32 %v1460, %v1388
        %v1518 = vmul.f32 %v1460, %v1389
        %v1519 = vmul.f32 %v1460, %v1390
        %v1520 = vmul.f32 %v1460, %v1391
        %v1521 = vmul.f32 %v1460, %v1392
        %v1522 = vmul.f32 %v1460, %v1393
        %v1523 = vmul.f32 %v1460, %v1394
        %v1524 = vmul.f32 %v1460, %v1395
        %v1525 = vmul.f32 %v1460, %v1396
        %v1526 = vmul.f32 %v1460, %v1397
        %v1527 = vmul.f32 %v1460, %v1398
        %v1528 = vmul.f32 %v1460, %v1399
        %v1529 = vmul.f32 %v1460, %v1400
        %v1530 = vmul.f32 %v1460, %v1401
        %v1531 = vmul.f32 %v1460, %v1402
        %v1532 = vmul.f32 %v1460, %v1403
        %v1533 = vmul.f32 %v1460, %v1404
        %v1534 = vmul.f32 %v1460, %v1405
        %v1535 = vmul.f32 %v1460, %v1406
        %v1536 = vmul.f32 %v1460, %v1407
        %v1537 = vmul.f32 %v1460, %v1408
        %v1538 = vmul.f32 %v1460, %v1409
        %v1539 = vmul.f32 %v1460, %v1410
        %v1540 = vmul.f32 %v1460, %v1411
        %v1541 = vmul.f32 %v1460, %v1412
        %v1542 = vmul.f32 %v1460, %v1413
        %v1543 = vmul.f32 %v1460, %v1414
        %v1544 = vmul.f32 %v1460, %v1415
        %v1545 = vmul.f32 %v1460, %v1416
        %v1546 = vmul.f32 %v1460, %v1417
        %v1547 = vmul.f32 %v1460, %v1418
        %v1548 = vmul.f32 %v1460, %v1419
        %v1549 = vmul.f32 %v1460, %v1420
        %v1550 = vmul.f32 %v1460, %v1421
        %v1551 = vmul.f32 %v1460, %v1422
        %v1552 = vmul.f32 %v1460, %v1423
        %v1553 = vmul.f32 %v1460, %v1424
        %v1554 = vmul.f32 %v1460, %v1425
        %v1555 = vmul.f32 %v1460, %v1426
        %v1556 = vmul.f32 %v1460, %v1427
        %v1557 = vmul.f32 %v1460, %v1428
        %v1558 = vmul.f32 %v1460, %v1429
        %v1559 = vmul.f32 %v1460, %v1430
        %v1560 = vmul.f32 %v1460, %v1431
        %v1561 = vmul.f32 %v1460, %v1432
        %v1562 = vmul.f32 %v1460, %v1433
        %v1563 = vmul.f32 %v1460, %v1434
        %v1564 = vmul.f32 %v1460, %v1435
        %v1565 = vmul.f32 %v1460, %v1436
        %v1566 = vmul.f32 %v1460, %v1437
        %v1567 = vmul.f32 %v1460, %v1438
        %v1568 = vmul.f32 %v1460, %v1439
        %v1569 = vmul.f32 %v1460, %v1440
        %v1570 = vmul.f32 %v1460, %v1441
        %v1571 = vmul.f32 %v1460, %v1442
        %v1572 = vmul.f32 %v1460, %v1443
        %v1573 = vmul.f32 %v1460, %v1444
        %v1574 = vmul.f32 %v1460, %v1445
        %v1575 = vmul.f32 %v1460, %v1446
        %v1576 = vmul.f32 %v1460, %v1447
        %v1577 = vmul.f32 %v1460, %v1448
        %v1578 = vmul.f32 %v1460, %v1449
        %v1579 = vmul.f32 %v1460, %v1450
        %v1580 = vmul.f32 %v1460, %v1451
        %v1581 = vmul.f32 %v1460, %v1452
        %v1582 = vmul.f32 %v1460, %v1453
        %v1583 = vmul.f32 %v1460, %v1454
        %v1584 = vmul.f32 %v1460, %v1455
        %v1585 = vmul.f32 %v1460, %v1456
        %v1586 = vmul.f32 %v1460, %v1457
        %v1587 = vmul.f32 %v1460, %v1458
        %v1588 = vmul.f32 %v1460, %v1459
        %v1589 = vadd.f32 %v1075, %v1461
        %v1590 = vadd.f32 %v1076, %v1462
        %v1591 = vadd.f32 %v1077, %v1463
        %v1592 = vadd.f32 %v1078, %v1464
        %v1593 = vadd.f32 %v1079, %v1465
        %v1594 = vadd.f32 %v1080, %v1466
        %v1595 = vadd.f32 %v1081, %v1467
        %v1596 = vadd.f32 %v1082, %v1468
        %v1597 = vadd.f32 %v1083, %v1469
        %v1598 = vadd.f32 %v1084, %v1470
        %v1599 = vadd.f32 %v1085, %v1471
        %v1600 = vadd.f32 %v1086, %v1472
        %v1601 = vadd.f32 %v1087, %v1473
        %v1602 = vadd.f32 %v1088, %v1474
        %v1603 = vadd.f32 %v1089, %v1475
        %v1604 = vadd.f32 %v1090, %v1476
        %v1605 = vadd.f32 %v1091, %v1477
        %v1606 = vadd.f32 %v1092, %v1478
        %v1607 = vadd.f32 %v1093, %v1479
        %v1608 = vadd.f32 %v1094, %v1480
        %v1609 = vadd.f32 %v1095, %v1481
        %v1610 = vadd.f32 %v1096, %v1482
        %v1611 = vadd.f32 %v1097, %v1483
        %v1612 = vadd.f32 %v1098, %v1484
        %v1613 = vadd.f32 %v1099, %v1485
        %v1614 = vadd.f32 %v1100, %v1486
        %v1615 = vadd.f32 %v1101, %v1487
        %v1616 = vadd.f32 %v1102, %v1488
        %v1617 = vadd.f32 %v1103, %v1489
        %v1618 = vadd.f32 %v1104, %v1490
        %v1619 = vadd.f32 %v1105, %v1491
        %v1620 = vadd.f32 %v1106, %v1492
        %v1621 = vadd.f32 %v1107, %v1493
        %v1622 = vadd.f32 %v1108, %v1494
        %v1623 = vadd.f32 %v1109, %v1495
        %v1624 = vadd.f32 %v1110, %v1496
        %v1625 = vadd.f32 %v1111, %v1497
        %v1626 = vadd.f32 %v1112, %v1498
        %v1627 = vadd.f32 %v1113, %v1499
        %v1628 = vadd.f32 %v1114, %v1500
        %v1629 = vadd.f32 %v1115, %v1501
        %v1630 = vadd.f32 %v1116, %v1502
        %v1631 = vadd.f32 %v1117, %v1503
        %v1632 = vadd.f32 %v1118, %v1504
        %v1633 = vadd.f32 %v1119, %v1505
        %v1634 = vadd.f32 %v1120, %v1506
        %v1635 = vadd.f32 %v1121, %v1507
        %v1636 = vadd.f32 %v1122, %v1508
        %v1637 = vadd.f32 %v1123, %v1509
        %v1638 = vadd.f32 %v1124, %v1510
        %v1639 = vadd.f32 %v1125, %v1511
        %v1640 = vadd.f32 %v1126, %v1512
        %v1641 = vadd.f32 %v1127, %v1513
        %v1642 = vadd.f32 %v1128, %v1514
        %v1643 = vadd.f32 %v1129, %v1515
        %v1644 = vadd.f32 %v1130, %v1516
        %v1645 = vadd.f32 %v1131, %v1517
        %v1646 = vadd.f32 %v1132, %v1518
        %v1647 = vadd.f32 %v1133, %v1519
        %v1648 = vadd.f32 %v1134, %v1520
        %v1649 = vadd.f32 %v1135, %v1521
        %v1650 = vadd.f32 %v1136, %v1522
        %v1651 = vadd.f32 %v1137, %v1523
        %v1652 = vadd.f32 %v1138, %v1524
        %v1653 = vadd.f32 %v1139, %v1525
        %v1654 = vadd.f32 %v1140, %v1526
        %v1655 = vadd.f32 %v1141, %v1527
        %v1656 = vadd.f32 %v1142, %v1528
        %v1657 = vadd.f32 %v1143, %v1529
        %v1658 = vadd.f32 %v1144, %v1530
        %v1659 = vadd.f32 %v1145, %v1531
        %v1660 = vadd.f32 %v1146, %v1532
        %v1661 = vadd.f32 %v1147, %v1533
        %v1662 = vadd.f32 %v1148, %v1534
        %v1663 = vadd.f32 %v1149, %v1535
        %v1664 = vadd.f32 %v1150, %v1536
        %v1665 = vadd.f32 %v1151, %v1537
        %v1666 = vadd.f32 %v1152, %v1538
        %v1667 = vadd.f32 %v1153, %v1539
        %v1668 = vadd.f32 %v1154, %v1540
        %v1669 = vadd.f32 %v1155, %v1541
        %v1670 = vadd.f32 %v1156, %v1542
        %v1671 = vadd.f32 %v1157, %v1543
        %v1672 = vadd.f32 %v1158, %v1544
        %v1673 = vadd.f32 %v1159, %v1545
        %v1674 = vadd.f32 %v1160, %v1546
        %v1675 = vadd.f32 %v1161, %v1547
        %v1676 = vadd.f32 %v1162, %v1548
        %v1677 = vadd.f32 %v1163, %v1549
        %v1678 = vadd.f32 %v1164, %v1550
        %v1679 = vadd.f32 %v1165, %v1551
        %v1680 = vadd.f32 %v1166, %v1552
        %v1681 = vadd.f32 %v1167, %v1553
        %v1682 = vadd.f32 %v1168, %v1554
        %v1683 = vadd.f32 %v1169, %v1555
        %v1684 = vadd.f32 %v1170, %v1556
        %v1685 = vadd.f32 %v1171, %v1557
        %v1686 = vadd.f32 %v1172, %v1558
        %v1687 = vadd.f32 %v1173, %v1559
        %v1688 = vadd.f32 %v1174, %v1560
        %v1689 = vadd.f32 %v1175, %v1561
        %v1690 = vadd.f32 %v1176, %v1562
        %v1691 = vadd.f32 %v1177, %v1563
        %v1692 = vadd.f32 %v1178, %v1564
        %v1693 = vadd.f32 %v1179, %v1565
        %v1694 = vadd.f32 %v1180, %v1566
        %v1695 = vadd.f32 %v1181, %v1567
        %v1696 = vadd.f32 %v1182, %v1568
        %v1697 = vadd.f32 %v1183, %v1569
        %v1698 = vadd.f32 %v1184, %v1570
        %v1699 = vadd.f32 %v1185, %v1571
        %v1700 = vadd.f32 %v1186, %v1572
        %v1701 = vadd.f32 %v1187, %v1573
        %v1702 = vadd.f32 %v1188, %v1574
        %v1703 = vadd.f32 %v1189, %v1575
        %v1704 = vadd.f32 %v1190, %v1576
        %v1705 = vadd.f32 %v1191, %v1577
        %v1706 = vadd.f32 %v1192, %v1578
        %v1707 = vadd.f32 %v1193, %v1579
        %v1708 = vadd.f32 %v1194, %v1580
        %v1709 = vadd.f32 %v1195, %v1581
        %v1710 = vadd.f32 %v1196, %v1582
        %v1711 = vadd.f32 %v1197, %v1583
        %v1712 = vadd.f32 %v1198, %v1584
        %v1713 = vadd.f32 %v1199, %v1585
        %v1714 = vadd.f32 %v1200, %v1586
        %v1715 = vadd.f32 %v1201, %v1587
        %v1716 = vadd.f32 %v1202, %v1588
        %v1717 = vpack.c.bf16 %v1590, %v1589
        %v1718 = vpack.c.bf16 %v1592, %v1591
        %v1719 = vpack.c.bf16 %v1594, %v1593
        %v1720 = vpack.c.bf16 %v1596, %v1595
        %v1721 = vpack.c.bf16 %v1598, %v1597
        %v1722 = vpack.c.bf16 %v1600, %v1599
        %v1723 = vpack.c.bf16 %v1602, %v1601
        %v1724 = vpack.c.bf16 %v1604, %v1603
        %v1725 = vpack.c.bf16 %v1606, %v1605
        %v1726 = vpack.c.bf16 %v1608, %v1607
        %v1727 = vpack.c.bf16 %v1610, %v1609
        %v1728 = vpack.c.bf16 %v1612, %v1611
        %v1729 = vpack.c.bf16 %v1614, %v1613
        %v1730 = vpack.c.bf16 %v1616, %v1615
        %v1731 = vpack.c.bf16 %v1618, %v1617
        %v1732 = vpack.c.bf16 %v1620, %v1619
        %v1733 = vpack.c.bf16 %v1622, %v1621
        %v1734 = vpack.c.bf16 %v1624, %v1623
        %v1735 = vpack.c.bf16 %v1626, %v1625
        %v1736 = vpack.c.bf16 %v1628, %v1627
        %v1737 = vpack.c.bf16 %v1630, %v1629
        %v1738 = vpack.c.bf16 %v1632, %v1631
        %v1739 = vpack.c.bf16 %v1634, %v1633
        %v1740 = vpack.c.bf16 %v1636, %v1635
        %v1741 = vpack.c.bf16 %v1638, %v1637
        %v1742 = vpack.c.bf16 %v1640, %v1639
        %v1743 = vpack.c.bf16 %v1642, %v1641
        %v1744 = vpack.c.bf16 %v1644, %v1643
        %v1745 = vpack.c.bf16 %v1646, %v1645
        %v1746 = vpack.c.bf16 %v1648, %v1647
        %v1747 = vpack.c.bf16 %v1650, %v1649
        %v1748 = vpack.c.bf16 %v1652, %v1651
        %v1749 = vpack.c.bf16 %v1654, %v1653
        %v1750 = vpack.c.bf16 %v1656, %v1655
        %v1751 = vpack.c.bf16 %v1658, %v1657
        %v1752 = vpack.c.bf16 %v1660, %v1659
        %v1753 = vpack.c.bf16 %v1662, %v1661
        %v1754 = vpack.c.bf16 %v1664, %v1663
        %v1755 = vpack.c.bf16 %v1666, %v1665
        %v1756 = vpack.c.bf16 %v1668, %v1667
        %v1757 = vpack.c.bf16 %v1670, %v1669
        %v1758 = vpack.c.bf16 %v1672, %v1671
        %v1759 = vpack.c.bf16 %v1674, %v1673
        %v1760 = vpack.c.bf16 %v1676, %v1675
        %v1761 = vpack.c.bf16 %v1678, %v1677
        %v1762 = vpack.c.bf16 %v1680, %v1679
        %v1763 = vpack.c.bf16 %v1682, %v1681
        %v1764 = vpack.c.bf16 %v1684, %v1683
        %v1765 = vpack.c.bf16 %v1686, %v1685
        %v1766 = vpack.c.bf16 %v1688, %v1687
        %v1767 = vpack.c.bf16 %v1690, %v1689
        %v1768 = vpack.c.bf16 %v1692, %v1691
        %v1769 = vpack.c.bf16 %v1694, %v1693
        %v1770 = vpack.c.bf16 %v1696, %v1695
        %v1771 = vpack.c.bf16 %v1698, %v1697
        %v1772 = vpack.c.bf16 %v1700, %v1699
        %v1773 = vpack.c.bf16 %v1702, %v1701
        %v1774 = vpack.c.bf16 %v1704, %v1703
        %v1775 = vpack.c.bf16 %v1706, %v1705
        %v1776 = vpack.c.bf16 %v1708, %v1707
        %v1777 = vpack.c.bf16 %v1710, %v1709
        %v1778 = vpack.c.bf16 %v1712, %v1711
        %v1779 = vpack.c.bf16 %v1714, %v1713
        %v1780 = vpack.c.bf16 %v1716, %v1715
        %p1781 = scmp.eq.s32.totalorder %s23, 0
        // Predicated region
        $region49: #{curvenet_forward.1} parent=43 // pred_check
          %p1782 = pneg %p1781
        $region50: #{curvenet_forward.1} parent=43 // pred_check_branch
          %1784 = sbr.rel (%p1782) target = $region52
        $region51: #{curvenet_forward.1} parent=43 // pred_region
          %1785 = vst [vmem:[#allocation2] sm:$0xff] 0.0
          %1786 = vst [vmem:[#allocation2 + $0x8] sm:$0xff] 0.0
          %1787 = vst [vmem:[#allocation2 + $0x10] sm:$0xff] 0.0
          %1788 = vst [vmem:[#allocation2 + $0x18] sm:$0xff] 0.0
          %1789 = vst [vmem:[#allocation2 + $0x20] sm:$0xff] 0.0
          %1790 = vst [vmem:[#allocation2 + $0x28] sm:$0xff] 0.0
          %1791 = vst [vmem:[#allocation2 + $0x30] sm:$0xff] 0.0
          %1792 = vst [vmem:[#allocation2 + $0x38] sm:$0xff] 0.0
          %1793 = vst [vmem:[#allocation2 + $0x40] sm:$0xff] 0.0
          %1794 = vst [vmem:[#allocation2 + $0x48] sm:$0xff] 0.0
          %1795 = vst [vmem:[#allocation2 + $0x50] sm:$0xff] 0.0
          %1796 = vst [vmem:[#allocation2 + $0x58] sm:$0xff] 0.0
          %1797 = vst [vmem:[#allocation2 + $0x60] sm:$0xff] 0.0
          %1798 = vst [vmem:[#allocation2 + $0x68] sm:$0xff] 0.0
          %1799 = vst [vmem:[#allocation2 + $0x70] sm:$0xff] 0.0
          %1800 = vst [vmem:[#allocation2 + $0x78] sm:$0xff] 0.0
        $region52: #{curvenet_forward.1} parent=43 // pred_fallthru
          _
        %v1801 = vld [vmem:[#allocation2] sm:$0xff]
        %v1802 = vld [vmem:[#allocation2 + $0x8] sm:$0xff]
        %v1803 = vld [vmem:[#allocation2 + $0x10] sm:$0xff]
        %v1804 = vld [vmem:[#allocation2 + $0x18] sm:$0xff]
        %v1805 = vld [vmem:[#allocation2 + $0x20] sm:$0xff]
        %v1806 = vld [vmem:[#allocation2 + $0x28] sm:$0xff]
        %v1807 = vld [vmem:[#allocation2 + $0x30] sm:$0xff]
        %v1808 = vld [vmem:[#allocation2 + $0x38] sm:$0xff]
        %v1809 = vld [vmem:[#allocation2 + $0x40] sm:$0xff]
        %v1810 = vld [vmem:[#allocation2 + $0x48] sm:$0xff]
        %v1811 = vld [vmem:[#allocation2 + $0x50] sm:$0xff]
        %v1812 = vld [vmem:[#allocation2 + $0x58] sm:$0xff]
        %v1813 = vld [vmem:[#allocation2 + $0x60] sm:$0xff]
        %v1814 = vld [vmem:[#allocation2 + $0x68] sm:$0xff]
        %v1815 = vld [vmem:[#allocation2 + $0x70] sm:$0xff]
        %v1816 = vld [vmem:[#allocation2 + $0x78] sm:$0xff]
        %v1817 = vld [vmem:[%s291] sm:$0xff]
        %v1818 = vld [vmem:[%s291 + $0x8] sm:$0xff]
        %v1819 = vld [vmem:[%s291 + $0x10] sm:$0xff]
        %v1820 = vld [vmem:[%s291 + $0x18] sm:$0xff]
        %v1821 = vld [vmem:[%s291 + $0x20] sm:$0xff]
        %v1822 = vld [vmem:[%s291 + $0x28] sm:$0xff]
        %v1823 = vld [vmem:[%s291 + $0x30] sm:$0xff]
        %v1824 = vld [vmem:[%s291 + $0x38] sm:$0xff]
        %v1825 = vld [vmem:[%s291 + $0x40] sm:$0xff]
        %v1826 = vld [vmem:[%s291 + $0x48] sm:$0xff]
        %v1827 = vld [vmem:[%s291 + $0x50] sm:$0xff]
        %v1828 = vld [vmem:[%s291 + $0x58] sm:$0xff]
        %v1829 = vld [vmem:[%s291 + $0x60] sm:$0xff]
        %v1830 = vld [vmem:[%s291 + $0x68] sm:$0xff]
        %v1831 = vld [vmem:[%s291 + $0x70] sm:$0xff]
        %v1832 = vld [vmem:[%s291 + $0x78] sm:$0xff]
        %v1833 = vld [vmem:[%s291 + $0x80] sm:$0xff]
        %v1834 = vld [vmem:[%s291 + $0x88] sm:$0xff]
        %v1835 = vld [vmem:[%s291 + $0x90] sm:$0xff]
        %v1836 = vld [vmem:[%s291 + $0x98] sm:$0xff]
        %v1837 = vld [vmem:[%s291 + $0xa0] sm:$0xff]
        %v1838 = vld [vmem:[%s291 + $0xa8] sm:$0xff]
        %v1839 = vld [vmem:[%s291 + $0xb0] sm:$0xff]
        %v1840 = vld [vmem:[%s291 + $0xb8] sm:$0xff]
        %v1841 = vld [vmem:[%s291 + $0xc0] sm:$0xff]
        %v1842 = vld [vmem:[%s291 + $0xc8] sm:$0xff]
        %v1843 = vld [vmem:[%s291 + $0xd0] sm:$0xff]
        %v1844 = vld [vmem:[%s291 + $0xd8] sm:$0xff]
        %v1845 = vld [vmem:[%s291 + $0xe0] sm:$0xff]
        %v1846 = vld [vmem:[%s291 + $0xe8] sm:$0xff]
        %v1847 = vld [vmem:[%s291 + $0xf0] sm:$0xff]
        %v1848 = vld [vmem:[%s291 + $0xf8] sm:$0xff]
        %v1849 = vld [vmem:[%s291 + $0x100] sm:$0xff]
        %v1850 = vld [vmem:[%s291 + $0x108] sm:$0xff]
        %v1851 = vld [vmem:[%s291 + $0x110] sm:$0xff]
        %v1852 = vld [vmem:[%s291 + $0x118] sm:$0xff]
        %v1853 = vld [vmem:[%s291 + $0x120] sm:$0xff]
        %v1854 = vld [vmem:[%s291 + $0x128] sm:$0xff]
        %v1855 = vld [vmem:[%s291 + $0x130] sm:$0xff]
        %v1856 = vld [vmem:[%s291 + $0x138] sm:$0xff]
        %v1857 = vld [vmem:[%s291 + $0x140] sm:$0xff]
        %v1858 = vld [vmem:[%s291 + $0x148] sm:$0xff]
        %v1859 = vld [vmem:[%s291 + $0x150] sm:$0xff]
        %v1860 = vld [vmem:[%s291 + $0x158] sm:$0xff]
        %v1861 = vld [vmem:[%s291 + $0x160] sm:$0xff]
        %v1862 = vld [vmem:[%s291 + $0x168] sm:$0xff]
        %v1863 = vld [vmem:[%s291 + $0x170] sm:$0xff]
        %v1864 = vld [vmem:[%s291 + $0x178] sm:$0xff]
        %v1865 = vld [vmem:[%s291 + $0x180] sm:$0xff]
        %v1866 = vld [vmem:[%s291 + $0x188] sm:$0xff]
        %v1867 = vld [vmem:[%s291 + $0x190] sm:$0xff]
        %v1868 = vld [vmem:[%s291 + $0x198] sm:$0xff]
        %v1869 = vld [vmem:[%s291 + $0x1a0] sm:$0xff]
        %v1870 = vld [vmem:[%s291 + $0x1a8] sm:$0xff]
        %v1871 = vld [vmem:[%s291 + $0x1b0] sm:$0xff]
        %v1872 = vld [vmem:[%s291 + $0x1b8] sm:$0xff]
        %v1873 = vld [vmem:[%s291 + $0x1c0] sm:$0xff]
        %v1874 = vld [vmem:[%s291 + $0x1c8] sm:$0xff]
        %v1875 = vld [vmem:[%s291 + $0x1d0] sm:$0xff]
        %v1876 = vld [vmem:[%s291 + $0x1d8] sm:$0xff]
        %v1877 = vld [vmem:[%s291 + $0x1e0] sm:$0xff]
        %v1878 = vld [vmem:[%s291 + $0x1e8] sm:$0xff]
        %v1879 = vld [vmem:[%s291 + $0x1f0] sm:$0xff]
        %v1880 = vld [vmem:[%s291 + $0x1f8] sm:$0xff]
        %v1881 = vld [vmem:[%s291 + $0x200] sm:$0xff]
        %v1882 = vld [vmem:[%s291 + $0x208] sm:$0xff]
        %v1883 = vld [vmem:[%s291 + $0x210] sm:$0xff]
        %v1884 = vld [vmem:[%s291 + $0x218] sm:$0xff]
        %v1885 = vld [vmem:[%s291 + $0x220] sm:$0xff]
        %v1886 = vld [vmem:[%s291 + $0x228] sm:$0xff]
        %v1887 = vld [vmem:[%s291 + $0x230] sm:$0xff]
        %v1888 = vld [vmem:[%s291 + $0x238] sm:$0xff]
        %v1889 = vld [vmem:[%s291 + $0x240] sm:$0xff]
        %v1890 = vld [vmem:[%s291 + $0x248] sm:$0xff]
        %v1891 = vld [vmem:[%s291 + $0x250] sm:$0xff]
        %v1892 = vld [vmem:[%s291 + $0x258] sm:$0xff]
        %v1893 = vld [vmem:[%s291 + $0x260] sm:$0xff]
        %v1894 = vld [vmem:[%s291 + $0x268] sm:$0xff]
        %v1895 = vld [vmem:[%s291 + $0x270] sm:$0xff]
        %v1896 = vld [vmem:[%s291 + $0x278] sm:$0xff]
        %v1897 = vld [vmem:[%s291 + $0x280] sm:$0xff]
        %v1898 = vld [vmem:[%s291 + $0x288] sm:$0xff]
        %v1899 = vld [vmem:[%s291 + $0x290] sm:$0xff]
        %v1900 = vld [vmem:[%s291 + $0x298] sm:$0xff]
        %v1901 = vld [vmem:[%s291 + $0x2a0] sm:$0xff]
        %v1902 = vld [vmem:[%s291 + $0x2a8] sm:$0xff]
        %v1903 = vld [vmem:[%s291 + $0x2b0] sm:$0xff]
        %v1904 = vld [vmem:[%s291 + $0x2b8] sm:$0xff]
        %v1905 = vld [vmem:[%s291 + $0x2c0] sm:$0xff]
        %v1906 = vld [vmem:[%s291 + $0x2c8] sm:$0xff]
        %v1907 = vld [vmem:[%s291 + $0x2d0] sm:$0xff]
        %v1908 = vld [vmem:[%s291 + $0x2d8] sm:$0xff]
        %v1909 = vld [vmem:[%s291 + $0x2e0] sm:$0xff]
        %v1910 = vld [vmem:[%s291 + $0x2e8] sm:$0xff]
        %v1911 = vld [vmem:[%s291 + $0x2f0] sm:$0xff]
        %v1912 = vld [vmem:[%s291 + $0x2f8] sm:$0xff]
        %v1913 = vld [vmem:[%s291 + $0x300] sm:$0xff]
        %v1914 = vld [vmem:[%s291 + $0x308] sm:$0xff]
        %v1915 = vld [vmem:[%s291 + $0x310] sm:$0xff]
        %v1916 = vld [vmem:[%s291 + $0x318] sm:$0xff]
        %v1917 = vld [vmem:[%s291 + $0x320] sm:$0xff]
        %v1918 = vld [vmem:[%s291 + $0x328] sm:$0xff]
        %v1919 = vld [vmem:[%s291 + $0x330] sm:$0xff]
        %v1920 = vld [vmem:[%s291 + $0x338] sm:$0xff]
        %v1921 = vld [vmem:[%s291 + $0x340] sm:$0xff]
        %v1922 = vld [vmem:[%s291 + $0x348] sm:$0xff]
        %v1923 = vld [vmem:[%s291 + $0x350] sm:$0xff]
        %v1924 = vld [vmem:[%s291 + $0x358] sm:$0xff]
        %v1925 = vld [vmem:[%s291 + $0x360] sm:$0xff]
        %v1926 = vld [vmem:[%s291 + $0x368] sm:$0xff]
        %v1927 = vld [vmem:[%s291 + $0x370] sm:$0xff]
        %v1928 = vld [vmem:[%s291 + $0x378] sm:$0xff]
        %v1929 = vld [vmem:[%s291 + $0x380] sm:$0xff]
        %v1930 = vld [vmem:[%s291 + $0x388] sm:$0xff]
        %v1931 = vld [vmem:[%s291 + $0x390] sm:$0xff]
        %v1932 = vld [vmem:[%s291 + $0x398] sm:$0xff]
        %v1933 = vld [vmem:[%s291 + $0x3a0] sm:$0xff]
        %v1934 = vld [vmem:[%s291 + $0x3a8] sm:$0xff]
        %v1935 = vld [vmem:[%s291 + $0x3b0] sm:$0xff]
        %v1936 = vld [vmem:[%s291 + $0x3b8] sm:$0xff]
        %v1937 = vld [vmem:[%s291 + $0x3c0] sm:$0xff]
        %v1938 = vld [vmem:[%s291 + $0x3c8] sm:$0xff]
        %v1939 = vld [vmem:[%s291 + $0x3d0] sm:$0xff]
        %v1940 = vld [vmem:[%s291 + $0x3d8] sm:$0xff]
        %v1941 = vld [vmem:[%s291 + $0x3e0] sm:$0xff]
        %v1942 = vld [vmem:[%s291 + $0x3e8] sm:$0xff]
        %v1943 = vld [vmem:[%s291 + $0x3f0] sm:$0xff]
        %v1944 = vld [vmem:[%s291 + $0x3f8] sm:$0xff]
        %v1945 = vpack.c.bf16 %v1825, %v1817
        %v1946 = vpack.c.bf16 %v1826, %v1818
        %v1947 = vpack.c.bf16 %v1827, %v1819
        %v1948 = vpack.c.bf16 %v1828, %v1820
        %v1949 = vpack.c.bf16 %v1829, %v1821
        %v1950 = vpack.c.bf16 %v1830, %v1822
        %v1951 = vpack.c.bf16 %v1831, %v1823
        %v1952 = vpack.c.bf16 %v1832, %v1824
        %v1953 = vpack.c.bf16 %v1841, %v1833
        %v1954 = vpack.c.bf16 %v1842, %v1834
        %v1955 = vpack.c.bf16 %v1843, %v1835
        %v1956 = vpack.c.bf16 %v1844, %v1836
        %v1957 = vpack.c.bf16 %v1845, %v1837
        %v1958 = vpack.c.bf16 %v1846, %v1838
        %v1959 = vpack.c.bf16 %v1847, %v1839
        %v1960 = vpack.c.bf16 %v1848, %v1840
        %v1961 = vpack.c.bf16 %v1857, %v1849
        %v1962 = vpack.c.bf16 %v1858, %v1850
        %v1963 = vpack.c.bf16 %v1859, %v1851
        %v1964 = vpack.c.bf16 %v1860, %v1852
        %v1965 = vpack.c.bf16 %v1861, %v1853
        %v1966 = vpack.c.bf16 %v1862, %v1854
        %v1967 = vpack.c.bf16 %v1863, %v1855
        %v1968 = vpack.c.bf16 %v1864, %v1856
        %v1969 = vpack.c.bf16 %v1873, %v1865
        %v1970 = vpack.c.bf16 %v1874, %v1866
        %v1971 = vpack.c.bf16 %v1875, %v1867
        %v1972 = vpack.c.bf16 %v1876, %v1868
        %v1973 = vpack.c.bf16 %v1877, %v1869
        %v1974 = vpack.c.bf16 %v1878, %v1870
        %v1975 = vpack.c.bf16 %v1879, %v1871
        %v1976 = vpack.c.bf16 %v1880, %v1872
        %v1977 = vpack.c.bf16 %v1889, %v1881
        %v1978 = vpack.c.bf16 %v1890, %v1882
        %v1979 = vpack.c.bf16 %v1891, %v1883
        %v1980 = vpack.c.bf16 %v1892, %v1884
        %v1981 = vpack.c.bf16 %v1893, %v1885
        %v1982 = vpack.c.bf16 %v1894, %v1886
        %v1983 = vpack.c.bf16 %v1895, %v1887
        %v1984 = vpack.c.bf16 %v1896, %v1888
        %v1985 = vpack.c.bf16 %v1905, %v1897
        %v1986 = vpack.c.bf16 %v1906, %v1898
        %v1987 = vpack.c.bf16 %v1907, %v1899
        %v1988 = vpack.c.bf16 %v1908, %v1900
        %v1989 = vpack.c.bf16 %v1909, %v1901
        %v1990 = vpack.c.bf16 %v1910, %v1902
        %v1991 = vpack.c.bf16 %v1911, %v1903
        %v1992 = vpack.c.bf16 %v1912, %v1904
        %v1993 = vpack.c.bf16 %v1921, %v1913
        %v1994 = vpack.c.bf16 %v1922, %v1914
        %v1995 = vpack.c.bf16 %v1923, %v1915
        %v1996 = vpack.c.bf16 %v1924, %v1916
        %v1997 = vpack.c.bf16 %v1925, %v1917
        %v1998 = vpack.c.bf16 %v1926, %v1918
        %v1999 = vpack.c.bf16 %v1927, %v1919
        %v2000 = vpack.c.bf16 %v1928, %v1920
        %v2001 = vpack.c.bf16 %v1937, %v1929
        %v2002 = vpack.c.bf16 %v1938, %v1930
        %v2003 = vpack.c.bf16 %v1939, %v1931
        %v2004 = vpack.c.bf16 %v1940, %v1932
        %v2005 = vpack.c.bf16 %v1941, %v1933
        %v2006 = vpack.c.bf16 %v1942, %v1934
        %v2007 = vpack.c.bf16 %v1943, %v1935
        %v2008 = vpack.c.bf16 %v1944, %v1936
        %2009 = vmatprep.subr.bf16.mxu0 0
        %2010 = vmatpush1.bf16.msra.mxu0 %v1724
        %2011 = vmatprep.subr.bf16.mxu0 0
        %2012 = vmatpush1.bf16.msra.mxu0 %v1723
        %2013 = vmatprep.subr.bf16.mxu0 0
        %2014 = vmatpush1.bf16.msra.mxu0 %v1722
        %2015 = vmatprep.subr.bf16.mxu0 0
        %2016 = vmatpush1.bf16.msra.mxu0 %v1721
        %2017 = vmatprep.subr.bf16.mxu0 0
        %2018 = vmatpush1.bf16.msra.mxu0 %v1720
        %2019 = vmatprep.subr.bf16.mxu0 0
        %2020 = vmatpush1.bf16.msra.mxu0 %v1719
        %2021 = vmatprep.subr.bf16.mxu0 0
        %2022 = vmatpush1.bf16.msra.mxu0 %v1718
        %2023 = vmatprep.subr.bf16.mxu0 0
        %2024 = vmatpush1.bf16.msra.mxu0 %v1717
        %2025 = vmatprep.subr.bf16.mxu0 0
        %2026 = vmatpush2.bf16.msra.mxu0 %v1732
        %2027 = vmatprep.subr.bf16.mxu0 0
        %2028 = vmatpush2.bf16.msra.mxu0 %v1731
        %2029 = vmatprep.subr.bf16.mxu0 0
        %2030 = vmatpush2.bf16.msra.mxu0 %v1730
        %2031 = vmatprep.subr.bf16.mxu0 0
        %2032 = vmatpush2.bf16.msra.mxu0 %v1729
        %2033 = vmatprep.subr.bf16.mxu0 0
        %2034 = vmatpush2.bf16.msra.mxu0 %v1728
        %2035 = vmatprep.subr.bf16.mxu0 0
        %2036 = vmatpush2.bf16.msra.mxu0 %v1727
        %2037 = vmatprep.subr.bf16.mxu0 0
        %2038 = vmatpush2.bf16.msra.mxu0 %v1726
        %2039 = vmatprep.subr.bf16.mxu0 0
        %2040 = vmatpush2.bf16.msra.mxu0 %v1725
        %2041 = vmatprep.mubr.bf16.mxu0 %v1946
        %2042 = vmatmul.mubr.bf16.gmra.mxu0 %v1945
        %v2043 = vpop.f32.mrf.mxu0
        %v2044 = vadd.f32 0.0, %v2043
        %v2045 = vpop.f32.mrf.mxu0
        %v2046 = vpop.f32.mrf.mxu0
        %v2047 = vadd.f32 0.0, %v2046
        %v2048 = vpop.f32.mrf.mxu0
        %2049 = vmatprep.mubr.bf16.mxu0 %v1954
        %2050 = vmatmul.mubr.bf16.gmra.mxu0 %v1953
        %v2051 = vpop.f32.mrf.mxu0
        %v2052 = vadd.f32 0.0, %v2051
        %v2053 = vpop.f32.mrf.mxu0
        %v2054 = vpop.f32.mrf.mxu0
        %v2055 = vadd.f32 0.0, %v2054
        %v2056 = vpop.f32.mrf.mxu0
        %2057 = vmatprep.mubr.bf16.mxu0 %v1962
        %2058 = vmatmul.mubr.bf16.gmra.mxu0 %v1961
        %v2059 = vpop.f32.mrf.mxu0
        %v2060 = vadd.f32 0.0, %v2059
        %v2061 = vpop.f32.mrf.mxu0
        %v2062 = vpop.f32.mrf.mxu0
        %v2063 = vadd.f32 0.0, %v2062
        %v2064 = vpop.f32.mrf.mxu0
        %2065 = vmatprep.mubr.bf16.mxu0 %v1970
        %2066 = vmatmul.mubr.bf16.gmra.mxu0 %v1969
        %v2067 = vpop.f32.mrf.mxu0
        %v2068 = vadd.f32 0.0, %v2067
        %v2069 = vpop.f32.mrf.mxu0
        %v2070 = vpop.f32.mrf.mxu0
        %v2071 = vadd.f32 0.0, %v2070
        %v2072 = vpop.f32.mrf.mxu0
        %2073 = vmatprep.mubr.bf16.mxu0 %v1978
        %2074 = vmatmul.mubr.bf16.gmra.mxu0 %v1977
        %v2075 = vpop.f32.mrf.mxu0
        %v2076 = vadd.f32 0.0, %v2075
        %v2077 = vpop.f32.mrf.mxu0
        %v2078 = vpop.f32.mrf.mxu0
        %v2079 = vadd.f32 0.0, %v2078
        %v2080 = vpop.f32.mrf.mxu0
        %2081 = vmatprep.mubr.bf16.mxu0 %v1986
        %2082 = vmatmul.mubr.bf16.gmra.mxu0 %v1985
        %v2083 = vpop.f32.mrf.mxu0
        %v2084 = vadd.f32 0.0, %v2083
        %v2085 = vpop.f32.mrf.mxu0
        %v2086 = vpop.f32.mrf.mxu0
        %v2087 = vadd.f32 0.0, %v2086
        %v2088 = vpop.f32.mrf.mxu0
        %2089 = vmatprep.mubr.bf16.mxu0 %v1994
        %2090 = vmatmul.mubr.bf16.gmra.mxu0 %v1993
        %v2091 = vpop.f32.mrf.mxu0
        %v2092 = vadd.f32 0.0, %v2091
        %v2093 = vpop.f32.mrf.mxu0
        %v2094 = vpop.f32.mrf.mxu0
        %v2095 = vadd.f32 0.0, %v2094
        %v2096 = vpop.f32.mrf.mxu0
        %2097 = vmatprep.mubr.bf16.mxu0 %v2002
        %2098 = vmatmul.mubr.bf16.gmra.mxu0 %v2001
        %v2099 = vpop.f32.mrf.mxu0
        %v2100 = vadd.f32 0.0, %v2099
        %v2101 = vpop.f32.mrf.mxu0
        %v2102 = vpop.f32.mrf.mxu0
        %v2103 = vadd.f32 0.0, %v2102
        %v2104 = vpop.f32.mrf.mxu0
        %2105 = vdwg.mxu0
        %2106 = vmatprep.subr.bf16.mxu0 0
        %2107 = vmatpush1.bf16.msra.mxu0 %v1740
        %2108 = vmatprep.subr.bf16.mxu0 0
        %2109 = vmatpush1.bf16.msra.mxu0 %v1739
        %2110 = vmatprep.subr.bf16.mxu0 0
        %2111 = vmatpush1.bf16.msra.mxu0 %v1738
        %2112 = vmatprep.subr.bf16.mxu0 0
        %2113 = vmatpush1.bf16.msra.mxu0 %v1737
        %2114 = vmatprep.subr.bf16.mxu0 0
        %2115 = vmatpush1.bf16.msra.mxu0 %v1736
        %2116 = vmatprep.subr.bf16.mxu0 0
        %2117 = vmatpush1.bf16.msra.mxu0 %v1735
        %2118 = vmatprep.subr.bf16.mxu0 0
        %2119 = vmatpush1.bf16.msra.mxu0 %v1734
        %2120 = vmatprep.subr.bf16.mxu0 0
        %2121 = vmatpush1.bf16.msra.mxu0 %v1733
        %2122 = vmatprep.subr.bf16.mxu0 0
        %2123 = vmatpush2.bf16.msra.mxu0 %v1748
        %2124 = vmatprep.subr.bf16.mxu0 0
        %2125 = vmatpush2.bf16.msra.mxu0 %v1747
        %2126 = vmatprep.subr.bf16.mxu0 0
        %2127 = vmatpush2.bf16.msra.mxu0 %v1746
        %2128 = vmatprep.subr.bf16.mxu0 0
        %2129 = vmatpush2.bf16.msra.mxu0 %v1745
        %2130 = vmatprep.subr.bf16.mxu0 0
        %2131 = vmatpush2.bf16.msra.mxu0 %v1744
        %2132 = vmatprep.subr.bf16.mxu0 0
        %2133 = vmatpush2.bf16.msra.mxu0 %v1743
        %2134 = vmatprep.subr.bf16.mxu0 0
        %2135 = vmatpush2.bf16.msra.mxu0 %v1742
        %2136 = vmatprep.subr.bf16.mxu0 0
        %2137 = vmatpush2.bf16.msra.mxu0 %v1741
        %2138 = vmatprep.mubr.bf16.mxu0 %v1948
        %2139 = vmatmul.mubr.bf16.gmra.mxu0 %v1947
        %v2140 = vpop.f32.mrf.mxu0
        %v2141 = vadd.f32 %v2044, %v2140
        %v2142 = vpop.f32.mrf.mxu0
        %v2143 = vpop.f32.mrf.mxu0
        %v2144 = vadd.f32 %v2047, %v2143
        %v2145 = vpop.f32.mrf.mxu0
        %2146 = vmatprep.mubr.bf16.mxu0 %v1956
        %2147 = vmatmul.mubr.bf16.gmra.mxu0 %v1955
        %v2148 = vpop.f32.mrf.mxu0
        %v2149 = vadd.f32 %v2052, %v2148
        %v2150 = vpop.f32.mrf.mxu0
        %v2151 = vpop.f32.mrf.mxu0
        %v2152 = vadd.f32 %v2055, %v2151
        %v2153 = vpop.f32.mrf.mxu0
        %2154 = vmatprep.mubr.bf16.mxu0 %v1964
        %2155 = vmatmul.mubr.bf16.gmra.mxu0 %v1963
        %v2156 = vpop.f32.mrf.mxu0
        %v2157 = vadd.f32 %v2060, %v2156
        %v2158 = vpop.f32.mrf.mxu0
        %v2159 = vpop.f32.mrf.mxu0
        %v2160 = vadd.f32 %v2063, %v2159
        %v2161 = vpop.f32.mrf.mxu0
        %2162 = vmatprep.mubr.bf16.mxu0 %v1972
        %2163 = vmatmul.mubr.bf16.gmra.mxu0 %v1971
        %v2164 = vpop.f32.mrf.mxu0
        %v2165 = vadd.f32 %v2068, %v2164
        %v2166 = vpop.f32.mrf.mxu0
        %v2167 = vpop.f32.mrf.mxu0
        %v2168 = vadd.f32 %v2071, %v2167
        %v2169 = vpop.f32.mrf.mxu0
        %2170 = vmatprep.mubr.bf16.mxu0 %v1980
        %2171 = vmatmul.mubr.bf16.gmra.mxu0 %v1979
        %v2172 = vpop.f32.mrf.mxu0
        %v2173 = vadd.f32 %v2076, %v2172
        %v2174 = vpop.f32.mrf.mxu0
        %v2175 = vpop.f32.mrf.mxu0
        %v2176 = vadd.f32 %v2079, %v2175
        %v2177 = vpop.f32.mrf.mxu0
        %2178 = vmatprep.mubr.bf16.mxu0 %v1988
        %2179 = vmatmul.mubr.bf16.gmra.mxu0 %v1987
        %v2180 = vpop.f32.mrf.mxu0
        %v2181 = vadd.f32 %v2084, %v2180
        %v2182 = vpop.f32.mrf.mxu0
        %v2183 = vpop.f32.mrf.mxu0
        %v2184 = vadd.f32 %v2087, %v2183
        %v2185 = vpop.f32.mrf.mxu0
        %2186 = vmatprep.mubr.bf16.mxu0 %v1996
        %2187 = vmatmul.mubr.bf16.gmra.mxu0 %v1995
        %v2188 = vpop.f32.mrf.mxu0
        %v2189 = vadd.f32 %v2092, %v2188
        %v2190 = vpop.f32.mrf.mxu0
        %v2191 = vpop.f32.mrf.mxu0
        %v2192 = vadd.f32 %v2095, %v2191
        %v2193 = vpop.f32.mrf.mxu0
        %2194 = vmatprep.mubr.bf16.mxu0 %v2004
        %2195 = vmatmul.mubr.bf16.gmra.mxu0 %v2003
        %v2196 = vpop.f32.mrf.mxu0
        %v2197 = vadd.f32 %v2100, %v2196
        %v2198 = vpop.f32.mrf.mxu0
        %v2199 = vpop.f32.mrf.mxu0
        %v2200 = vadd.f32 %v2103, %v2199
        %v2201 = vpop.f32.mrf.mxu0
        %2202 = vdwg.mxu0
        %2203 = vmatprep.subr.bf16.mxu0 0
        %2204 = vmatpush1.bf16.msra.mxu0 %v1756
        %2205 = vmatprep.subr.bf16.mxu0 0
        %2206 = vmatpush1.bf16.msra.mxu0 %v1755
        %2207 = vmatprep.subr.bf16.mxu0 0
        %2208 = vmatpush1.bf16.msra.mxu0 %v1754
        %2209 = vmatprep.subr.bf16.mxu0 0
        %2210 = vmatpush1.bf16.msra.mxu0 %v1753
        %2211 = vmatprep.subr.bf16.mxu0 0
        %2212 = vmatpush1.bf16.msra.mxu0 %v1752
        %2213 = vmatprep.subr.bf16.mxu0 0
        %2214 = vmatpush1.bf16.msra.mxu0 %v1751
        %2215 = vmatprep.subr.bf16.mxu0 0
        %2216 = vmatpush1.bf16.msra.mxu0 %v1750
        %2217 = vmatprep.subr.bf16.mxu0 0
        %2218 = vmatpush1.bf16.msra.mxu0 %v1749
        %2219 = vmatprep.subr.bf16.mxu0 0
        %2220 = vmatpush2.bf16.msra.mxu0 %v1764
        %2221 = vmatprep.subr.bf16.mxu0 0
        %2222 = vmatpush2.bf16.msra.mxu0 %v1763
        %2223 = vmatprep.subr.bf16.mxu0 0
        %2224 = vmatpush2.bf16.msra.mxu0 %v1762
        %2225 = vmatprep.subr.bf16.mxu0 0
        %2226 = vmatpush2.bf16.msra.mxu0 %v1761
        %2227 = vmatprep.subr.bf16.mxu0 0
        %2228 = vmatpush2.bf16.msra.mxu0 %v1760
        %2229 = vmatprep.subr.bf16.mxu0 0
        %2230 = vmatpush2.bf16.msra.mxu0 %v1759
        %2231 = vmatprep.subr.bf16.mxu0 0
        %2232 = vmatpush2.bf16.msra.mxu0 %v1758
        %2233 = vmatprep.subr.bf16.mxu0 0
        %2234 = vmatpush2.bf16.msra.mxu0 %v1757
        %2235 = vmatprep.mubr.bf16.mxu0 %v1950
        %2236 = vmatmul.mubr.bf16.gmra.mxu0 %v1949
        %v2237 = vpop.f32.mrf.mxu0
        %v2238 = vadd.f32 %v2141, %v2237
        %v2239 = vpop.f32.mrf.mxu0
        %v2240 = vpop.f32.mrf.mxu0
        %v2241 = vadd.f32 %v2144, %v2240
        %v2242 = vpop.f32.mrf.mxu0
        %2243 = vmatprep.mubr.bf16.mxu0 %v1958
        %2244 = vmatmul.mubr.bf16.gmra.mxu0 %v1957
        %v2245 = vpop.f32.mrf.mxu0
        %v2246 = vadd.f32 %v2149, %v2245
        %v2247 = vpop.f32.mrf.mxu0
        %v2248 = vpop.f32.mrf.mxu0
        %v2249 = vadd.f32 %v2152, %v2248
        %v2250 = vpop.f32.mrf.mxu0
        %2251 = vmatprep.mubr.bf16.mxu0 %v1966
        %2252 = vmatmul.mubr.bf16.gmra.mxu0 %v1965
        %v2253 = vpop.f32.mrf.mxu0
        %v2254 = vadd.f32 %v2157, %v2253
        %v2255 = vpop.f32.mrf.mxu0
        %v2256 = vpop.f32.mrf.mxu0
        %v2257 = vadd.f32 %v2160, %v2256
        %v2258 = vpop.f32.mrf.mxu0
        %2259 = vmatprep.mubr.bf16.mxu0 %v1974
        %2260 = vmatmul.mubr.bf16.gmra.mxu0 %v1973
        %v2261 = vpop.f32.mrf.mxu0
        %v2262 = vadd.f32 %v2165, %v2261
        %v2263 = vpop.f32.mrf.mxu0
        %v2264 = vpop.f32.mrf.mxu0
        %v2265 = vadd.f32 %v2168, %v2264
        %v2266 = vpop.f32.mrf.mxu0
        %2267 = vmatprep.mubr.bf16.mxu0 %v1982
        %2268 = vmatmul.mubr.bf16.gmra.mxu0 %v1981
        %v2269 = vpop.f32.mrf.mxu0
        %v2270 = vadd.f32 %v2173, %v2269
        %v2271 = vpop.f32.mrf.mxu0
        %v2272 = vpop.f32.mrf.mxu0
        %v2273 = vadd.f32 %v2176, %v2272
        %v2274 = vpop.f32.mrf.mxu0
        %2275 = vmatprep.mubr.bf16.mxu0 %v1990
        %2276 = vmatmul.mubr.bf16.gmra.mxu0 %v1989
        %v2277 = vpop.f32.mrf.mxu0
        %v2278 = vadd.f32 %v2181, %v2277
        %v2279 = vpop.f32.mrf.mxu0
        %v2280 = vpop.f32.mrf.mxu0
        %v2281 = vadd.f32 %v2184, %v2280
        %v2282 = vpop.f32.mrf.mxu0
        %2283 = vmatprep.mubr.bf16.mxu0 %v1998
        %2284 = vmatmul.mubr.bf16.gmra.mxu0 %v1997
        %v2285 = vpop.f32.mrf.mxu0
        %v2286 = vadd.f32 %v2189, %v2285
        %v2287 = vpop.f32.mrf.mxu0
        %v2288 = vpop.f32.mrf.mxu0
        %v2289 = vadd.f32 %v2192, %v2288
        %v2290 = vpop.f32.mrf.mxu0
        %2291 = vmatprep.mubr.bf16.mxu0 %v2006
        %2292 = vmatmul.mubr.bf16.gmra.mxu0 %v2005
        %v2293 = vpop.f32.mrf.mxu0
        %v2294 = vadd.f32 %v2197, %v2293
        %v2295 = vpop.f32.mrf.mxu0
        %v2296 = vpop.f32.mrf.mxu0
        %v2297 = vadd.f32 %v2200, %v2296
        %v2298 = vpop.f32.mrf.mxu0
        %2299 = vdwg.mxu0
        %2300 = vmatprep.subr.bf16.mxu0 0
        %2301 = vmatpush1.bf16.msra.mxu0 %v1772
        %2302 = vmatprep.subr.bf16.mxu0 0
        %2303 = vmatpush1.bf16.msra.mxu0 %v1771
        %2304 = vmatprep.subr.bf16.mxu0 0
        %2305 = vmatpush1.bf16.msra.mxu0 %v1770
        %2306 = vmatprep.subr.bf16.mxu0 0
        %2307 = vmatpush1.bf16.msra.mxu0 %v1769
        %2308 = vmatprep.subr.bf16.mxu0 0
        %2309 = vmatpush1.bf16.msra.mxu0 %v1768
        %2310 = vmatprep.subr.bf16.mxu0 0
        %2311 = vmatpush1.bf16.msra.mxu0 %v1767
        %2312 = vmatprep.subr.bf16.mxu0 0
        %2313 = vmatpush1.bf16.msra.mxu0 %v1766
        %2314 = vmatprep.subr.bf16.mxu0 0
        %2315 = vmatpush1.bf16.msra.mxu0 %v1765
        %2316 = vmatprep.subr.bf16.mxu0 0
        %2317 = vmatpush2.bf16.msra.mxu0 %v1780
        %2318 = vmatprep.subr.bf16.mxu0 0
        %2319 = vmatpush2.bf16.msra.mxu0 %v1779
        %2320 = vmatprep.subr.bf16.mxu0 0
        %2321 = vmatpush2.bf16.msra.mxu0 %v1778
        %2322 = vmatprep.subr.bf16.mxu0 0
        %2323 = vmatpush2.bf16.msra.mxu0 %v1777
        %2324 = vmatprep.subr.bf16.mxu0 0
        %2325 = vmatpush2.bf16.msra.mxu0 %v1776
        %2326 = vmatprep.subr.bf16.mxu0 0
        %2327 = vmatpush2.bf16.msra.mxu0 %v1775
        %2328 = vmatprep.subr.bf16.mxu0 0
        %2329 = vmatpush2.bf16.msra.mxu0 %v1774
        %2330 = vmatprep.subr.bf16.mxu0 0
        %2331 = vmatpush2.bf16.msra.mxu0 %v1773
        %2332 = vmatprep.mubr.bf16.mxu0 %v1952
        %2333 = vmatmul.mubr.bf16.gmra.mxu0 %v1951
        %v2334 = vpop.f32.mrf.mxu0
        %v2335 = vadd.f32 %v2238, %v2334
        %v2336 = vpop.f32.mrf.mxu0
        %v2337 = vpop.f32.mrf.mxu0
        %v2338 = vadd.f32 %v2241, %v2337
        %v2339 = vpop.f32.mrf.mxu0
        %2340 = vmatprep.mubr.bf16.mxu0 %v1960
        %2341 = vmatmul.mubr.bf16.gmra.mxu0 %v1959
        %v2342 = vpop.f32.mrf.mxu0
        %v2343 = vadd.f32 %v2246, %v2342
        %v2344 = vpop.f32.mrf.mxu0
        %v2345 = vpop.f32.mrf.mxu0
        %v2346 = vadd.f32 %v2249, %v2345
        %v2347 = vpop.f32.mrf.mxu0
        %2348 = vmatprep.mubr.bf16.mxu0 %v1968
        %2349 = vmatmul.mubr.bf16.gmra.mxu0 %v1967
        %v2350 = vpop.f32.mrf.mxu0
        %v2351 = vadd.f32 %v2254, %v2350
        %v2352 = vpop.f32.mrf.mxu0
        %v2353 = vpop.f32.mrf.mxu0
        %v2354 = vadd.f32 %v2257, %v2353
        %v2355 = vpop.f32.mrf.mxu0
        %2356 = vmatprep.mubr.bf16.mxu0 %v1976
        %2357 = vmatmul.mubr.bf16.gmra.mxu0 %v1975
        %v2358 = vpop.f32.mrf.mxu0
        %v2359 = vadd.f32 %v2262, %v2358
        %v2360 = vpop.f32.mrf.mxu0
        %v2361 = vpop.f32.mrf.mxu0
        %v2362 = vadd.f32 %v2265, %v2361
        %v2363 = vpop.f32.mrf.mxu0
        %2364 = vmatprep.mubr.bf16.mxu0 %v1984
        %2365 = vmatmul.mubr.bf16.gmra.mxu0 %v1983
        %v2366 = vpop.f32.mrf.mxu0
        %v2367 = vadd.f32 %v2270, %v2366
        %v2368 = vpop.f32.mrf.mxu0
        %v2369 = vpop.f32.mrf.mxu0
        %v2370 = vadd.f32 %v2273, %v2369
        %v2371 = vpop.f32.mrf.mxu0
        %2372 = vmatprep.mubr.bf16.mxu0 %v1992
        %2373 = vmatmul.mubr.bf16.gmra.mxu0 %v1991
        %v2374 = vpop.f32.mrf.mxu0
        %v2375 = vadd.f32 %v2278, %v2374
        %v2376 = vpop.f32.mrf.mxu0
        %v2377 = vpop.f32.mrf.mxu0
        %v2378 = vadd.f32 %v2281, %v2377
        %v2379 = vpop.f32.mrf.mxu0
        %2380 = vmatprep.mubr.bf16.mxu0 %v2000
        %2381 = vmatmul.mubr.bf16.gmra.mxu0 %v1999
        %v2382 = vpop.f32.mrf.mxu0
        %v2383 = vadd.f32 %v2286, %v2382
        %v2384 = vpop.f32.mrf.mxu0
        %v2385 = vpop.f32.mrf.mxu0
        %v2386 = vadd.f32 %v2289, %v2385
        %v2387 = vpop.f32.mrf.mxu0
        %2388 = vmatprep.mubr.bf16.mxu0 %v2008
        %2389 = vmatmul.mubr.bf16.gmra.mxu0 %v2007
        %v2390 = vpop.f32.mrf.mxu0
        %v2391 = vadd.f32 %v2294, %v2390
        %v2392 = vpop.f32.mrf.mxu0
        %v2393 = vpop.f32.mrf.mxu0
        %v2394 = vadd.f32 %v2297, %v2393
        %v2395 = vpop.f32.mrf.mxu0
        %2396 = vdwg.mxu0
        %v2397 = vadd.f32 %v1801, %v2335
        %v2398 = vadd.f32 %v1802, %v2338
        %v2399 = vadd.f32 %v1803, %v2343
        %v2400 = vadd.f32 %v1804, %v2346
        %v2401 = vadd.f32 %v1805, %v2351
        %v2402 = vadd.f32 %v1806, %v2354
        %v2403 = vadd.f32 %v1807, %v2359
        %v2404 = vadd.f32 %v1808, %v2362
        %v2405 = vadd.f32 %v1809, %v2367
        %v2406 = vadd.f32 %v1810, %v2370
        %v2407 = vadd.f32 %v1811, %v2375
        %v2408 = vadd.f32 %v1812, %v2378
        %v2409 = vadd.f32 %v1813, %v2383
        %v2410 = vadd.f32 %v1814, %v2386
        %v2411 = vadd.f32 %v1815, %v2391
        %v2412 = vadd.f32 %v1816, %v2394
        %2413 = vst [vmem:[#allocation2] sm:$0xff] %v2397
        %2414 = vst [vmem:[#allocation2 + $0x8] sm:$0xff] %v2398
        %2415 = vst [vmem:[#allocation2 + $0x10] sm:$0xff] %v2399
        %2416 = vst [vmem:[#allocation2 + $0x18] sm:$0xff] %v2400
        %2417 = vst [vmem:[#allocation2 + $0x20] sm:$0xff] %v2401
        %2418 = vst [vmem:[#allocation2 + $0x28] sm:$0xff] %v2402
        %2419 = vst [vmem:[#allocation2 + $0x30] sm:$0xff] %v2403
        %2420 = vst [vmem:[#allocation2 + $0x38] sm:$0xff] %v2404
        %2421 = vst [vmem:[#allocation2 + $0x40] sm:$0xff] %v2405
        %2422 = vst [vmem:[#allocation2 + $0x48] sm:$0xff] %v2406
        %2423 = vst [vmem:[#allocation2 + $0x50] sm:$0xff] %v2407
        %2424 = vst [vmem:[#allocation2 + $0x58] sm:$0xff] %v2408
        %2425 = vst [vmem:[#allocation2 + $0x60] sm:$0xff] %v2409
        %2426 = vst [vmem:[#allocation2 + $0x68] sm:$0xff] %v2410
        %2427 = vst [vmem:[#allocation2 + $0x70] sm:$0xff] %v2411
        %2428 = vst [vmem:[#allocation2 + $0x78] sm:$0xff] %v2412
        // Predicated region
        $region53: #{curvenet_forward.1} parent=43 // pred_check
          %p2429 = pneg %p1781
        $region54: #{curvenet_forward.1} parent=43 // pred_check_branch
          %2431 = sbr.rel (%p2429) target = $region56
        $region55: #{curvenet_forward.1} parent=43 // pred_region
          %v2432 = vld [vmem:[%s3] sm:$0x1]
          %v2433 = vmul.f32 %v560, %v2432
          %v2434 = vld [vmem:[%s5] sm:$0x1]
          %v2435 = vmul.f32 %v560, %v2434
          %v2436 = vld [vmem:[%s4] sm:$0xf]
          %v2437 = vld [vmem:[%s4 + $0x4] sm:$0xf]
          %v2438 = vld [vmem:[%s4 + $0x8] sm:$0xf]
          %v2439 = vld [vmem:[%s4 + $0xc] sm:$0xf]
          %v2440 = vld [vmem:[%s4 + $0x10] sm:$0xf]
          %v2441 = vld [vmem:[%s4 + $0x14] sm:$0xf]
          %v2442 = vld [vmem:[%s4 + $0x18] sm:$0xf]
          %v2443 = vld [vmem:[%s4 + $0x1c] sm:$0xf]
          %v2444 = vld [vmem:[%s4 + $0x20] sm:$0xf]
          %v2445 = vld [vmem:[%s4 + $0x24] sm:$0xf]
          %v2446 = vld [vmem:[%s4 + $0x28] sm:$0xf]
          %v2447 = vld [vmem:[%s4 + $0x2c] sm:$0xf]
          %v2448 = vld [vmem:[%s4 + $0x30] sm:$0xf]
          %v2449 = vld [vmem:[%s4 + $0x34] sm:$0xf]
          %v2450 = vld [vmem:[%s4 + $0x38] sm:$0xf]
          %v2451 = vld [vmem:[%s4 + $0x3c] sm:$0xf]
          %v2452 = vunpack.c.l.bf16 %v2436
          %v2453 = vunpack.c.l.bf16 %v2437
          %v2454 = vunpack.c.l.bf16 %v2438
          %v2455 = vunpack.c.l.bf16 %v2439
          %v2456 = vunpack.c.l.bf16 %v2440
          %v2457 = vunpack.c.l.bf16 %v2441
          %v2458 = vunpack.c.l.bf16 %v2442
          %v2459 = vunpack.c.l.bf16 %v2443
          %v2460 = vunpack.c.l.bf16 %v2444
          %v2461 = vunpack.c.l.bf16 %v2445
          %v2462 = vunpack.c.l.bf16 %v2446
          %v2463 = vunpack.c.l.bf16 %v2447
          %v2464 = vunpack.c.l.bf16 %v2448
          %v2465 = vunpack.c.l.bf16 %v2449
          %v2466 = vunpack.c.l.bf16 %v2450
          %v2467 = vunpack.c.l.bf16 %v2451
          %v2468 = vmul.f32 %v560, %v2452
          %v2469 = vmul.f32 %v560, %v2453
          %v2470 = vmul.f32 %v560, %v2454
          %v2471 = vmul.f32 %v560, %v2455
          %v2472 = vmul.f32 %v560, %v2456
          %v2473 = vmul.f32 %v560, %v2457
          %v2474 = vmul.f32 %v560, %v2458
          %v2475 = vmul.f32 %v560, %v2459
          %v2476 = vmul.f32 %v560, %v2460
          %v2477 = vmul.f32 %v560, %v2461
          %v2478 = vmul.f32 %v560, %v2462
          %v2479 = vmul.f32 %v560, %v2463
          %v2480 = vmul.f32 %v560, %v2464
          %v2481 = vmul.f32 %v560, %v2465
          %v2482 = vmul.f32 %v560, %v2466
          %v2483 = vmul.f32 %v560, %v2467
          %v2484 = vld [vmem:[%s3 + $0x1] sm:$0x1]
          %v2485 = vmul.f32 %v946, %v2484
          %v2486 = vadd.f32 %v2433, %v2485
          %v2487 = vld [vmem:[%s5 + $0x1] sm:$0x1]
          %v2488 = vmul.f32 %v946, %v2487
          %v2489 = vadd.f32 %v2435, %v2488
          %s2490 = scalar_lea.vmem %s4, 64
          %v2491 = vld [vmem:[%s2490] sm:$0xf]
          %v2492 = vld [vmem:[%s2490 + $0x4] sm:$0xf]
          %v2493 = vld [vmem:[%s2490 + $0x8] sm:$0xf]
          %v2494 = vld [vmem:[%s2490 + $0xc] sm:$0xf]
          %v2495 = vld [vmem:[%s2490 + $0x10] sm:$0xf]
          %v2496 = vld [vmem:[%s2490 + $0x14] sm:$0xf]
          %v2497 = vld [vmem:[%s2490 + $0x18] sm:$0xf]
          %v2498 = vld [vmem:[%s2490 + $0x1c] sm:$0xf]
          %v2499 = vld [vmem:[%s2490 + $0x20] sm:$0xf]
          %v2500 = vld [vmem:[%s2490 + $0x24] sm:$0xf]
          %v2501 = vld [vmem:[%s2490 + $0x28] sm:$0xf]
          %v2502 = vld [vmem:[%s2490 + $0x2c] sm:$0xf]
          %v2503 = vld [vmem:[%s2490 + $0x30] sm:$0xf]
          %v2504 = vld [vmem:[%s2490 + $0x34] sm:$0xf]
          %v2505 = vld [vmem:[%s2490 + $0x38] sm:$0xf]
          %v2506 = vld [vmem:[%s2490 + $0x3c] sm:$0xf]
          %v2507 = vunpack.c.l.bf16 %v2491
          %v2508 = vunpack.c.l.bf16 %v2492
          %v2509 = vunpack.c.l.bf16 %v2493
          %v2510 = vunpack.c.l.bf16 %v2494
          %v2511 = vunpack.c.l.bf16 %v2495
          %v2512 = vunpack.c.l.bf16 %v2496
          %v2513 = vunpack.c.l.bf16 %v2497
          %v2514 = vunpack.c.l.bf16 %v2498
          %v2515 = vunpack.c.l.bf16 %v2499
          %v2516 = vunpack.c.l.bf16 %v2500
          %v2517 = vunpack.c.l.bf16 %v2501
          %v2518 = vunpack.c.l.bf16 %v2502
          %v2519 = vunpack.c.l.bf16 %v2503
          %v2520 = vunpack.c.l.bf16 %v2504
          %v2521 = vunpack.c.l.bf16 %v2505
          %v2522 = vunpack.c.l.bf16 %v2506
          %v2523 = vmul.f32 %v946, %v2507
          %v2524 = vmul.f32 %v946, %v2508
          %v2525 = vmul.f32 %v946, %v2509
          %v2526 = vmul.f32 %v946, %v2510
          %v2527 = vmul.f32 %v946, %v2511
          %v2528 = vmul.f32 %v946, %v2512
          %v2529 = vmul.f32 %v946, %v2513
          %v2530 = vmul.f32 %v946, %v2514
          %v2531 = vmul.f32 %v946, %v2515
          %v2532 = vmul.f32 %v946, %v2516
          %v2533 = vmul.f32 %v946, %v2517
          %v2534 = vmul.f32 %v946, %v2518
          %v2535 = vmul.f32 %v946, %v2519
          %v2536 = vmul.f32 %v946, %v2520
          %v2537 = vmul.f32 %v946, %v2521
          %v2538 = vmul.f32 %v946, %v2522
          %v2539 = vadd.f32 %v2468, %v2523
          %v2540 = vadd.f32 %v2469, %v2524
          %v2541 = vadd.f32 %v2470, %v2525
          %v2542 = vadd.f32 %v2471, %v2526
          %v2543 = vadd.f32 %v2472, %v2527
          %v2544 = vadd.f32 %v2473, %v2528
          %v2545 = vadd.f32 %v2474, %v2529
          %v2546 = vadd.f32 %v2475, %v2530
          %v2547 = vadd.f32 %v2476, %v2531
          %v2548 = vadd.f32 %v2477, %v2532
          %v2549 = vadd.f32 %v2478, %v2533
          %v2550 = vadd.f32 %v2479, %v2534
          %v2551 = vadd.f32 %v2480, %v2535
          %v2552 = vadd.f32 %v2481, %v2536
          %v2553 = vadd.f32 %v2482, %v2537
          %v2554 = vadd.f32 %v2483, %v2538
          %v2555 = vld [vmem:[%s3 + $0x2] sm:$0x1]
          %v2556 = vmul.f32 %v1460, %v2555
          %v2557 = vadd.f32 %v2486, %v2556
          %v2558 = vld [vmem:[%s5 + $0x2] sm:$0x1]
          %v2559 = vmul.f32 %v1460, %v2558
          %v2560 = vadd.f32 %v2489, %v2559
          %s2561 = scalar_lea.vmem %s4, 128
          %v2562 = vld [vmem:[%s2561] sm:$0xf]
          %v2563 = vld [vmem:[%s2561 + $0x4] sm:$0xf]
          %v2564 = vld [vmem:[%s2561 + $0x8] sm:$0xf]
          %v2565 = vld [vmem:[%s2561 + $0xc] sm:$0xf]
          %v2566 = vld [vmem:[%s2561 + $0x10] sm:$0xf]
          %v2567 = vld [vmem:[%s2561 + $0x14] sm:$0xf]
          %v2568 = vld [vmem:[%s2561 + $0x18] sm:$0xf]
          %v2569 = vld [vmem:[%s2561 + $0x1c] sm:$0xf]
          %v2570 = vld [vmem:[%s2561 + $0x20] sm:$0xf]
          %v2571 = vld [vmem:[%s2561 + $0x24] sm:$0xf]
          %v2572 = vld [vmem:[%s2561 + $0x28] sm:$0xf]
          %v2573 = vld [vmem:[%s2561 + $0x2c] sm:$0xf]
          %v2574 = vld [vmem:[%s2561 + $0x30] sm:$0xf]
          %v2575 = vld [vmem:[%s2561 + $0x34] sm:$0xf]
          %v2576 = vld [vmem:[%s2561 + $0x38] sm:$0xf]
          %v2577 = vld [vmem:[%s2561 + $0x3c] sm:$0xf]
          %v2578 = vunpack.c.l.bf16 %v2562
          %v2579 = vunpack.c.l.bf16 %v2563
          %v2580 = vunpack.c.l.bf16 %v2564
          %v2581 = vunpack.c.l.bf16 %v2565
          %v2582 = vunpack.c.l.bf16 %v2566
          %v2583 = vunpack.c.l.bf16 %v2567
          %v2584 = vunpack.c.l.bf16 %v2568
          %v2585 = vunpack.c.l.bf16 %v2569
          %v2586 = vunpack.c.l.bf16 %v2570
          %v2587 = vunpack.c.l.bf16 %v2571
          %v2588 = vunpack.c.l.bf16 %v2572
          %v2589 = vunpack.c.l.bf16 %v2573
          %v2590 = vunpack.c.l.bf16 %v2574
          %v2591 = vunpack.c.l.bf16 %v2575
          %v2592 = vunpack.c.l.bf16 %v2576
          %v2593 = vunpack.c.l.bf16 %v2577
          %v2594 = vmul.f32 %v1460, %v2578
          %v2595 = vmul.f32 %v1460, %v2579
          %v2596 = vmul.f32 %v1460, %v2580
          %v2597 = vmul.f32 %v1460, %v2581
          %v2598 = vmul.f32 %v1460, %v2582
          %v2599 = vmul.f32 %v1460, %v2583
          %v2600 = vmul.f32 %v1460, %v2584
          %v2601 = vmul.f32 %v1460, %v2585
          %v2602 = vmul.f32 %v1460, %v2586
          %v2603 = vmul.f32 %v1460, %v2587
          %v2604 = vmul.f32 %v1460, %v2588
          %v2605 = vmul.f32 %v1460, %v2589
          %v2606 = vmul.f32 %v1460, %v2590
          %v2607 = vmul.f32 %v1460, %v2591
          %v2608 = vmul.f32 %v1460, %v2592
          %v2609 = vmul.f32 %v1460, %v2593
          %v2610 = vadd.f32 %v2539, %v2594
          %v2611 = vadd.f32 %v2540, %v2595
          %v2612 = vadd.f32 %v2541, %v2596
          %v2613 = vadd.f32 %v2542, %v2597
          %v2614 = vadd.f32 %v2543, %v2598
          %v2615 = vadd.f32 %v2544, %v2599
          %v2616 = vadd.f32 %v2545, %v2600
          %v2617 = vadd.f32 %v2546, %v2601
          %v2618 = vadd.f32 %v2547, %v2602
          %v2619 = vadd.f32 %v2548, %v2603
          %v2620 = vadd.f32 %v2549, %v2604
          %v2621 = vadd.f32 %v2550, %v2605
          %v2622 = vadd.f32 %v2551, %v2606
          %v2623 = vadd.f32 %v2552, %v2607
          %v2624 = vadd.f32 %v2553, %v2608
          %v2625 = vadd.f32 %v2554, %v2609
          %v2626 = vld [vmem:[#allocation2] sm:$0xff]
          %v2627 = vld [vmem:[#allocation2 + $0x8] sm:$0xff]
          %v2628 = vld [vmem:[#allocation2 + $0x10] sm:$0xff]
          %v2629 = vld [vmem:[#allocation2 + $0x18] sm:$0xff]
          %v2630 = vld [vmem:[#allocation2 + $0x20] sm:$0xff]
          %v2631 = vld [vmem:[#allocation2 + $0x28] sm:$0xff]
          %v2632 = vld [vmem:[#allocation2 + $0x30] sm:$0xff]
          %v2633 = vld [vmem:[#allocation2 + $0x38] sm:$0xff]
          %v2634 = vld [vmem:[#allocation2 + $0x40] sm:$0xff]
          %v2635 = vld [vmem:[#allocation2 + $0x48] sm:$0xff]
          %v2636 = vld [vmem:[#allocation2 + $0x50] sm:$0xff]
          %v2637 = vld [vmem:[#allocation2 + $0x58] sm:$0xff]
          %v2638 = vld [vmem:[#allocation2 + $0x60] sm:$0xff]
          %v2639 = vld [vmem:[#allocation2 + $0x68] sm:$0xff]
          %v2640 = vld [vmem:[#allocation2 + $0x70] sm:$0xff]
          %v2641 = vld [vmem:[#allocation2 + $0x78] sm:$0xff]
          %v2642 = vlaneseq
          %v2643 = vshrl.u32 %v2642, 7
          %v2644 = vsub.s32 0, %v2643
          %v2645 = vrot.slane %v2557, %v2644
          %v2646 = vadd.f32 %v2626, %v2645
          %v2647 = vadd.f32 %v2627, %v2645
          %v2648 = vadd.f32 %v2628, %v2645
          %v2649 = vadd.f32 %v2629, %v2645
          %v2650 = vadd.f32 %v2630, %v2645
          %v2651 = vadd.f32 %v2631, %v2645
          %v2652 = vadd.f32 %v2632, %v2645
          %v2653 = vadd.f32 %v2633, %v2645
          %v2654 = vadd.f32 %v2634, %v2645
          %v2655 = vadd.f32 %v2635, %v2645
          %v2656 = vadd.f32 %v2636, %v2645
          %v2657 = vadd.f32 %v2637, %v2645
          %v2658 = vadd.f32 %v2638, %v2645
          %v2659 = vadd.f32 %v2639, %v2645
          %v2660 = vadd.f32 %v2640, %v2645
          %v2661 = vadd.f32 %v2641, %v2645
          %v2662 = vmax.f32 %v2646, 0.0
          %v2663 = vmax.f32 %v2647, 0.0
          %v2664 = vmax.f32 %v2648, 0.0
          %v2665 = vmax.f32 %v2649, 0.0
          %v2666 = vmax.f32 %v2650, 0.0
          %v2667 = vmax.f32 %v2651, 0.0
          %v2668 = vmax.f32 %v2652, 0.0
          %v2669 = vmax.f32 %v2653, 0.0
          %v2670 = vmax.f32 %v2654, 0.0
          %v2671 = vmax.f32 %v2655, 0.0
          %v2672 = vmax.f32 %v2656, 0.0
          %v2673 = vmax.f32 %v2657, 0.0
          %v2674 = vmax.f32 %v2658, 0.0
          %v2675 = vmax.f32 %v2659, 0.0
          %v2676 = vmax.f32 %v2660, 0.0
          %v2677 = vmax.f32 %v2661, 0.0
          %v2678 = vpack.c.bf16 %v2663, %v2662
          %v2679 = vpack.c.bf16 %v2665, %v2664
          %v2680 = vpack.c.bf16 %v2667, %v2666
          %v2681 = vpack.c.bf16 %v2669, %v2668
          %v2682 = vpack.c.bf16 %v2671, %v2670
          %v2683 = vpack.c.bf16 %v2673, %v2672
          %v2684 = vpack.c.bf16 %v2675, %v2674
          %v2685 = vpack.c.bf16 %v2677, %v2676
          %v2686 = vpack.c.bf16 %v2611, %v2610
          %v2687 = vpack.c.bf16 %v2613, %v2612
          %v2688 = vpack.c.bf16 %v2615, %v2614
          %v2689 = vpack.c.bf16 %v2617, %v2616
          %v2690 = vpack.c.bf16 %v2619, %v2618
          %v2691 = vpack.c.bf16 %v2621, %v2620
          %v2692 = vpack.c.bf16 %v2623, %v2622
          %v2693 = vpack.c.bf16 %v2625, %v2624
          %v2694 = vlaneseq
          %v2695 = vshrl.u32 %v2694, 7
          %v2696 = vsub.s32 0, %v2695
          %v2697 = vrot.slane %v2560, %v2696
          %2698 = vmatprep.subr.bf16.mxu0 0
          %2699 = vmatpush1.bf16.msra.mxu0 %v2693
          %2700 = vmatprep.subr.bf16.mxu0 0
          %2701 = vmatpush1.bf16.msra.mxu0 %v2692
          %2702 = vmatprep.subr.bf16.mxu0 0
          %2703 = vmatpush1.bf16.msra.mxu0 %v2691
          %2704 = vmatprep.subr.bf16.mxu0 0
          %2705 = vmatpush1.bf16.msra.mxu0 %v2690
          %2706 = vmatprep.subr.bf16.mxu0 0
          %2707 = vmatpush1.bf16.msra.mxu0 %v2689
          %2708 = vmatprep.subr.bf16.mxu0 0
          %2709 = vmatpush1.bf16.msra.mxu0 %v2688
          %2710 = vmatprep.subr.bf16.mxu0 0
          %2711 = vmatpush1.bf16.msra.mxu0 %v2687
          %2712 = vmatprep.subr.bf16.mxu0 0
          %2713 = vmatpush1.bf16.msra.mxu0 %v2686
          %2714 = vmatprep.subr.bf16.mxu0 0
          %2715 = vmatpush2.bf16.msra.mxu0 0
          %2716 = vmatprep.subr.bf16.mxu0 0
          %2717 = vmatpush2.bf16.msra.mxu0 0
          %2718 = vmatprep.subr.bf16.mxu0 0
          %2719 = vmatpush2.bf16.msra.mxu0 0
          %2720 = vmatprep.subr.bf16.mxu0 0
          %2721 = vmatpush2.bf16.msra.mxu0 0
          %2722 = vmatprep.subr.bf16.mxu0 0
          %2723 = vmatpush2.bf16.msra.mxu0 0
          %2724 = vmatprep.subr.bf16.mxu0 0
          %2725 = vmatpush2.bf16.msra.mxu0 0
          %2726 = vmatprep.subr.bf16.mxu0 0
          %2727 = vmatpush2.bf16.msra.mxu0 0
          %2728 = vmatprep.subr.bf16.mxu0 0
          %2729 = vmatpush2.bf16.msra.mxu0 0
          %2730 = vmatprep.mubr.bf16.mxu0 0
          %2731 = vmatmul.mubr.bf16.gmra.mxu0 %v2678
          %v2732 = vpop.f32.mrf.mxu0
          %v2733 = vadd.f32 %v2697, %v2732
          %v2734 = vpop.f32.mrf.mxu0
          %v2735 = vpop.f32.mrf.mxu0
          %v2736 = vadd.f32 %v2697, %v2735
          %v2737 = vpop.f32.mrf.mxu0
          %2738 = vmatprep.mubr.bf16.mxu0 0
          %2739 = vmatmul.mubr.bf16.gmra.mxu0 %v2679
          %v2740 = vpop.f32.mrf.mxu0
          %v2741 = vadd.f32 %v2697, %v2740
          %v2742 = vpop.f32.mrf.mxu0
          %v2743 = vpop.f32.mrf.mxu0
          %v2744 = vadd.f32 %v2697, %v2743
          %v2745 = vpop.f32.mrf.mxu0
          %2746 = vmatprep.mubr.bf16.mxu0 0
          %2747 = vmatmul.mubr.bf16.gmra.mxu0 %v2680
          %v2748 = vpop.f32.mrf.mxu0
          %v2749 = vadd.f32 %v2697, %v2748
          %v2750 = vpop.f32.mrf.mxu0
          %v2751 = vpop.f32.mrf.mxu0
          %v2752 = vadd.f32 %v2697, %v2751
          %v2753 = vpop.f32.mrf.mxu0
          %2754 = vmatprep.mubr.bf16.mxu0 0
          %2755 = vmatmul.mubr.bf16.gmra.mxu0 %v2681
          %v2756 = vpop.f32.mrf.mxu0
          %v2757 = vadd.f32 %v2697, %v2756
          %v2758 = vpop.f32.mrf.mxu0
          %v2759 = vpop.f32.mrf.mxu0
          %v2760 = vadd.f32 %v2697, %v2759
          %v2761 = vpop.f32.mrf.mxu0
          %2762 = vmatprep.mubr.bf16.mxu0 0
          %2763 = vmatmul.mubr.bf16.gmra.mxu0 %v2682
          %v2764 = vpop.f32.mrf.mxu0
          %v2765 = vadd.f32 %v2697, %v2764
          %v2766 = vpop.f32.mrf.mxu0
          %v2767 = vpop.f32.mrf.mxu0
          %v2768 = vadd.f32 %v2697, %v2767
          %v2769 = vpop.f32.mrf.mxu0
          %2770 = vmatprep.mubr.bf16.mxu0 0
          %2771 = vmatmul.mubr.bf16.gmra.mxu0 %v2683
          %v2772 = vpop.f32.mrf.mxu0
          %v2773 = vadd.f32 %v2697, %v2772
          %v2774 = vpop.f32.mrf.mxu0
          %v2775 = vpop.f32.mrf.mxu0
          %v2776 = vadd.f32 %v2697, %v2775
          %v2777 = vpop.f32.mrf.mxu0
          %2778 = vmatprep.mubr.bf16.mxu0 0
          %2779 = vmatmul.mubr.bf16.gmra.mxu0 %v2684
          %v2780 = vpop.f32.mrf.mxu0
          %v2781 = vadd.f32 %v2697, %v2780
          %v2782 = vpop.f32.mrf.mxu0
          %v2783 = vpop.f32.mrf.mxu0
          %v2784 = vadd.f32 %v2697, %v2783
          %v2785 = vpop.f32.mrf.mxu0
          %2786 = vmatprep.mubr.bf16.mxu0 0
          %2787 = vmatmul.mubr.bf16.gmra.mxu0 %v2685
          %v2788 = vpop.f32.mrf.mxu0
          %v2789 = vadd.f32 %v2697, %v2788
          %v2790 = vpop.f32.mrf.mxu0
          %v2791 = vpop.f32.mrf.mxu0
          %v2792 = vadd.f32 %v2697, %v2791
          %v2793 = vpop.f32.mrf.mxu0
          %2794 = vdwg.mxu0
          %2795 = vst [vmem:[%s298] sm:$0xff] %v2733
          %2796 = vst [vmem:[%s298 + $0x8] sm:$0xff] %v2736
          %2797 = vst [vmem:[%s298 + $0x10] sm:$0xff] %v2741
          %2798 = vst [vmem:[%s298 + $0x18] sm:$0xff] %v2744
          %2799 = vst [vmem:[%s298 + $0x20] sm:$0xff] %v2749
          %2800 = vst [vmem:[%s298 + $0x28] sm:$0xff] %v2752
          %2801 = vst [vmem:[%s298 + $0x30] sm:$0xff] %v2757
          %2802 = vst [vmem:[%s298 + $0x38] sm:$0xff] %v2760
          %2803 = vst [vmem:[%s298 + $0x40] sm:$0xff] %v2765
          %2804 = vst [vmem:[%s298 + $0x48] sm:$0xff] %v2768
          %2805 = vst [vmem:[%s298 + $0x50] sm:$0xff] %v2773
          %2806 = vst [vmem:[%s298 + $0x58] sm:$0xff] %v2776
          %2807 = vst [vmem:[%s298 + $0x60] sm:$0xff] %v2781
          %2808 = vst [vmem:[%s298 + $0x68] sm:$0xff] %v2784
          %2809 = vst [vmem:[%s298 + $0x70] sm:$0xff] %v2789
          %2810 = vst [vmem:[%s298 + $0x78] sm:$0xff] %v2792
        $region56: #{curvenet_forward.1} parent=43 // pred_fallthru
          _
        %s2811 = smul.u32 16, %s22
        %p2812 = scmp.lt.s32.totalorder %s2811, 31
        %s2813 = scalar_select %p2812, %s2811, 31
        %s2814 = smul.addr %s2813, 8
        %s2815 = scalar_lea.vmem %s6, %s2814
        // Predicated region
        $region57: #{curvenet_forward.1} parent=43 // pred_check
          %p2816 = pneg %p181
        $region58: #{curvenet_forward.1} parent=43 // pred_check_branch
          %2818 = sbr.rel (%p2816) target = $region60
        $region59: #{curvenet_forward.1} parent=43 // pred_region
          %s2819 = smul.u32 16, %s22
        $region60: #{curvenet_forward.1} parent=43 // pred_fallthru
          _
      $region44: #{curvenet_forward.1} parent=5 // pred_fallthru
        _
      %p2820 = scmp.le.s32.totalorder 2, %s13
      // Predicated region
      $region61: #{curvenet_forward.1} parent=5 // pred_check
        %p2821 = pneg %p2820
      $region62: #{curvenet_forward.1} parent=5 // pred_check_branch
        %2823 = sbr.rel (%p2821) target = $region64
      $region63: #{curvenet_forward.1} parent=5 // pred_region
        %s2824 = ssub.s32 %s13, 2
        // Predicated region
        $region65: #{curvenet_forward.1} parent=63 // pred_check
          %p2825 = pneg %p187
        $region66: #{curvenet_forward.1} parent=63 // pred_check_branch
          %2827 = sbr.rel (%p2825) target = $region68
        $region67: #{curvenet_forward.1} parent=63 // pred_region
          %s2828 = smul.u32 16, %s24
          %p2829 = scmp.lt.s32.totalorder %s2828, 31
          %s2830 = scalar_select %p2829, %s2828, 31
          %s2831 = smul.addr %s2830, 8
          %s2832 = scalar_lea.vmem %s6, %s2831
        $region68: #{curvenet_forward.1} parent=63 // pred_fallthru
          _
      $region64: #{curvenet_forward.1} parent=5 // pred_fallthru
        _
    $region6: #{curvenet_forward.1} parent=1 // loop_footer
      %s17 = sadd.s32 1, %s13
    $region7: #{curvenet_forward.1} parent=1 // loop_footer_branch
      %12 = sbr.rel target = $region3
    $region8: #{curvenet_forward.1} parent=1 // loop_exit
      _
    %2833 = vsyncpa [#allocation4], 1
    %s2834 = scalar_lea.sflag [#allocation4], 1
    %2835 = vsyncpa %s2834, 1

</llo_original>
